<compile_context>
chip_gen: v7x
topology: tpu7x:2x2x1
jax: 0.10.0
libtpu: 0.0.40
codegen_flags: <defaults>
</compile_context>

<pallas_src>
import functools

import jax
import jax.numpy as jnp
from jax import lax
from jax.experimental import pallas as pl
from jax.experimental.pallas import tpu as pltpu


# ----------------------------------------------------------------------------
# Fused encoder kernel: one (batch-block, layer) grid step per invocation
# ----------------------------------------------------------------------------

def _layer_norm(x, gamma, beta, eps=1e-5):
    mu = jnp.mean(x, axis=-1, keepdims=True)
    var = jnp.mean(jnp.square(x - mu), axis=-1, keepdims=True)
    return (x - mu) * lax.rsqrt(var + eps) * gamma + beta


def _encoder_kernel(lens_ref,                                   # scalar prefetch (SMEM)
                    x_ref, wqkv_ref, bqkv_ref, wout_ref, bout_ref, rel_ref, ln_ref,
                    w1_ref, b1_ref, w2_ref, b2_ref, wp_ref, bp_ref,
                    xout_ref, stats_ref,
                    acc_ref,                                    # VMEM carry across layers
                    *, T, C, H, D, K, WB, BB):
    f32 = jnp.float32
    bf16 = jnp.bfloat16
    NB = 2 * WB + 1
    bi = pl.program_id(0)
    l = pl.program_id(1)
    n_layers = pl.num_programs(1)
    scale = 1.0 / (D ** 0.5)
    nt = (((1,), (1,)), ((), ()))        # contract last dims: A @ B.T without transpose

    # Shared index tensors (length-independent), built once per grid step.
    row_i = lax.broadcasted_iota(jnp.int32, (T, T), 0)
    col_j = lax.broadcasted_iota(jnp.int32, (T, T), 1)
    diff = col_j - row_i                 # relative offset j - i
    t_iota = lax.broadcasted_iota(jnp.int32, (T, 1), 0)

    @pl.when(l == 0)
    def _():
        acc_ref[...] = x_ref[...].astype(f32)

    lnp = ln_ref[0]                      # (2, 2, C): [ln1/ln2][gamma/beta]
    pad_l, pad_r = (K - 1) // 2, K // 2

    def conv1d(z, w_ref):                # z: (T, Cin) bf16 ; w_ref[0, t]: (Cin, Cout) bf16
        # K accumulated per-tap matmuls on a time-padded slab (no im2col, no lane concat).
        if K == 1:
            return jnp.dot(z, w_ref[0, 0], preferred_element_type=f32)
        zp = jnp.concatenate(
            [jnp.zeros((pad_l, z.shape[1]), z.dtype), z,
             jnp.zeros((pad_r, z.shape[1]), z.dtype)], axis=0)
        acc = jnp.dot(zp[0:T, :], w_ref[0, 0], preferred_element_type=f32)
        for t in range(1, K):
            acc = acc + jnp.dot(zp[t:t + T, :], w_ref[0, t], preferred_element_type=f32)
        return acc

    for bb in range(BB):                 # per-sequence work inside one batch block
        length = lens_ref[bi * BB + bb]
        mask_t = (t_iota < length).astype(f32)                     # (T, 1)
        bad = jnp.logical_or(row_i >= length, col_j >= length)     # (T, T) attention mask

        x = acc_ref[bb] * mask_t                                   # (T, C) masked input
        x_res = x
        xb = x.astype(bf16)

        # ---- relative-position multi-head self-attention --------------------------
        # fused q/k/v projection: one (T, C) @ (C, 3C) MXU matmul (bf16 weights)
        qkv = jnp.dot(xb, wqkv_ref[0], preferred_element_type=f32) + bqkv_ref[0]

        attn = jnp.zeros((T, C), f32)
        for h in range(H):
            qh = (qkv[:, h * D:(h + 1) * D] * scale).astype(bf16)          # scale folded
            kh = qkv[:, C + h * D:C + (h + 1) * D].astype(bf16)
            vh = qkv[:, 2 * C + h * D:2 * C + (h + 1) * D].astype(bf16)

            s = lax.dot_general(qh, kh, nt, preferred_element_type=f32)    # (T, T)

            # rel-key logits: tiny matmul against the non-zero band, scattered onto
            # the |j-i| <= WB diagonals (everything outside the band is exactly zero).
            m_rel = lax.dot_general(qh, rel_ref[0, h], nt,
                                    preferred_element_type=f32)            # (T, NB)
            for w in range(NB):
                s = s + jnp.where(diff == (w - WB), m_rel[:, w:w + 1], 0.0)
            s = jnp.where(bad, -1e4, s)

            s = s - jnp.max(s, axis=-1, keepdims=True)
            p = jnp.exp(s)
            p = p / jnp.sum(p, axis=-1, keepdims=True)                     # exact divide

            o = jnp.dot(p.astype(bf16), vh, preferred_element_type=f32)    # (T, D)

            # rel-value term: per-diagonal sums of p times the band rows (rank-1 adds).
            band_v = rel_ref[0, H + h].astype(f32)                          # (NB, D)
            for w in range(NB):
                dsum = jnp.sum(jnp.where(diff == (w - WB), p, 0.0),
                               axis=-1, keepdims=True)                      # (T, 1)
                o = o + dsum * band_v[w:w + 1, :]

            # per-head output projection accumulated in place (no lane concat)
            attn = attn + jnp.dot(o.astype(bf16),
                                  wout_ref[0, h * D:(h + 1) * D, :],
                                  preferred_element_type=f32)
        attn = attn + bout_ref[0]

        x = _layer_norm(x_res + attn, lnp[0, 0:1, :], lnp[0, 1:2, :])
        y_res = x

        # ---- feed-forward: k-tap conv as K accumulated matmuls --------------------
        h1 = jnp.maximum(conv1d((x * mask_t).astype(bf16), w1_ref) + b1_ref[0], 0.0)
        y = (conv1d((h1 * mask_t).astype(bf16), w2_ref) + b2_ref[0]) * mask_t

        x = _layer_norm(y_res + y, lnp[1, 0:1, :], lnp[1, 1:2, :])
        acc_ref[bb] = x                  # carry to next layer

        # ---- final mask + stats projection (last layer only) ----------------------
        @pl.when(l == n_layers - 1)
        def _():
            xm = x * mask_t
            xout_ref[bb] = xm.astype(xout_ref.dtype)
            # wp is zero-padded to a multiple of 128 lanes -> lane-dense unmasked store
            stats = (jnp.dot(xm.astype(bf16), wp_ref[...],
                             preferred_element_type=f32) + bp_ref[...]) * mask_t
            stats_ref[bb] = stats.astype(stats_ref.dtype)


# ----------------------------------------------------------------------------
# Glue (pure JAX): embedding gather, relative-band slicing, one pallas_call
# ----------------------------------------------------------------------------

def get_relative_emb(rel_emb, t, window):
    """Slice the (..., 2*window+1, d) table to the (..., 2*t-1, d) window actually used.
    Mirrors the reference get_relative_emb (pad_length = max(t - window, 0))."""
    pad_length = max(t - window, 0)
    start = max(window + 1 - t, 0)
    end = start + 2 * t - 1
    if pad_length > 0:
        pads = [(0, 0)] * rel_emb.ndim
        pads[-2] = (pad_length, pad_length)
        rel_emb = jnp.pad(rel_emb, pads)
    return rel_emb[..., start:end, :]


def _pick_block_b(B):
    # Amortize weight DMA across the batch while keeping >= 2 grid steps on the batch
    # axis when possible (v7x megacore sharding via dimension_semantics "parallel").
    for bb in (8, 4, 2):
        if B % bb == 0 and B // bb >= 2:
            return bb
    return 1


def phoneme_encoder_forward(params, tokens, x_lengths, *, cfg, block_b=None):
    C = cfg['hidden_channels']; H = cfg['num_heads']; D = C // H
    K = cfg['kernel_size']; F = cfg['hidden_channels_ffn']
    O = cfg['out_channels']; W = cfg['rel_attn_window_size']; L = cfg['num_layers']
    B, T = tokens.shape

    BB = _pick_block_b(B) if block_b is None else block_b
    assert B % BB == 0

    # embedding + scale (gather kept in glue), channels-last (B, T, C)
    x = jnp.take(params['emb'], tokens, axis=0) * (C ** 0.5)

    # Compact relative band: after get_relative_emb, every row with |j - i| > min(T-1, W+1)
    # is exactly zero, so only the (NB, D) band is shipped to the kernel.
    Wb = min(T - 1, W + 1)
    NB = 2 * Wb + 1
    rel_used = get_relative_emb(params['emb_rel'], T, W)          # (L, 2, H, 2T-1, D)
    rel_band = rel_used[..., (T - 1 - Wb):(T - 1 + Wb + 1), :]
    rel_band = rel_band.reshape(L, 2 * H, NB, D).astype(jnp.bfloat16)

    # Lane-dense stats projection: pad 2*O up to a multiple of 128 inside the weight.
    P = ((2 * O + 127) // 128) * 128
    wp = jnp.zeros((C, P), jnp.bfloat16).at[:, :2 * O].set(params['wp'].astype(jnp.bfloat16))
    bp = jnp.zeros((1, P), jnp.float32).at[:, :2 * O].set(params['bp'])

    kernel = functools.partial(_encoder_kernel, T=T, C=C, H=H, D=D, K=K, WB=Wb, BB=BB)
    grid_spec = pltpu.PrefetchScalarGridSpec(
        num_scalar_prefetch=1,
        grid=(B // BB, L),                                # layer axis innermost (VMEM carry)
        in_specs=[
            pl.BlockSpec((BB, T, C), lambda b, l, lens: (b, 0, 0)),
            pl.BlockSpec((1, C, 3 * C), lambda b, l, lens: (l, 0, 0)),
            pl.BlockSpec((1, 1, 3 * C), lambda b, l, lens: (l, 0, 0)),
            pl.BlockSpec((1, C, C), lambda b, l, lens: (l, 0, 0)),
            pl.BlockSpec((1, 1, C), lambda b, l, lens: (l, 0, 0)),
            pl.BlockSpec((1, 2 * H, NB, D), lambda b, l, lens: (l, 0, 0, 0)),
            pl.BlockSpec((1, 2, 2, C), lambda b, l, lens: (l, 0, 0, 0)),
            pl.BlockSpec((1, K, C, F), lambda b, l, lens: (l, 0, 0, 0)),
            pl.BlockSpec((1, 1, F), lambda b, l, lens: (l, 0, 0)),
            pl.BlockSpec((1, K, F, C), lambda b, l, lens: (l, 0, 0, 0)),
            pl.BlockSpec((1, 1, C), lambda b, l, lens: (l, 0, 0)),
            pl.BlockSpec((C, P), lambda b, l, lens: (0, 0)),
            pl.BlockSpec((1, P), lambda b, l, lens: (0, 0)),
        ],
        out_specs=[
            pl.BlockSpec((BB, T, C), lambda b, l, lens: (b, 0, 0)),
            pl.BlockSpec((BB, T, P), lambda b, l, lens: (b, 0, 0)),
        ],
        scratch_shapes=[pltpu.VMEM((BB, T, C), jnp.float32)],
    )
    x_out, stats = pl.pallas_call(
        kernel,
        out_shape=(jax.ShapeDtypeStruct((B, T, C), jnp.float32),
                   jax.ShapeDtypeStruct((B, T, P), jnp.float32)),
        grid_spec=grid_spec,
        compiler_params=pltpu.CompilerParams(
            dimension_semantics=("parallel", "arbitrary"),
            # Explicit budget; fits the v7x 64 MiB VMEM (block sizes re-derived for it).
            vmem_limit_bytes=64 * 1024 * 1024),
    )(x_lengths.astype(jnp.int32), x, params['w_qkv'], params['b_qkv'],
      params['w_out'], params['b_out'], rel_band, params['ln'],
      params['w1'], params['b1'], params['w2'], params['b2'], wp, bp)

    m, logs = stats[..., :O], stats[..., O:2 * O]
    x_mask = (jnp.arange(T)[None, :] < x_lengths[:, None]).astype(x_out.dtype)

    to_nct = lambda a: jnp.transpose(a, (0, 2, 1))        # single final transpose to (B, C, T)
    return to_nct(x_out), to_nct(m), to_nct(logs), x_mask[:, None, :]


# ----------------------------------------------------------------------------
# Deterministic synthetic parameters (stacked per-layer, pre-fused layouts, bf16 weights)
# ----------------------------------------------------------------------------

def init_params(key, cfg):
    C = cfg['hidden_channels']; F = cfg['hidden_channels_ffn']
    H = cfg['num_heads']; D = C // H
    K = cfg['kernel_size']; W = cfg['rel_attn_window_size']
    O = cfg['out_channels']; L = cfg['num_layers']
    bf16 = jnp.bfloat16

    ks = jax.random.split(key, 7)
    params = {
        'emb': jax.random.normal(ks[0], (cfg['n_vocab'], C), jnp.float32) * (C ** -0.5),
        # fused q/k/v projection weights: (Cin, 3*Cout), bf16 (halves weight DMA)
        'w_qkv': (jax.random.normal(ks[1], (L, C, 3 * C), jnp.float32) * (C ** -0.5)
                  ).astype(bf16),
        'b_qkv': jnp.zeros((L, 1, 3 * C), jnp.float32),
        'w_out': (jax.random.normal(ks[2], (L, C, C), jnp.float32) * (C ** -0.5)
                  ).astype(bf16),
        'b_out': jnp.zeros((L, 1, C), jnp.float32),
        'emb_rel': jax.random.normal(ks[3], (L, 2, H, 2 * W + 1, D), jnp.float32)
                   * (D ** -0.5),
        # FFN conv weights stored tap-major: (L, K, Cin, Cout), bf16
        'w1': (jax.random.normal(ks[4], (L, K, C, F), jnp.float32) * ((K * C) ** -0.5)
               ).astype(bf16),
        'b1': jnp.zeros((L, 1, F), jnp.float32),
        'w2': (jax.random.normal(ks[5], (L, K, F, C), jnp.float32) * ((K * F) ** -0.5)
               ).astype(bf16),
        'b2': jnp.zeros((L, 1, C), jnp.float32),
        'wp': jax.random.normal(ks[6], (C, 2 * O), jnp.float32) * (C ** -0.5),
        'bp': jnp.zeros((1, 2 * O), jnp.float32),
    }
    ln = jnp.zeros((L, 2, 2, C), jnp.float32)
    params['ln'] = ln.at[:, :, 0, :].set(1.0)             # gammas = 1, betas = 0
    return params


# ----------------------------------------------------------------------------

if __name__ == "__main__":
    cfg = dict(n_vocab=40, out_channels=32, hidden_channels=32,
               hidden_channels_ffn=64, num_heads=2, num_layers=2,
               kernel_size=3, rel_attn_window_size=4, dropout_p=0.0)

    root = jax.random.PRNGKey(0)
    k_param, k_tok = jax.random.split(root)
    params = init_params(k_param, cfg)

    B, T = 2, 16
    tokens = jax.random.randint(k_tok, (B, T), 0, cfg['n_vocab'], dtype=jnp.int32)
    x_lengths = jnp.array([16, 12], dtype=jnp.int32)

    fwd = jax.jit(lambda p, t, l: phoneme_encoder_forward(p, t, l, cfg=cfg))
    x, m, logs, x_mask = fwd(params, tokens, x_lengths)
    jax.block_until_ready((x, m, logs, x_mask))

    assert x.shape == (B, cfg['hidden_channels'], T)
    assert m.shape == (B, cfg['out_channels'], T)
    assert logs.shape == (B, cfg['out_channels'], T)
    assert x_mask.shape == (B, 1, T)
    print("KERNEL_OK")
</pallas_src>

<mosaic_0001>
module attributes {stable_mosaic.version = 11 : i64} {
  func.func @_encoder_kernel(%arg0: i32, %arg1: i32, %arg2: memref<2xi32, #tpu.memory_space<smem>>, %arg3: memref<1x16x32xf32, #tpu.memory_space<vmem>>, %arg4: memref<1x32x96xbf16, #tpu.memory_space<vmem>>, %arg5: memref<1x1x96xf32, #tpu.memory_space<vmem>>, %arg6: memref<1x32x32xbf16, #tpu.memory_space<vmem>>, %arg7: memref<1x1x32xf32, #tpu.memory_space<vmem>>, %arg8: memref<1x4x11x16xbf16, #tpu.memory_space<vmem>>, %arg9: memref<1x2x2x32xf32, #tpu.memory_space<vmem>>, %arg10: memref<1x3x32x64xbf16, #tpu.memory_space<vmem>>, %arg11: memref<1x1x64xf32, #tpu.memory_space<vmem>>, %arg12: memref<1x3x64x32xbf16, #tpu.memory_space<vmem>>, %arg13: memref<1x1x32xf32, #tpu.memory_space<vmem>>, %arg14: memref<32x128xbf16, #tpu.memory_space<vmem>>, %arg15: memref<1x128xf32, #tpu.memory_space<vmem>>, %arg16: memref<1x16x32xf32, #tpu.memory_space<vmem>>, %arg17: memref<1x16x128xf32, #tpu.memory_space<vmem>>, %arg18: memref<1x16x32xf32, #tpu.memory_space<vmem>>) attributes {dimension_semantics = [#tpu.dimension_semantics<parallel>, #tpu.dimension_semantics<arbitrary>], iteration_bounds = array<i64: 2, 2>, scalar_prefetch = 1 : i64, scratch_operands = 1 : i64, tpu.core_type = #tpu.core_type<tc>, window_params = [{transform_indices = @transform_0, window_bounds = array<i64: 1, 16, 32>}, {transform_indices = @transform_1, window_bounds = array<i64: 1, 32, 96>}, {transform_indices = @transform_2, window_bounds = array<i64: 1, 1, 96>}, {transform_indices = @transform_3, window_bounds = array<i64: 1, 32, 32>}, {transform_indices = @transform_4, window_bounds = array<i64: 1, 1, 32>}, {transform_indices = @transform_5, window_bounds = array<i64: 1, 4, 11, 16>}, {transform_indices = @transform_6, window_bounds = array<i64: 1, 2, 2, 32>}, {transform_indices = @transform_7, window_bounds = array<i64: 1, 3, 32, 64>}, {transform_indices = @transform_8, window_bounds = array<i64: 1, 1, 64>}, {transform_indices = @transform_9, window_bounds = array<i64: 1, 3, 64, 32>}, {transform_indices = @transform_10, window_bounds = array<i64: 1, 1, 32>}, {pipeline_mode = #tpu.pipeline_mode<synchronous>, transform_indices = @transform_11, window_bounds = array<i64: 32, 128>}, {pipeline_mode = #tpu.pipeline_mode<synchronous>, transform_indices = @transform_12, window_bounds = array<i64: 1, 128>}, {transform_indices = @transform_13, window_bounds = array<i64: 1, 16, 32>}, {transform_indices = @transform_14, window_bounds = array<i64: 1, 16, 128>}]} {
    %0 = tpu.iota {dimensions = array<i32: 0>} : vector<16x16xi32>
    %1 = tpu.iota {dimensions = array<i32: 1>} : vector<16x16xi32>
    %2 = arith.subi %1, %0 : vector<16x16xi32>
    %3 = tpu.iota {dimensions = array<i32: 0>} : vector<16x1xi32>
    %c0_i32 = arith.constant 0 : i32
    %4 = arith.cmpi eq, %arg1, %c0_i32 : i32
    %5 = arith.extui %4 : i1 to i32
    %c0_i32_0 = arith.constant 0 : i32
    %6 = arith.cmpi ne, %5, %c0_i32_0 : i32
    scf.if %6 {
      %c0_209 = arith.constant 0 : index
      %c0_210 = arith.constant 0 : index
      %c0_211 = arith.constant 0 : index
      %635 = vector.load %arg3[%c0_209, %c0_210, %c0_211] : memref<1x16x32xf32, #tpu.memory_space<vmem>>, vector<1x16x32xf32>
      %c0_212 = arith.constant 0 : index
      %c0_213 = arith.constant 0 : index
      %c0_214 = arith.constant 0 : index
      %636 = vector.load %arg18[%c0_212, %c0_213, %c0_214] : memref<1x16x32xf32, #tpu.memory_space<vmem>>, vector<1x16x32xf32>
      tpu.vector_store %arg18[%c0_212, %c0_213, %c0_214], %635 {strides = array<i32>} : memref<1x16x32xf32, #tpu.memory_space<vmem>>, vector<1x16x32xf32>,
    } else {
    }
    %c0 = arith.constant 0 : index
    %c0_1 = arith.constant 0 : index
    %c0_2 = arith.constant 0 : index
    %c0_3 = arith.constant 0 : index
    %7 = vector.load %arg9[%c0, %c0_1, %c0_2, %c0_3] : memref<1x2x2x32xf32, #tpu.memory_space<vmem>>, vector<1x2x2x32xf32>
    %8 = vector.shape_cast %7 : vector<1x2x2x32xf32> to vector<2x2x32xf32>
    %c1_i32 = arith.constant 1 : i32
    %9 = arith.muli %arg0, %c1_i32 : i32
    %c0_i32_4 = arith.constant 0 : i32
    %10 = arith.addi %9, %c0_i32_4 : i32
    %11 = arith.index_cast %10 : i32 to index
    %12 = memref.load %arg2[%11] : memref<2xi32, #tpu.memory_space<smem>>
    %13 = vector.broadcast %12 : i32 to vector<16x1xi32>
    %14 = arith.cmpi slt, %3, %13 : vector<16x1xi32>
    %15 = arith.extui %14 : vector<16x1xi1> to vector<16x1xi32>
    %16 = arith.sitofp %15 : vector<16x1xi32> to vector<16x1xf32>
    %17 = vector.broadcast %12 : i32 to vector<16x16xi32>
    %18 = arith.cmpi sge, %0, %17 : vector<16x16xi32>
    %19 = vector.broadcast %12 : i32 to vector<16x16xi32>
    %20 = arith.cmpi sge, %1, %19 : vector<16x16xi32>
    %21 = arith.ori %18, %20 : vector<16x16xi1>
    %c0_5 = arith.constant 0 : index
    %c0_6 = arith.constant 0 : index
    %c0_7 = arith.constant 0 : index
    %22 = vector.load %arg18[%c0_5, %c0_6, %c0_7] : memref<1x16x32xf32, #tpu.memory_space<vmem>>, vector<1x16x32xf32>
    %23 = vector.shape_cast %22 : vector<1x16x32xf32> to vector<16x32xf32>
    %24 = vector.broadcast %16 : vector<16x1xf32> to vector<16x32xf32>
    %25 = arith.mulf %23, %24 : vector<16x32xf32>
    %26 = arith.truncf %25 : vector<16x32xf32> to vector<16x32xbf16>
    %c0_8 = arith.constant 0 : index
    %c0_9 = arith.constant 0 : index
    %c0_10 = arith.constant 0 : index
    %27 = vector.load %arg4[%c0_8, %c0_9, %c0_10] : memref<1x32x96xbf16, #tpu.memory_space<vmem>>, vector<1x32x96xbf16>
    %28 = vector.shape_cast %27 : vector<1x32x96xbf16> to vector<32x96xbf16>
    %cst = arith.constant dense<0.000000e+00> : vector<16x96xf32>
    %29 = tpu.matmul %26, %28, %cst {dimension_numbers = #tpu.dot_dimension_numbers<[1], [0], [0], [1], [0, 0, 1, 1], [], []>} : vector<16x32xbf16>, vector<32x96xbf16>, vector<16x96xf32> -> vector<16x96xf32>
    %c0_11 = arith.constant 0 : index
    %c0_12 = arith.constant 0 : index
    %c0_13 = arith.constant 0 : index
    %30 = vector.load %arg5[%c0_11, %c0_12, %c0_13] : memref<1x1x96xf32, #tpu.memory_space<vmem>>, vector<1x1x96xf32>
    %31 = vector.shape_cast %30 : vector<1x1x96xf32> to vector<1x96xf32>
    %32 = vector.broadcast %31 : vector<1x96xf32> to vector<16x96xf32>
    %33 = arith.addf %29, %32 : vector<16x96xf32>
    %cst_14 = arith.constant 0.000000e+00 : f32
    %34 = vector.broadcast %cst_14 : f32 to vector<16x32xf32>
    %35 = vector.extract_strided_slice %33 {offsets = [0, 0], sizes = [16, 16], strides = [1, 1]} : vector<16x96xf32> to vector<16x16xf32>
    %cst_15 = arith.constant 2.500000e-01 : f32
    %36 = vector.broadcast %cst_15 : f32 to vector<16x16xf32>
    %37 = arith.mulf %35, %36 : vector<16x16xf32>
    %38 = arith.truncf %37 : vector<16x16xf32> to vector<16x16xbf16>
    %39 = vector.extract_strided_slice %33 {offsets = [0, 32], sizes = [16, 16], strides = [1, 1]} : vector<16x96xf32> to vector<16x16xf32>
    %40 = arith.truncf %39 : vector<16x16xf32> to vector<16x16xbf16>
    %41 = vector.extract_strided_slice %33 {offsets = [0, 64], sizes = [16, 16], strides = [1, 1]} : vector<16x96xf32> to vector<16x16xf32>
    %42 = arith.truncf %41 : vector<16x16xf32> to vector<16x16xbf16>
    %cst_16 = arith.constant dense<0.000000e+00> : vector<16x16xf32>
    %43 = tpu.matmul %38, %40, %cst_16 {dimension_numbers = #tpu.dot_dimension_numbers<[1], [1], [0], [0], [0, 0, 1, 0], [], []>} : vector<16x16xbf16>, vector<16x16xbf16>, vector<16x16xf32> -> vector<16x16xf32>
    %c0_17 = arith.constant 0 : index
    %c0_18 = arith.constant 0 : index
    %c0_19 = arith.constant 0 : index
    %c0_20 = arith.constant 0 : index
    %44 = vector.load %arg8[%c0_17, %c0_18, %c0_19, %c0_20] : memref<1x4x11x16xbf16, #tpu.memory_space<vmem>>, vector<1x1x11x16xbf16>
    %45 = vector.shape_cast %44 : vector<1x1x11x16xbf16> to vector<11x16xbf16>
    %cst_21 = arith.constant dense<0.000000e+00> : vector<16x11xf32>
    %46 = tpu.matmul %38, %45, %cst_21 {dimension_numbers = #tpu.dot_dimension_numbers<[1], [1], [0], [0], [0, 0, 1, 0], [], []>} : vector<16x16xbf16>, vector<11x16xbf16>, vector<16x11xf32> -> vector<16x11xf32>
    %c-5_i32 = arith.constant -5 : i32
    %47 = vector.broadcast %c-5_i32 : i32 to vector<16x16xi32>
    %48 = arith.cmpi eq, %2, %47 : vector<16x16xi32>
    %49 = vector.extract_strided_slice %46 {offsets = [0, 0], sizes = [16, 1], strides = [1, 1]} : vector<16x11xf32> to vector<16x1xf32>
    %cst_22 = arith.constant 0.000000e+00 : f32
    %50 = vector.shape_cast %49 : vector<16x1xf32> to vector<16x1xf32>
    %51 = vector.broadcast %50 : vector<16x1xf32> to vector<16x16xf32>
    %52 = vector.broadcast %cst_22 : f32 to vector<16x16xf32>
    %53 = arith.select %48, %51, %52 : vector<16x16xi1>, vector<16x16xf32>
    %54 = arith.addf %43, %53 : vector<16x16xf32>
    %c-4_i32 = arith.constant -4 : i32
    %55 = vector.broadcast %c-4_i32 : i32 to vector<16x16xi32>
    %56 = arith.cmpi eq, %2, %55 : vector<16x16xi32>
    %57 = vector.extract_strided_slice %46 {offsets = [0, 1], sizes = [16, 1], strides = [1, 1]} : vector<16x11xf32> to vector<16x1xf32>
    %cst_23 = arith.constant 0.000000e+00 : f32
    %58 = vector.shape_cast %57 : vector<16x1xf32> to vector<16x1xf32>
    %59 = vector.broadcast %58 : vector<16x1xf32> to vector<16x16xf32>
    %60 = vector.broadcast %cst_23 : f32 to vector<16x16xf32>
    %61 = arith.select %56, %59, %60 : vector<16x16xi1>, vector<16x16xf32>
    %62 = arith.addf %54, %61 : vector<16x16xf32>
    %c-3_i32 = arith.constant -3 : i32
    %63 = vector.broadcast %c-3_i32 : i32 to vector<16x16xi32>
    %64 = arith.cmpi eq, %2, %63 : vector<16x16xi32>
    %65 = vector.extract_strided_slice %46 {offsets = [0, 2], sizes = [16, 1], strides = [1, 1]} : vector<16x11xf32> to vector<16x1xf32>
    %cst_24 = arith.constant 0.000000e+00 : f32
    %66 = vector.shape_cast %65 : vector<16x1xf32> to vector<16x1xf32>
    %67 = vector.broadcast %66 : vector<16x1xf32> to vector<16x16xf32>
    %68 = vector.broadcast %cst_24 : f32 to vector<16x16xf32>
    %69 = arith.select %64, %67, %68 : vector<16x16xi1>, vector<16x16xf32>
    %70 = arith.addf %62, %69 : vector<16x16xf32>
    %c-2_i32 = arith.constant -2 : i32
    %71 = vector.broadcast %c-2_i32 : i32 to vector<16x16xi32>
    %72 = arith.cmpi eq, %2, %71 : vector<16x16xi32>
    %73 = vector.extract_strided_slice %46 {offsets = [0, 3], sizes = [16, 1], strides = [1, 1]} : vector<16x11xf32> to vector<16x1xf32>
    %cst_25 = arith.constant 0.000000e+00 : f32
    %74 = vector.shape_cast %73 : vector<16x1xf32> to vector<16x1xf32>
    %75 = vector.broadcast %74 : vector<16x1xf32> to vector<16x16xf32>
    %76 = vector.broadcast %cst_25 : f32 to vector<16x16xf32>
    %77 = arith.select %72, %75, %76 : vector<16x16xi1>, vector<16x16xf32>
    %78 = arith.addf %70, %77 : vector<16x16xf32>
    %c-1_i32 = arith.constant -1 : i32
    %79 = vector.broadcast %c-1_i32 : i32 to vector<16x16xi32>
    %80 = arith.cmpi eq, %2, %79 : vector<16x16xi32>
    %81 = vector.extract_strided_slice %46 {offsets = [0, 4], sizes = [16, 1], strides = [1, 1]} : vector<16x11xf32> to vector<16x1xf32>
    %cst_26 = arith.constant 0.000000e+00 : f32
    %82 = vector.shape_cast %81 : vector<16x1xf32> to vector<16x1xf32>
    %83 = vector.broadcast %82 : vector<16x1xf32> to vector<16x16xf32>
    %84 = vector.broadcast %cst_26 : f32 to vector<16x16xf32>
    %85 = arith.select %80, %83, %84 : vector<16x16xi1>, vector<16x16xf32>
    %86 = arith.addf %78, %85 : vector<16x16xf32>
    %c0_i32_27 = arith.constant 0 : i32
    %87 = vector.broadcast %c0_i32_27 : i32 to vector<16x16xi32>
    %88 = arith.cmpi eq, %2, %87 : vector<16x16xi32>
    %89 = vector.extract_strided_slice %46 {offsets = [0, 5], sizes = [16, 1], strides = [1, 1]} : vector<16x11xf32> to vector<16x1xf32>
    %cst_28 = arith.constant 0.000000e+00 : f32
    %90 = vector.shape_cast %89 : vector<16x1xf32> to vector<16x1xf32>
    %91 = vector.broadcast %90 : vector<16x1xf32> to vector<16x16xf32>
    %92 = vector.broadcast %cst_28 : f32 to vector<16x16xf32>
    %93 = arith.select %88, %91, %92 : vector<16x16xi1>, vector<16x16xf32>
    %94 = arith.addf %86, %93 : vector<16x16xf32>
    %c1_i32_29 = arith.constant 1 : i32
    %95 = vector.broadcast %c1_i32_29 : i32 to vector<16x16xi32>
    %96 = arith.cmpi eq, %2, %95 : vector<16x16xi32>
    %97 = vector.extract_strided_slice %46 {offsets = [0, 6], sizes = [16, 1], strides = [1, 1]} : vector<16x11xf32> to vector<16x1xf32>
    %cst_30 = arith.constant 0.000000e+00 : f32
    %98 = vector.shape_cast %97 : vector<16x1xf32> to vector<16x1xf32>
    %99 = vector.broadcast %98 : vector<16x1xf32> to vector<16x16xf32>
    %100 = vector.broadcast %cst_30 : f32 to vector<16x16xf32>
    %101 = arith.select %96, %99, %100 : vector<16x16xi1>, vector<16x16xf32>
    %102 = arith.addf %94, %101 : vector<16x16xf32>
    %c2_i32 = arith.constant 2 : i32
    %103 = vector.broadcast %c2_i32 : i32 to vector<16x16xi32>
    %104 = arith.cmpi eq, %2, %103 : vector<16x16xi32>
    %105 = vector.extract_strided_slice %46 {offsets = [0, 7], sizes = [16, 1], strides = [1, 1]} : vector<16x11xf32> to vector<16x1xf32>
    %cst_31 = arith.constant 0.000000e+00 : f32
    %106 = vector.shape_cast %105 : vector<16x1xf32> to vector<16x1xf32>
    %107 = vector.broadcast %106 : vector<16x1xf32> to vector<16x16xf32>
    %108 = vector.broadcast %cst_31 : f32 to vector<16x16xf32>
    %109 = arith.select %104, %107, %108 : vector<16x16xi1>, vector<16x16xf32>
    %110 = arith.addf %102, %109 : vector<16x16xf32>
    %c3_i32 = arith.constant 3 : i32
    %111 = vector.broadcast %c3_i32 : i32 to vector<16x16xi32>
    %112 = arith.cmpi eq, %2, %111 : vector<16x16xi32>
    %113 = vector.extract_strided_slice %46 {offsets = [0, 8], sizes = [16, 1], strides = [1, 1]} : vector<16x11xf32> to vector<16x1xf32>
    %cst_32 = arith.constant 0.000000e+00 : f32
    %114 = vector.shape_cast %113 : vector<16x1xf32> to vector<16x1xf32>
    %115 = vector.broadcast %114 : vector<16x1xf32> to vector<16x16xf32>
    %116 = vector.broadcast %cst_32 : f32 to vector<16x16xf32>
    %117 = arith.select %112, %115, %116 : vector<16x16xi1>, vector<16x16xf32>
    %118 = arith.addf %110, %117 : vector<16x16xf32>
    %c4_i32 = arith.constant 4 : i32
    %119 = vector.broadcast %c4_i32 : i32 to vector<16x16xi32>
    %120 = arith.cmpi eq, %2, %119 : vector<16x16xi32>
    %121 = vector.extract_strided_slice %46 {offsets = [0, 9], sizes = [16, 1], strides = [1, 1]} : vector<16x11xf32> to vector<16x1xf32>
    %cst_33 = arith.constant 0.000000e+00 : f32
    %122 = vector.shape_cast %121 : vector<16x1xf32> to vector<16x1xf32>
    %123 = vector.broadcast %122 : vector<16x1xf32> to vector<16x16xf32>
    %124 = vector.broadcast %cst_33 : f32 to vector<16x16xf32>
    %125 = arith.select %120, %123, %124 : vector<16x16xi1>, vector<16x16xf32>
    %126 = arith.addf %118, %125 : vector<16x16xf32>
    %c5_i32 = arith.constant 5 : i32
    %127 = vector.broadcast %c5_i32 : i32 to vector<16x16xi32>
    %128 = arith.cmpi eq, %2, %127 : vector<16x16xi32>
    %129 = vector.extract_strided_slice %46 {offsets = [0, 10], sizes = [16, 1], strides = [1, 1]} : vector<16x11xf32> to vector<16x1xf32>
    %cst_34 = arith.constant 0.000000e+00 : f32
    %130 = vector.shape_cast %129 : vector<16x1xf32> to vector<16x1xf32>
    %131 = vector.broadcast %130 : vector<16x1xf32> to vector<16x16xf32>
    %132 = vector.broadcast %cst_34 : f32 to vector<16x16xf32>
    %133 = arith.select %128, %131, %132 : vector<16x16xi1>, vector<16x16xf32>
    %134 = arith.addf %126, %133 : vector<16x16xf32>
    %cst_35 = arith.constant -1.000000e+04 : f32
    %135 = vector.broadcast %cst_35 : f32 to vector<16x16xf32>
    %136 = arith.select %21, %135, %134 : vector<16x16xi1>, vector<16x16xf32>
    %cst_36 = arith.constant dense<0xFF800000> : vector<16xf32>
    %137 = vector.multi_reduction <maximumf>, %136, %cst_36 [1] : vector<16x16xf32> to vector<16xf32>
    %138 = vector.shape_cast %137 : vector<16xf32> to vector<16x1xf32>
    %139 = vector.broadcast %138 : vector<16x1xf32> to vector<16x16xf32>
    %140 = arith.subf %136, %139 : vector<16x16xf32>
    %141 = math.exp %140 : vector<16x16xf32>
    %cst_37 = arith.constant dense<0.000000e+00> : vector<16xf32>
    %142 = vector.multi_reduction <add>, %141, %cst_37 [1] : vector<16x16xf32> to vector<16xf32>
    %143 = vector.shape_cast %142 : vector<16xf32> to vector<16x1xf32>
    %144 = vector.broadcast %143 : vector<16x1xf32> to vector<16x16xf32>
    %145 = arith.divf %141, %144 : vector<16x16xf32>
    %146 = arith.truncf %145 : vector<16x16xf32> to vector<16x16xbf16>
    %cst_38 = arith.constant dense<0.000000e+00> : vector<16x16xf32>
    %147 = tpu.matmul %146, %42, %cst_38 {dimension_numbers = #tpu.dot_dimension_numbers<[1], [0], [0], [1], [0, 0, 1, 1], [], []>} : vector<16x16xbf16>, vector<16x16xbf16>, vector<16x16xf32> -> vector<16x16xf32>
    %c0_39 = arith.constant 0 : index
    %c2 = arith.constant 2 : index
    %c0_40 = arith.constant 0 : index
    %c0_41 = arith.constant 0 : index
    %148 = vector.load %arg8[%c0_39, %c2, %c0_40, %c0_41] : memref<1x4x11x16xbf16, #tpu.memory_space<vmem>>, vector<1x1x11x16xbf16>
    %149 = vector.shape_cast %148 : vector<1x1x11x16xbf16> to vector<11x16xbf16>
    %150 = arith.extf %149 : vector<11x16xbf16> to vector<11x16xf32>
    %c-5_i32_42 = arith.constant -5 : i32
    %151 = vector.broadcast %c-5_i32_42 : i32 to vector<16x16xi32>
    %152 = arith.cmpi eq, %2, %151 : vector<16x16xi32>
    %cst_43 = arith.constant 0.000000e+00 : f32
    %153 = vector.broadcast %cst_43 : f32 to vector<16x16xf32>
    %154 = arith.select %152, %145, %153 : vector<16x16xi1>, vector<16x16xf32>
    %cst_44 = arith.constant dense<0.000000e+00> : vector<16xf32>
    %155 = vector.multi_reduction <add>, %154, %cst_44 [1] : vector<16x16xf32> to vector<16xf32>
    %156 = vector.shape_cast %155 : vector<16xf32> to vector<16x1xf32>
    %157 = vector.extract_strided_slice %150 {offsets = [0, 0], sizes = [1, 16], strides = [1, 1]} : vector<11x16xf32> to vector<1x16xf32>
    %158 = vector.broadcast %156 : vector<16x1xf32> to vector<16x16xf32>
    %159 = vector.broadcast %157 : vector<1x16xf32> to vector<16x16xf32>
    %160 = arith.mulf %158, %159 : vector<16x16xf32>
    %161 = arith.addf %147, %160 : vector<16x16xf32>
    %c-4_i32_45 = arith.constant -4 : i32
    %162 = vector.broadcast %c-4_i32_45 : i32 to vector<16x16xi32>
    %163 = arith.cmpi eq, %2, %162 : vector<16x16xi32>
    %cst_46 = arith.constant 0.000000e+00 : f32
    %164 = vector.broadcast %cst_46 : f32 to vector<16x16xf32>
    %165 = arith.select %163, %145, %164 : vector<16x16xi1>, vector<16x16xf32>
    %cst_47 = arith.constant dense<0.000000e+00> : vector<16xf32>
    %166 = vector.multi_reduction <add>, %165, %cst_47 [1] : vector<16x16xf32> to vector<16xf32>
    %167 = vector.shape_cast %166 : vector<16xf32> to vector<16x1xf32>
    %168 = vector.extract_strided_slice %150 {offsets = [1, 0], sizes = [1, 16], strides = [1, 1]} : vector<11x16xf32> to vector<1x16xf32>
    %169 = vector.broadcast %167 : vector<16x1xf32> to vector<16x16xf32>
    %170 = vector.broadcast %168 : vector<1x16xf32> to vector<16x16xf32>
    %171 = arith.mulf %169, %170 : vector<16x16xf32>
    %172 = arith.addf %161, %171 : vector<16x16xf32>
    %c-3_i32_48 = arith.constant -3 : i32
    %173 = vector.broadcast %c-3_i32_48 : i32 to vector<16x16xi32>
    %174 = arith.cmpi eq, %2, %173 : vector<16x16xi32>
    %cst_49 = arith.constant 0.000000e+00 : f32
    %175 = vector.broadcast %cst_49 : f32 to vector<16x16xf32>
    %176 = arith.select %174, %145, %175 : vector<16x16xi1>, vector<16x16xf32>
    %cst_50 = arith.constant dense<0.000000e+00> : vector<16xf32>
    %177 = vector.multi_reduction <add>, %176, %cst_50 [1] : vector<16x16xf32> to vector<16xf32>
    %178 = vector.shape_cast %177 : vector<16xf32> to vector<16x1xf32>
    %179 = vector.extract_strided_slice %150 {offsets = [2, 0], sizes = [1, 16], strides = [1, 1]} : vector<11x16xf32> to vector<1x16xf32>
    %180 = vector.broadcast %178 : vector<16x1xf32> to vector<16x16xf32>
    %181 = vector.broadcast %179 : vector<1x16xf32> to vector<16x16xf32>
    %182 = arith.mulf %180, %181 : vector<16x16xf32>
    %183 = arith.addf %172, %182 : vector<16x16xf32>
    %c-2_i32_51 = arith.constant -2 : i32
    %184 = vector.broadcast %c-2_i32_51 : i32 to vector<16x16xi32>
    %185 = arith.cmpi eq, %2, %184 : vector<16x16xi32>
    %cst_52 = arith.constant 0.000000e+00 : f32
    %186 = vector.broadcast %cst_52 : f32 to vector<16x16xf32>
    %187 = arith.select %185, %145, %186 : vector<16x16xi1>, vector<16x16xf32>
    %cst_53 = arith.constant dense<0.000000e+00> : vector<16xf32>
    %188 = vector.multi_reduction <add>, %187, %cst_53 [1] : vector<16x16xf32> to vector<16xf32>
    %189 = vector.shape_cast %188 : vector<16xf32> to vector<16x1xf32>
    %190 = vector.extract_strided_slice %150 {offsets = [3, 0], sizes = [1, 16], strides = [1, 1]} : vector<11x16xf32> to vector<1x16xf32>
    %191 = vector.broadcast %189 : vector<16x1xf32> to vector<16x16xf32>
    %192 = vector.broadcast %190 : vector<1x16xf32> to vector<16x16xf32>
    %193 = arith.mulf %191, %192 : vector<16x16xf32>
    %194 = arith.addf %183, %193 : vector<16x16xf32>
    %c-1_i32_54 = arith.constant -1 : i32
    %195 = vector.broadcast %c-1_i32_54 : i32 to vector<16x16xi32>
    %196 = arith.cmpi eq, %2, %195 : vector<16x16xi32>
    %cst_55 = arith.constant 0.000000e+00 : f32
    %197 = vector.broadcast %cst_55 : f32 to vector<16x16xf32>
    %198 = arith.select %196, %145, %197 : vector<16x16xi1>, vector<16x16xf32>
    %cst_56 = arith.constant dense<0.000000e+00> : vector<16xf32>
    %199 = vector.multi_reduction <add>, %198, %cst_56 [1] : vector<16x16xf32> to vector<16xf32>
    %200 = vector.shape_cast %199 : vector<16xf32> to vector<16x1xf32>
    %201 = vector.extract_strided_slice %150 {offsets = [4, 0], sizes = [1, 16], strides = [1, 1]} : vector<11x16xf32> to vector<1x16xf32>
    %202 = vector.broadcast %200 : vector<16x1xf32> to vector<16x16xf32>
    %203 = vector.broadcast %201 : vector<1x16xf32> to vector<16x16xf32>
    %204 = arith.mulf %202, %203 : vector<16x16xf32>
    %205 = arith.addf %194, %204 : vector<16x16xf32>
    %c0_i32_57 = arith.constant 0 : i32
    %206 = vector.broadcast %c0_i32_57 : i32 to vector<16x16xi32>
    %207 = arith.cmpi eq, %2, %206 : vector<16x16xi32>
    %cst_58 = arith.constant 0.000000e+00 : f32
    %208 = vector.broadcast %cst_58 : f32 to vector<16x16xf32>
    %209 = arith.select %207, %145, %208 : vector<16x16xi1>, vector<16x16xf32>
    %cst_59 = arith.constant dense<0.000000e+00> : vector<16xf32>
    %210 = vector.multi_reduction <add>, %209, %cst_59 [1] : vector<16x16xf32> to vector<16xf32>
    %211 = vector.shape_cast %210 : vector<16xf32> to vector<16x1xf32>
    %212 = vector.extract_strided_slice %150 {offsets = [5, 0], sizes = [1, 16], strides = [1, 1]} : vector<11x16xf32> to vector<1x16xf32>
    %213 = vector.broadcast %211 : vector<16x1xf32> to vector<16x16xf32>
    %214 = vector.broadcast %212 : vector<1x16xf32> to vector<16x16xf32>
    %215 = arith.mulf %213, %214 : vector<16x16xf32>
    %216 = arith.addf %205, %215 : vector<16x16xf32>
    %c1_i32_60 = arith.constant 1 : i32
    %217 = vector.broadcast %c1_i32_60 : i32 to vector<16x16xi32>
    %218 = arith.cmpi eq, %2, %217 : vector<16x16xi32>
    %cst_61 = arith.constant 0.000000e+00 : f32
    %219 = vector.broadcast %cst_61 : f32 to vector<16x16xf32>
    %220 = arith.select %218, %145, %219 : vector<16x16xi1>, vector<16x16xf32>
    %cst_62 = arith.constant dense<0.000000e+00> : vector<16xf32>
    %221 = vector.multi_reduction <add>, %220, %cst_62 [1] : vector<16x16xf32> to vector<16xf32>
    %222 = vector.shape_cast %221 : vector<16xf32> to vector<16x1xf32>
    %223 = vector.extract_strided_slice %150 {offsets = [6, 0], sizes = [1, 16], strides = [1, 1]} : vector<11x16xf32> to vector<1x16xf32>
    %224 = vector.broadcast %222 : vector<16x1xf32> to vector<16x16xf32>
    %225 = vector.broadcast %223 : vector<1x16xf32> to vector<16x16xf32>
    %226 = arith.mulf %224, %225 : vector<16x16xf32>
    %227 = arith.addf %216, %226 : vector<16x16xf32>
    %c2_i32_63 = arith.constant 2 : i32
    %228 = vector.broadcast %c2_i32_63 : i32 to vector<16x16xi32>
    %229 = arith.cmpi eq, %2, %228 : vector<16x16xi32>
    %cst_64 = arith.constant 0.000000e+00 : f32
    %230 = vector.broadcast %cst_64 : f32 to vector<16x16xf32>
    %231 = arith.select %229, %145, %230 : vector<16x16xi1>, vector<16x16xf32>
    %cst_65 = arith.constant dense<0.000000e+00> : vector<16xf32>
    %232 = vector.multi_reduction <add>, %231, %cst_65 [1] : vector<16x16xf32> to vector<16xf32>
    %233 = vector.shape_cast %232 : vector<16xf32> to vector<16x1xf32>
    %234 = vector.extract_strided_slice %150 {offsets = [7, 0], sizes = [1, 16], strides = [1, 1]} : vector<11x16xf32> to vector<1x16xf32>
    %235 = vector.broadcast %233 : vector<16x1xf32> to vector<16x16xf32>
    %236 = vector.broadcast %234 : vector<1x16xf32> to vector<16x16xf32>
    %237 = arith.mulf %235, %236 : vector<16x16xf32>
    %238 = arith.addf %227, %237 : vector<16x16xf32>
    %c3_i32_66 = arith.constant 3 : i32
    %239 = vector.broadcast %c3_i32_66 : i32 to vector<16x16xi32>
    %240 = arith.cmpi eq, %2, %239 : vector<16x16xi32>
    %cst_67 = arith.constant 0.000000e+00 : f32
    %241 = vector.broadcast %cst_67 : f32 to vector<16x16xf32>
    %242 = arith.select %240, %145, %241 : vector<16x16xi1>, vector<16x16xf32>
    %cst_68 = arith.constant dense<0.000000e+00> : vector<16xf32>
    %243 = vector.multi_reduction <add>, %242, %cst_68 [1] : vector<16x16xf32> to vector<16xf32>
    %244 = vector.shape_cast %243 : vector<16xf32> to vector<16x1xf32>
    %245 = vector.extract_strided_slice %150 {offsets = [8, 0], sizes = [1, 16], strides = [1, 1]} : vector<11x16xf32> to vector<1x16xf32>
    %246 = vector.broadcast %244 : vector<16x1xf32> to vector<16x16xf32>
    %247 = vector.broadcast %245 : vector<1x16xf32> to vector<16x16xf32>
    %248 = arith.mulf %246, %247 : vector<16x16xf32>
    %249 = arith.addf %238, %248 : vector<16x16xf32>
    %c4_i32_69 = arith.constant 4 : i32
    %250 = vector.broadcast %c4_i32_69 : i32 to vector<16x16xi32>
    %251 = arith.cmpi eq, %2, %250 : vector<16x16xi32>
    %cst_70 = arith.constant 0.000000e+00 : f32
    %252 = vector.broadcast %cst_70 : f32 to vector<16x16xf32>
    %253 = arith.select %251, %145, %252 : vector<16x16xi1>, vector<16x16xf32>
    %cst_71 = arith.constant dense<0.000000e+00> : vector<16xf32>
    %254 = vector.multi_reduction <add>, %253, %cst_71 [1] : vector<16x16xf32> to vector<16xf32>
    %255 = vector.shape_cast %254 : vector<16xf32> to vector<16x1xf32>
    %256 = vector.extract_strided_slice %150 {offsets = [9, 0], sizes = [1, 16], strides = [1, 1]} : vector<11x16xf32> to vector<1x16xf32>
    %257 = vector.broadcast %255 : vector<16x1xf32> to vector<16x16xf32>
    %258 = vector.broadcast %256 : vector<1x16xf32> to vector<16x16xf32>
    %259 = arith.mulf %257, %258 : vector<16x16xf32>
    %260 = arith.addf %249, %259 : vector<16x16xf32>
    %c5_i32_72 = arith.constant 5 : i32
    %261 = vector.broadcast %c5_i32_72 : i32 to vector<16x16xi32>
    %262 = arith.cmpi eq, %2, %261 : vector<16x16xi32>
    %cst_73 = arith.constant 0.000000e+00 : f32
    %263 = vector.broadcast %cst_73 : f32 to vector<16x16xf32>
    %264 = arith.select %262, %145, %263 : vector<16x16xi1>, vector<16x16xf32>
    %cst_74 = arith.constant dense<0.000000e+00> : vector<16xf32>
    %265 = vector.multi_reduction <add>, %264, %cst_74 [1] : vector<16x16xf32> to vector<16xf32>
    %266 = vector.shape_cast %265 : vector<16xf32> to vector<16x1xf32>
    %267 = vector.extract_strided_slice %150 {offsets = [10, 0], sizes = [1, 16], strides = [1, 1]} : vector<11x16xf32> to vector<1x16xf32>
    %268 = vector.broadcast %266 : vector<16x1xf32> to vector<16x16xf32>
    %269 = vector.broadcast %267 : vector<1x16xf32> to vector<16x16xf32>
    %270 = arith.mulf %268, %269 : vector<16x16xf32>
    %271 = arith.addf %260, %270 : vector<16x16xf32>
    %272 = arith.truncf %271 : vector<16x16xf32> to vector<16x16xbf16>
    %c0_75 = arith.constant 0 : index
    %c0_76 = arith.constant 0 : index
    %c0_77 = arith.constant 0 : index
    %273 = vector.load %arg6[%c0_75, %c0_76, %c0_77] : memref<1x32x32xbf16, #tpu.memory_space<vmem>>, vector<1x16x32xbf16>
    %274 = vector.shape_cast %273 : vector<1x16x32xbf16> to vector<16x32xbf16>
    %cst_78 = arith.constant dense<0.000000e+00> : vector<16x32xf32>
    %275 = tpu.matmul %272, %274, %cst_78 {dimension_numbers = #tpu.dot_dimension_numbers<[1], [0], [0], [1], [0, 0, 1, 1], [], []>} : vector<16x16xbf16>, vector<16x32xbf16>, vector<16x32xf32> -> vector<16x32xf32>
    %276 = arith.addf %34, %275 : vector<16x32xf32>
    %277 = vector.extract_strided_slice %33 {offsets = [0, 16], sizes = [16, 16], strides = [1, 1]} : vector<16x96xf32> to vector<16x16xf32>
    %cst_79 = arith.constant 2.500000e-01 : f32
    %278 = vector.broadcast %cst_79 : f32 to vector<16x16xf32>
    %279 = arith.mulf %277, %278 : vector<16x16xf32>
    %280 = arith.truncf %279 : vector<16x16xf32> to vector<16x16xbf16>
    %281 = vector.extract_strided_slice %33 {offsets = [0, 48], sizes = [16, 16], strides = [1, 1]} : vector<16x96xf32> to vector<16x16xf32>
    %282 = arith.truncf %281 : vector<16x16xf32> to vector<16x16xbf16>
    %283 = vector.extract_strided_slice %33 {offsets = [0, 80], sizes = [16, 16], strides = [1, 1]} : vector<16x96xf32> to vector<16x16xf32>
    %284 = arith.truncf %283 : vector<16x16xf32> to vector<16x16xbf16>
    %cst_80 = arith.constant dense<0.000000e+00> : vector<16x16xf32>
    %285 = tpu.matmul %280, %282, %cst_80 {dimension_numbers = #tpu.dot_dimension_numbers<[1], [1], [0], [0], [0, 0, 1, 0], [], []>} : vector<16x16xbf16>, vector<16x16xbf16>, vector<16x16xf32> -> vector<16x16xf32>
    %c0_81 = arith.constant 0 : index
    %c1 = arith.constant 1 : index
    %c0_82 = arith.constant 0 : index
    %c0_83 = arith.constant 0 : index
    %286 = vector.load %arg8[%c0_81, %c1, %c0_82, %c0_83] : memref<1x4x11x16xbf16, #tpu.memory_space<vmem>>, vector<1x1x11x16xbf16>
    %287 = vector.shape_cast %286 : vector<1x1x11x16xbf16> to vector<11x16xbf16>
    %cst_84 = arith.constant dense<0.000000e+00> : vector<16x11xf32>
    %288 = tpu.matmul %280, %287, %cst_84 {dimension_numbers = #tpu.dot_dimension_numbers<[1], [1], [0], [0], [0, 0, 1, 0], [], []>} : vector<16x16xbf16>, vector<11x16xbf16>, vector<16x11xf32> -> vector<16x11xf32>
    %c-5_i32_85 = arith.constant -5 : i32
    %289 = vector.broadcast %c-5_i32_85 : i32 to vector<16x16xi32>
    %290 = arith.cmpi eq, %2, %289 : vector<16x16xi32>
    %291 = vector.extract_strided_slice %288 {offsets = [0, 0], sizes = [16, 1], strides = [1, 1]} : vector<16x11xf32> to vector<16x1xf32>
    %cst_86 = arith.constant 0.000000e+00 : f32
    %292 = vector.shape_cast %291 : vector<16x1xf32> to vector<16x1xf32>
    %293 = vector.broadcast %292 : vector<16x1xf32> to vector<16x16xf32>
    %294 = vector.broadcast %cst_86 : f32 to vector<16x16xf32>
    %295 = arith.select %290, %293, %294 : vector<16x16xi1>, vector<16x16xf32>
    %296 = arith.addf %285, %295 : vector<16x16xf32>
    %c-4_i32_87 = arith.constant -4 : i32
    %297 = vector.broadcast %c-4_i32_87 : i32 to vector<16x16xi32>
    %298 = arith.cmpi eq, %2, %297 : vector<16x16xi32>
    %299 = vector.extract_strided_slice %288 {offsets = [0, 1], sizes = [16, 1], strides = [1, 1]} : vector<16x11xf32> to vector<16x1xf32>
    %cst_88 = arith.constant 0.000000e+00 : f32
    %300 = vector.shape_cast %299 : vector<16x1xf32> to vector<16x1xf32>
    %301 = vector.broadcast %300 : vector<16x1xf32> to vector<16x16xf32>
    %302 = vector.broadcast %cst_88 : f32 to vector<16x16xf32>
    %303 = arith.select %298, %301, %302 : vector<16x16xi1>, vector<16x16xf32>
    %304 = arith.addf %296, %303 : vector<16x16xf32>
    %c-3_i32_89 = arith.constant -3 : i32
    %305 = vector.broadcast %c-3_i32_89 : i32 to vector<16x16xi32>
    %306 = arith.cmpi eq, %2, %305 : vector<16x16xi32>
    %307 = vector.extract_strided_slice %288 {offsets = [0, 2], sizes = [16, 1], strides = [1, 1]} : vector<16x11xf32> to vector<16x1xf32>
    %cst_90 = arith.constant 0.000000e+00 : f32
    %308 = vector.shape_cast %307 : vector<16x1xf32> to vector<16x1xf32>
    %309 = vector.broadcast %308 : vector<16x1xf32> to vector<16x16xf32>
    %310 = vector.broadcast %cst_90 : f32 to vector<16x16xf32>
    %311 = arith.select %306, %309, %310 : vector<16x16xi1>, vector<16x16xf32>
    %312 = arith.addf %304, %311 : vector<16x16xf32>
    %c-2_i32_91 = arith.constant -2 : i32
    %313 = vector.broadcast %c-2_i32_91 : i32 to vector<16x16xi32>
    %314 = arith.cmpi eq, %2, %313 : vector<16x16xi32>
    %315 = vector.extract_strided_slice %288 {offsets = [0, 3], sizes = [16, 1], strides = [1, 1]} : vector<16x11xf32> to vector<16x1xf32>
    %cst_92 = arith.constant 0.000000e+00 : f32
    %316 = vector.shape_cast %315 : vector<16x1xf32> to vector<16x1xf32>
    %317 = vector.broadcast %316 : vector<16x1xf32> to vector<16x16xf32>
    %318 = vector.broadcast %cst_92 : f32 to vector<16x16xf32>
    %319 = arith.select %314, %317, %318 : vector<16x16xi1>, vector<16x16xf32>
    %320 = arith.addf %312, %319 : vector<16x16xf32>
    %c-1_i32_93 = arith.constant -1 : i32
    %321 = vector.broadcast %c-1_i32_93 : i32 to vector<16x16xi32>
    %322 = arith.cmpi eq, %2, %321 : vector<16x16xi32>
    %323 = vector.extract_strided_slice %288 {offsets = [0, 4], sizes = [16, 1], strides = [1, 1]} : vector<16x11xf32> to vector<16x1xf32>
    %cst_94 = arith.constant 0.000000e+00 : f32
    %324 = vector.shape_cast %323 : vector<16x1xf32> to vector<16x1xf32>
    %325 = vector.broadcast %324 : vector<16x1xf32> to vector<16x16xf32>
    %326 = vector.broadcast %cst_94 : f32 to vector<16x16xf32>
    %327 = arith.select %322, %325, %326 : vector<16x16xi1>, vector<16x16xf32>
    %328 = arith.addf %320, %327 : vector<16x16xf32>
    %c0_i32_95 = arith.constant 0 : i32
    %329 = vector.broadcast %c0_i32_95 : i32 to vector<16x16xi32>
    %330 = arith.cmpi eq, %2, %329 : vector<16x16xi32>
    %331 = vector.extract_strided_slice %288 {offsets = [0, 5], sizes = [16, 1], strides = [1, 1]} : vector<16x11xf32> to vector<16x1xf32>
    %cst_96 = arith.constant 0.000000e+00 : f32
    %332 = vector.shape_cast %331 : vector<16x1xf32> to vector<16x1xf32>
    %333 = vector.broadcast %332 : vector<16x1xf32> to vector<16x16xf32>
    %334 = vector.broadcast %cst_96 : f32 to vector<16x16xf32>
    %335 = arith.select %330, %333, %334 : vector<16x16xi1>, vector<16x16xf32>
    %336 = arith.addf %328, %335 : vector<16x16xf32>
    %c1_i32_97 = arith.constant 1 : i32
    %337 = vector.broadcast %c1_i32_97 : i32 to vector<16x16xi32>
    %338 = arith.cmpi eq, %2, %337 : vector<16x16xi32>
    %339 = vector.extract_strided_slice %288 {offsets = [0, 6], sizes = [16, 1], strides = [1, 1]} : vector<16x11xf32> to vector<16x1xf32>
    %cst_98 = arith.constant 0.000000e+00 : f32
    %340 = vector.shape_cast %339 : vector<16x1xf32> to vector<16x1xf32>
    %341 = vector.broadcast %340 : vector<16x1xf32> to vector<16x16xf32>
    %342 = vector.broadcast %cst_98 : f32 to vector<16x16xf32>
    %343 = arith.select %338, %341, %342 : vector<16x16xi1>, vector<16x16xf32>
    %344 = arith.addf %336, %343 : vector<16x16xf32>
    %c2_i32_99 = arith.constant 2 : i32
    %345 = vector.broadcast %c2_i32_99 : i32 to vector<16x16xi32>
    %346 = arith.cmpi eq, %2, %345 : vector<16x16xi32>
    %347 = vector.extract_strided_slice %288 {offsets = [0, 7], sizes = [16, 1], strides = [1, 1]} : vector<16x11xf32> to vector<16x1xf32>
    %cst_100 = arith.constant 0.000000e+00 : f32
    %348 = vector.shape_cast %347 : vector<16x1xf32> to vector<16x1xf32>
    %349 = vector.broadcast %348 : vector<16x1xf32> to vector<16x16xf32>
    %350 = vector.broadcast %cst_100 : f32 to vector<16x16xf32>
    %351 = arith.select %346, %349, %350 : vector<16x16xi1>, vector<16x16xf32>
    %352 = arith.addf %344, %351 : vector<16x16xf32>
    %c3_i32_101 = arith.constant 3 : i32
    %353 = vector.broadcast %c3_i32_101 : i32 to vector<16x16xi32>
    %354 = arith.cmpi eq, %2, %353 : vector<16x16xi32>
    %355 = vector.extract_strided_slice %288 {offsets = [0, 8], sizes = [16, 1], strides = [1, 1]} : vector<16x11xf32> to vector<16x1xf32>
    %cst_102 = arith.constant 0.000000e+00 : f32
    %356 = vector.shape_cast %355 : vector<16x1xf32> to vector<16x1xf32>
    %357 = vector.broadcast %356 : vector<16x1xf32> to vector<16x16xf32>
    %358 = vector.broadcast %cst_102 : f32 to vector<16x16xf32>
    %359 = arith.select %354, %357, %358 : vector<16x16xi1>, vector<16x16xf32>
    %360 = arith.addf %352, %359 : vector<16x16xf32>
    %c4_i32_103 = arith.constant 4 : i32
    %361 = vector.broadcast %c4_i32_103 : i32 to vector<16x16xi32>
    %362 = arith.cmpi eq, %2, %361 : vector<16x16xi32>
    %363 = vector.extract_strided_slice %288 {offsets = [0, 9], sizes = [16, 1], strides = [1, 1]} : vector<16x11xf32> to vector<16x1xf32>
    %cst_104 = arith.constant 0.000000e+00 : f32
    %364 = vector.shape_cast %363 : vector<16x1xf32> to vector<16x1xf32>
    %365 = vector.broadcast %364 : vector<16x1xf32> to vector<16x16xf32>
    %366 = vector.broadcast %cst_104 : f32 to vector<16x16xf32>
    %367 = arith.select %362, %365, %366 : vector<16x16xi1>, vector<16x16xf32>
    %368 = arith.addf %360, %367 : vector<16x16xf32>
    %c5_i32_105 = arith.constant 5 : i32
    %369 = vector.broadcast %c5_i32_105 : i32 to vector<16x16xi32>
    %370 = arith.cmpi eq, %2, %369 : vector<16x16xi32>
    %371 = vector.extract_strided_slice %288 {offsets = [0, 10], sizes = [16, 1], strides = [1, 1]} : vector<16x11xf32> to vector<16x1xf32>
    %cst_106 = arith.constant 0.000000e+00 : f32
    %372 = vector.shape_cast %371 : vector<16x1xf32> to vector<16x1xf32>
    %373 = vector.broadcast %372 : vector<16x1xf32> to vector<16x16xf32>
    %374 = vector.broadcast %cst_106 : f32 to vector<16x16xf32>
    %375 = arith.select %370, %373, %374 : vector<16x16xi1>, vector<16x16xf32>
    %376 = arith.addf %368, %375 : vector<16x16xf32>
    %cst_107 = arith.constant -1.000000e+04 : f32
    %377 = vector.broadcast %cst_107 : f32 to vector<16x16xf32>
    %378 = arith.select %21, %377, %376 : vector<16x16xi1>, vector<16x16xf32>
    %cst_108 = arith.constant dense<0xFF800000> : vector<16xf32>
    %379 = vector.multi_reduction <maximumf>, %378, %cst_108 [1] : vector<16x16xf32> to vector<16xf32>
    %380 = vector.shape_cast %379 : vector<16xf32> to vector<16x1xf32>
    %381 = vector.broadcast %380 : vector<16x1xf32> to vector<16x16xf32>
    %382 = arith.subf %378, %381 : vector<16x16xf32>
    %383 = math.exp %382 : vector<16x16xf32>
    %cst_109 = arith.constant dense<0.000000e+00> : vector<16xf32>
    %384 = vector.multi_reduction <add>, %383, %cst_109 [1] : vector<16x16xf32> to vector<16xf32>
    %385 = vector.shape_cast %384 : vector<16xf32> to vector<16x1xf32>
    %386 = vector.broadcast %385 : vector<16x1xf32> to vector<16x16xf32>
    %387 = arith.divf %383, %386 : vector<16x16xf32>
    %388 = arith.truncf %387 : vector<16x16xf32> to vector<16x16xbf16>
    %cst_110 = arith.constant dense<0.000000e+00> : vector<16x16xf32>
    %389 = tpu.matmul %388, %284, %cst_110 {dimension_numbers = #tpu.dot_dimension_numbers<[1], [0], [0], [1], [0, 0, 1, 1], [], []>} : vector<16x16xbf16>, vector<16x16xbf16>, vector<16x16xf32> -> vector<16x16xf32>
    %c0_111 = arith.constant 0 : index
    %c3 = arith.constant 3 : index
    %c0_112 = arith.constant 0 : index
    %c0_113 = arith.constant 0 : index
    %390 = vector.load %arg8[%c0_111, %c3, %c0_112, %c0_113] : memref<1x4x11x16xbf16, #tpu.memory_space<vmem>>, vector<1x1x11x16xbf16>
    %391 = vector.shape_cast %390 : vector<1x1x11x16xbf16> to vector<11x16xbf16>
    %392 = arith.extf %391 : vector<11x16xbf16> to vector<11x16xf32>
    %c-5_i32_114 = arith.constant -5 : i32
    %393 = vector.broadcast %c-5_i32_114 : i32 to vector<16x16xi32>
    %394 = arith.cmpi eq, %2, %393 : vector<16x16xi32>
    %cst_115 = arith.constant 0.000000e+00 : f32
    %395 = vector.broadcast %cst_115 : f32 to vector<16x16xf32>
    %396 = arith.select %394, %387, %395 : vector<16x16xi1>, vector<16x16xf32>
    %cst_116 = arith.constant dense<0.000000e+00> : vector<16xf32>
    %397 = vector.multi_reduction <add>, %396, %cst_116 [1] : vector<16x16xf32> to vector<16xf32>
    %398 = vector.shape_cast %397 : vector<16xf32> to vector<16x1xf32>
    %399 = vector.extract_strided_slice %392 {offsets = [0, 0], sizes = [1, 16], strides = [1, 1]} : vector<11x16xf32> to vector<1x16xf32>
    %400 = vector.broadcast %398 : vector<16x1xf32> to vector<16x16xf32>
    %401 = vector.broadcast %399 : vector<1x16xf32> to vector<16x16xf32>
    %402 = arith.mulf %400, %401 : vector<16x16xf32>
    %403 = arith.addf %389, %402 : vector<16x16xf32>
    %c-4_i32_117 = arith.constant -4 : i32
    %404 = vector.broadcast %c-4_i32_117 : i32 to vector<16x16xi32>
    %405 = arith.cmpi eq, %2, %404 : vector<16x16xi32>
    %cst_118 = arith.constant 0.000000e+00 : f32
    %406 = vector.broadcast %cst_118 : f32 to vector<16x16xf32>
    %407 = arith.select %405, %387, %406 : vector<16x16xi1>, vector<16x16xf32>
    %cst_119 = arith.constant dense<0.000000e+00> : vector<16xf32>
    %408 = vector.multi_reduction <add>, %407, %cst_119 [1] : vector<16x16xf32> to vector<16xf32>
    %409 = vector.shape_cast %408 : vector<16xf32> to vector<16x1xf32>
    %410 = vector.extract_strided_slice %392 {offsets = [1, 0], sizes = [1, 16], strides = [1, 1]} : vector<11x16xf32> to vector<1x16xf32>
    %411 = vector.broadcast %409 : vector<16x1xf32> to vector<16x16xf32>
    %412 = vector.broadcast %410 : vector<1x16xf32> to vector<16x16xf32>
    %413 = arith.mulf %411, %412 : vector<16x16xf32>
    %414 = arith.addf %403, %413 : vector<16x16xf32>
    %c-3_i32_120 = arith.constant -3 : i32
    %415 = vector.broadcast %c-3_i32_120 : i32 to vector<16x16xi32>
    %416 = arith.cmpi eq, %2, %415 : vector<16x16xi32>
    %cst_121 = arith.constant 0.000000e+00 : f32
    %417 = vector.broadcast %cst_121 : f32 to vector<16x16xf32>
    %418 = arith.select %416, %387, %417 : vector<16x16xi1>, vector<16x16xf32>
    %cst_122 = arith.constant dense<0.000000e+00> : vector<16xf32>
    %419 = vector.multi_reduction <add>, %418, %cst_122 [1] : vector<16x16xf32> to vector<16xf32>
    %420 = vector.shape_cast %419 : vector<16xf32> to vector<16x1xf32>
    %421 = vector.extract_strided_slice %392 {offsets = [2, 0], sizes = [1, 16], strides = [1, 1]} : vector<11x16xf32> to vector<1x16xf32>
    %422 = vector.broadcast %420 : vector<16x1xf32> to vector<16x16xf32>
    %423 = vector.broadcast %421 : vector<1x16xf32> to vector<16x16xf32>
    %424 = arith.mulf %422, %423 : vector<16x16xf32>
    %425 = arith.addf %414, %424 : vector<16x16xf32>
    %c-2_i32_123 = arith.constant -2 : i32
    %426 = vector.broadcast %c-2_i32_123 : i32 to vector<16x16xi32>
    %427 = arith.cmpi eq, %2, %426 : vector<16x16xi32>
    %cst_124 = arith.constant 0.000000e+00 : f32
    %428 = vector.broadcast %cst_124 : f32 to vector<16x16xf32>
    %429 = arith.select %427, %387, %428 : vector<16x16xi1>, vector<16x16xf32>
    %cst_125 = arith.constant dense<0.000000e+00> : vector<16xf32>
    %430 = vector.multi_reduction <add>, %429, %cst_125 [1] : vector<16x16xf32> to vector<16xf32>
    %431 = vector.shape_cast %430 : vector<16xf32> to vector<16x1xf32>
    %432 = vector.extract_strided_slice %392 {offsets = [3, 0], sizes = [1, 16], strides = [1, 1]} : vector<11x16xf32> to vector<1x16xf32>
    %433 = vector.broadcast %431 : vector<16x1xf32> to vector<16x16xf32>
    %434 = vector.broadcast %432 : vector<1x16xf32> to vector<16x16xf32>
    %435 = arith.mulf %433, %434 : vector<16x16xf32>
    %436 = arith.addf %425, %435 : vector<16x16xf32>
    %c-1_i32_126 = arith.constant -1 : i32
    %437 = vector.broadcast %c-1_i32_126 : i32 to vector<16x16xi32>
    %438 = arith.cmpi eq, %2, %437 : vector<16x16xi32>
    %cst_127 = arith.constant 0.000000e+00 : f32
    %439 = vector.broadcast %cst_127 : f32 to vector<16x16xf32>
    %440 = arith.select %438, %387, %439 : vector<16x16xi1>, vector<16x16xf32>
    %cst_128 = arith.constant dense<0.000000e+00> : vector<16xf32>
    %441 = vector.multi_reduction <add>, %440, %cst_128 [1] : vector<16x16xf32> to vector<16xf32>
    %442 = vector.shape_cast %441 : vector<16xf32> to vector<16x1xf32>
    %443 = vector.extract_strided_slice %392 {offsets = [4, 0], sizes = [1, 16], strides = [1, 1]} : vector<11x16xf32> to vector<1x16xf32>
    %444 = vector.broadcast %442 : vector<16x1xf32> to vector<16x16xf32>
    %445 = vector.broadcast %443 : vector<1x16xf32> to vector<16x16xf32>
    %446 = arith.mulf %444, %445 : vector<16x16xf32>
    %447 = arith.addf %436, %446 : vector<16x16xf32>
    %c0_i32_129 = arith.constant 0 : i32
    %448 = vector.broadcast %c0_i32_129 : i32 to vector<16x16xi32>
    %449 = arith.cmpi eq, %2, %448 : vector<16x16xi32>
    %cst_130 = arith.constant 0.000000e+00 : f32
    %450 = vector.broadcast %cst_130 : f32 to vector<16x16xf32>
    %451 = arith.select %449, %387, %450 : vector<16x16xi1>, vector<16x16xf32>
    %cst_131 = arith.constant dense<0.000000e+00> : vector<16xf32>
    %452 = vector.multi_reduction <add>, %451, %cst_131 [1] : vector<16x16xf32> to vector<16xf32>
    %453 = vector.shape_cast %452 : vector<16xf32> to vector<16x1xf32>
    %454 = vector.extract_strided_slice %392 {offsets = [5, 0], sizes = [1, 16], strides = [1, 1]} : vector<11x16xf32> to vector<1x16xf32>
    %455 = vector.broadcast %453 : vector<16x1xf32> to vector<16x16xf32>
    %456 = vector.broadcast %454 : vector<1x16xf32> to vector<16x16xf32>
    %457 = arith.mulf %455, %456 : vector<16x16xf32>
    %458 = arith.addf %447, %457 : vector<16x16xf32>
    %c1_i32_132 = arith.constant 1 : i32
    %459 = vector.broadcast %c1_i32_132 : i32 to vector<16x16xi32>
    %460 = arith.cmpi eq, %2, %459 : vector<16x16xi32>
    %cst_133 = arith.constant 0.000000e+00 : f32
    %461 = vector.broadcast %cst_133 : f32 to vector<16x16xf32>
    %462 = arith.select %460, %387, %461 : vector<16x16xi1>, vector<16x16xf32>
    %cst_134 = arith.constant dense<0.000000e+00> : vector<16xf32>
    %463 = vector.multi_reduction <add>, %462, %cst_134 [1] : vector<16x16xf32> to vector<16xf32>
    %464 = vector.shape_cast %463 : vector<16xf32> to vector<16x1xf32>
    %465 = vector.extract_strided_slice %392 {offsets = [6, 0], sizes = [1, 16], strides = [1, 1]} : vector<11x16xf32> to vector<1x16xf32>
    %466 = vector.broadcast %464 : vector<16x1xf32> to vector<16x16xf32>
    %467 = vector.broadcast %465 : vector<1x16xf32> to vector<16x16xf32>
    %468 = arith.mulf %466, %467 : vector<16x16xf32>
    %469 = arith.addf %458, %468 : vector<16x16xf32>
    %c2_i32_135 = arith.constant 2 : i32
    %470 = vector.broadcast %c2_i32_135 : i32 to vector<16x16xi32>
    %471 = arith.cmpi eq, %2, %470 : vector<16x16xi32>
    %cst_136 = arith.constant 0.000000e+00 : f32
    %472 = vector.broadcast %cst_136 : f32 to vector<16x16xf32>
    %473 = arith.select %471, %387, %472 : vector<16x16xi1>, vector<16x16xf32>
    %cst_137 = arith.constant dense<0.000000e+00> : vector<16xf32>
    %474 = vector.multi_reduction <add>, %473, %cst_137 [1] : vector<16x16xf32> to vector<16xf32>
    %475 = vector.shape_cast %474 : vector<16xf32> to vector<16x1xf32>
    %476 = vector.extract_strided_slice %392 {offsets = [7, 0], sizes = [1, 16], strides = [1, 1]} : vector<11x16xf32> to vector<1x16xf32>
    %477 = vector.broadcast %475 : vector<16x1xf32> to vector<16x16xf32>
    %478 = vector.broadcast %476 : vector<1x16xf32> to vector<16x16xf32>
    %479 = arith.mulf %477, %478 : vector<16x16xf32>
    %480 = arith.addf %469, %479 : vector<16x16xf32>
    %c3_i32_138 = arith.constant 3 : i32
    %481 = vector.broadcast %c3_i32_138 : i32 to vector<16x16xi32>
    %482 = arith.cmpi eq, %2, %481 : vector<16x16xi32>
    %cst_139 = arith.constant 0.000000e+00 : f32
    %483 = vector.broadcast %cst_139 : f32 to vector<16x16xf32>
    %484 = arith.select %482, %387, %483 : vector<16x16xi1>, vector<16x16xf32>
    %cst_140 = arith.constant dense<0.000000e+00> : vector<16xf32>
    %485 = vector.multi_reduction <add>, %484, %cst_140 [1] : vector<16x16xf32> to vector<16xf32>
    %486 = vector.shape_cast %485 : vector<16xf32> to vector<16x1xf32>
    %487 = vector.extract_strided_slice %392 {offsets = [8, 0], sizes = [1, 16], strides = [1, 1]} : vector<11x16xf32> to vector<1x16xf32>
    %488 = vector.broadcast %486 : vector<16x1xf32> to vector<16x16xf32>
    %489 = vector.broadcast %487 : vector<1x16xf32> to vector<16x16xf32>
    %490 = arith.mulf %488, %489 : vector<16x16xf32>
    %491 = arith.addf %480, %490 : vector<16x16xf32>
    %c4_i32_141 = arith.constant 4 : i32
    %492 = vector.broadcast %c4_i32_141 : i32 to vector<16x16xi32>
    %493 = arith.cmpi eq, %2, %492 : vector<16x16xi32>
    %cst_142 = arith.constant 0.000000e+00 : f32
    %494 = vector.broadcast %cst_142 : f32 to vector<16x16xf32>
    %495 = arith.select %493, %387, %494 : vector<16x16xi1>, vector<16x16xf32>
    %cst_143 = arith.constant dense<0.000000e+00> : vector<16xf32>
    %496 = vector.multi_reduction <add>, %495, %cst_143 [1] : vector<16x16xf32> to vector<16xf32>
    %497 = vector.shape_cast %496 : vector<16xf32> to vector<16x1xf32>
    %498 = vector.extract_strided_slice %392 {offsets = [9, 0], sizes = [1, 16], strides = [1, 1]} : vector<11x16xf32> to vector<1x16xf32>
    %499 = vector.broadcast %497 : vector<16x1xf32> to vector<16x16xf32>
    %500 = vector.broadcast %498 : vector<1x16xf32> to vector<16x16xf32>
    %501 = arith.mulf %499, %500 : vector<16x16xf32>
    %502 = arith.addf %491, %501 : vector<16x16xf32>
    %c5_i32_144 = arith.constant 5 : i32
    %503 = vector.broadcast %c5_i32_144 : i32 to vector<16x16xi32>
    %504 = arith.cmpi eq, %2, %503 : vector<16x16xi32>
    %cst_145 = arith.constant 0.000000e+00 : f32
    %505 = vector.broadcast %cst_145 : f32 to vector<16x16xf32>
    %506 = arith.select %504, %387, %505 : vector<16x16xi1>, vector<16x16xf32>
    %cst_146 = arith.constant dense<0.000000e+00> : vector<16xf32>
    %507 = vector.multi_reduction <add>, %506, %cst_146 [1] : vector<16x16xf32> to vector<16xf32>
    %508 = vector.shape_cast %507 : vector<16xf32> to vector<16x1xf32>
    %509 = vector.extract_strided_slice %392 {offsets = [10, 0], sizes = [1, 16], strides = [1, 1]} : vector<11x16xf32> to vector<1x16xf32>
    %510 = vector.broadcast %508 : vector<16x1xf32> to vector<16x16xf32>
    %511 = vector.broadcast %509 : vector<1x16xf32> to vector<16x16xf32>
    %512 = arith.mulf %510, %511 : vector<16x16xf32>
    %513 = arith.addf %502, %512 : vector<16x16xf32>
    %514 = arith.truncf %513 : vector<16x16xf32> to vector<16x16xbf16>
    %c0_147 = arith.constant 0 : index
    %c16 = arith.constant 16 : index
    %c0_148 = arith.constant 0 : index
    %515 = vector.load %arg6[%c0_147, %c16, %c0_148] : memref<1x32x32xbf16, #tpu.memory_space<vmem>>, vector<1x16x32xbf16>
    %516 = vector.shape_cast %515 : vector<1x16x32xbf16> to vector<16x32xbf16>
    %cst_149 = arith.constant dense<0.000000e+00> : vector<16x32xf32>
    %517 = tpu.matmul %514, %516, %cst_149 {dimension_numbers = #tpu.dot_dimension_numbers<[1], [0], [0], [1], [0, 0, 1, 1], [], []>} : vector<16x16xbf16>, vector<16x32xbf16>, vector<16x32xf32> -> vector<16x32xf32>
    %518 = arith.addf %276, %517 : vector<16x32xf32>
    %c0_150 = arith.constant 0 : index
    %c0_151 = arith.constant 0 : index
    %c0_152 = arith.constant 0 : index
    %519 = vector.load %arg7[%c0_150, %c0_151, %c0_152] : memref<1x1x32xf32, #tpu.memory_space<vmem>>, vector<1x1x32xf32>
    %520 = vector.shape_cast %519 : vector<1x1x32xf32> to vector<1x32xf32>
    %521 = vector.broadcast %520 : vector<1x32xf32> to vector<16x32xf32>
    %522 = arith.addf %518, %521 : vector<16x32xf32>
    %523 = arith.addf %25, %522 : vector<16x32xf32>
    %524 = vector.extract_strided_slice %8 {offsets = [0, 0, 0], sizes = [1, 1, 32], strides = [1, 1, 1]} : vector<2x2x32xf32> to vector<1x1x32xf32>
    %525 = vector.shape_cast %524 : vector<1x1x32xf32> to vector<1x32xf32>
    %526 = vector.extract_strided_slice %8 {offsets = [0, 1, 0], sizes = [1, 1, 32], strides = [1, 1, 1]} : vector<2x2x32xf32> to vector<1x1x32xf32>
    %527 = vector.shape_cast %526 : vector<1x1x32xf32> to vector<1x32xf32>
    %cst_153 = arith.constant dense<0.000000e+00> : vector<16xf32>
    %528 = vector.multi_reduction <add>, %523, %cst_153 [1] : vector<16x32xf32> to vector<16xf32>
    %529 = vector.shape_cast %528 : vector<16xf32> to vector<16x1xf32>
    %cst_154 = arith.constant 3.200000e+01 : f32
    %530 = vector.broadcast %cst_154 : f32 to vector<16x1xf32>
    %531 = arith.divf %529, %530 : vector<16x1xf32>
    %532 = vector.broadcast %531 : vector<16x1xf32> to vector<16x32xf32>
    %533 = arith.subf %523, %532 : vector<16x32xf32>
    %534 = arith.mulf %533, %533 : vector<16x32xf32>
    %cst_155 = arith.constant dense<0.000000e+00> : vector<16xf32>
    %535 = vector.multi_reduction <add>, %534, %cst_155 [1] : vector<16x32xf32> to vector<16xf32>
    %536 = vector.shape_cast %535 : vector<16xf32> to vector<16x1xf32>
    %cst_156 = arith.constant 3.200000e+01 : f32
    %537 = vector.broadcast %cst_156 : f32 to vector<16x1xf32>
    %538 = arith.divf %536, %537 : vector<16x1xf32>
    %539 = vector.broadcast %531 : vector<16x1xf32> to vector<16x32xf32>
    %540 = arith.subf %523, %539 : vector<16x32xf32>
    %cst_157 = arith.constant 9.99999974E-6 : f32
    %541 = vector.broadcast %cst_157 : f32 to vector<16x1xf32>
    %542 = arith.addf %538, %541 : vector<16x1xf32>
    %543 = math.rsqrt %542 : vector<16x1xf32>
    %544 = vector.broadcast %543 : vector<16x1xf32> to vector<16x32xf32>
    %545 = arith.mulf %540, %544 : vector<16x32xf32>
    %546 = vector.broadcast %525 : vector<1x32xf32> to vector<16x32xf32>
    %547 = arith.mulf %545, %546 : vector<16x32xf32>
    %548 = vector.broadcast %527 : vector<1x32xf32> to vector<16x32xf32>
    %549 = arith.addf %547, %548 : vector<16x32xf32>
    %550 = vector.broadcast %16 : vector<16x1xf32> to vector<16x32xf32>
    %551 = arith.mulf %549, %550 : vector<16x32xf32>
    %552 = arith.truncf %551 : vector<16x32xf32> to vector<16x32xbf16>
    %cst_158 = arith.constant 0.000000e+00 : bf16
    %553 = vector.broadcast %cst_158 : bf16 to vector<1x32xbf16>
    %cst_159 = arith.constant 0.000000e+00 : bf16
    %554 = vector.broadcast %cst_159 : bf16 to vector<1x32xbf16>
    %555 = tpu.concatenate %553, %552, %554 in 0 : vector<1x32xbf16>, vector<16x32xbf16>, vector<1x32xbf16> -> vector<18x32xbf16>
    %556 = vector.extract_strided_slice %555 {offsets = [0, 0], sizes = [16, 32], strides = [1, 1]} : vector<18x32xbf16> to vector<16x32xbf16>
    %c0_160 = arith.constant 0 : index
    %c0_161 = arith.constant 0 : index
    %c0_162 = arith.constant 0 : index
    %c0_163 = arith.constant 0 : index
    %557 = vector.load %arg10[%c0_160, %c0_161, %c0_162, %c0_163] : memref<1x3x32x64xbf16, #tpu.memory_space<vmem>>, vector<1x1x32x64xbf16>
    %558 = vector.shape_cast %557 : vector<1x1x32x64xbf16> to vector<32x64xbf16>
    %cst_164 = arith.constant dense<0.000000e+00> : vector<16x64xf32>
    %559 = tpu.matmul %556, %558, %cst_164 {dimension_numbers = #tpu.dot_dimension_numbers<[1], [0], [0], [1], [0, 0, 1, 1], [], []>} : vector<16x32xbf16>, vector<32x64xbf16>, vector<16x64xf32> -> vector<16x64xf32>
    %560 = vector.extract_strided_slice %555 {offsets = [1, 0], sizes = [16, 32], strides = [1, 1]} : vector<18x32xbf16> to vector<16x32xbf16>
    %c0_165 = arith.constant 0 : index
    %c1_166 = arith.constant 1 : index
    %c0_167 = arith.constant 0 : index
    %c0_168 = arith.constant 0 : index
    %561 = vector.load %arg10[%c0_165, %c1_166, %c0_167, %c0_168] : memref<1x3x32x64xbf16, #tpu.memory_space<vmem>>, vector<1x1x32x64xbf16>
    %562 = vector.shape_cast %561 : vector<1x1x32x64xbf16> to vector<32x64xbf16>
    %cst_169 = arith.constant dense<0.000000e+00> : vector<16x64xf32>
    %563 = tpu.matmul %560, %562, %cst_169 {dimension_numbers = #tpu.dot_dimension_numbers<[1], [0], [0], [1], [0, 0, 1, 1], [], []>} : vector<16x32xbf16>, vector<32x64xbf16>, vector<16x64xf32> -> vector<16x64xf32>
    %564 = arith.addf %559, %563 : vector<16x64xf32>
    %565 = vector.extract_strided_slice %555 {offsets = [2, 0], sizes = [16, 32], strides = [1, 1]} : vector<18x32xbf16> to vector<16x32xbf16>
    %c0_170 = arith.constant 0 : index
    %c2_171 = arith.constant 2 : index
    %c0_172 = arith.constant 0 : index
    %c0_173 = arith.constant 0 : index
    %566 = vector.load %arg10[%c0_170, %c2_171, %c0_172, %c0_173] : memref<1x3x32x64xbf16, #tpu.memory_space<vmem>>, vector<1x1x32x64xbf16>
    %567 = vector.shape_cast %566 : vector<1x1x32x64xbf16> to vector<32x64xbf16>
    %cst_174 = arith.constant dense<0.000000e+00> : vector<16x64xf32>
    %568 = tpu.matmul %565, %567, %cst_174 {dimension_numbers = #tpu.dot_dimension_numbers<[1], [0], [0], [1], [0, 0, 1, 1], [], []>} : vector<16x32xbf16>, vector<32x64xbf16>, vector<16x64xf32> -> vector<16x64xf32>
    %569 = arith.addf %564, %568 : vector<16x64xf32>
    %c0_175 = arith.constant 0 : index
    %c0_176 = arith.constant 0 : index
    %c0_177 = arith.constant 0 : index
    %570 = vector.load %arg11[%c0_175, %c0_176, %c0_177] : memref<1x1x64xf32, #tpu.memory_space<vmem>>, vector<1x1x64xf32>
    %571 = vector.shape_cast %570 : vector<1x1x64xf32> to vector<1x64xf32>
    %572 = vector.broadcast %571 : vector<1x64xf32> to vector<16x64xf32>
    %573 = arith.addf %569, %572 : vector<16x64xf32>
    %cst_178 = arith.constant 0.000000e+00 : f32
    %574 = vector.broadcast %cst_178 : f32 to vector<16x64xf32>
    %575 = arith.maximumf %573, %574 : vector<16x64xf32>
    %576 = vector.broadcast %16 : vector<16x1xf32> to vector<16x64xf32>
    %577 = arith.mulf %575, %576 : vector<16x64xf32>
    %578 = arith.truncf %577 : vector<16x64xf32> to vector<16x64xbf16>
    %cst_179 = arith.constant 0.000000e+00 : bf16
    %579 = vector.broadcast %cst_179 : bf16 to vector<1x64xbf16>
    %cst_180 = arith.constant 0.000000e+00 : bf16
    %580 = vector.broadcast %cst_180 : bf16 to vector<1x64xbf16>
    %581 = tpu.concatenate %579, %578, %580 in 0 : vector<1x64xbf16>, vector<16x64xbf16>, vector<1x64xbf16> -> vector<18x64xbf16>
    %582 = vector.extract_strided_slice %581 {offsets = [0, 0], sizes = [16, 64], strides = [1, 1]} : vector<18x64xbf16> to vector<16x64xbf16>
    %c0_181 = arith.constant 0 : index
    %c0_182 = arith.constant 0 : index
    %c0_183 = arith.constant 0 : index
    %c0_184 = arith.constant 0 : index
    %583 = vector.load %arg12[%c0_181, %c0_182, %c0_183, %c0_184] : memref<1x3x64x32xbf16, #tpu.memory_space<vmem>>, vector<1x1x64x32xbf16>
    %584 = vector.shape_cast %583 : vector<1x1x64x32xbf16> to vector<64x32xbf16>
    %cst_185 = arith.constant dense<0.000000e+00> : vector<16x32xf32>
    %585 = tpu.matmul %582, %584, %cst_185 {dimension_numbers = #tpu.dot_dimension_numbers<[1], [0], [0], [1], [0, 0, 1, 1], [], []>} : vector<16x64xbf16>, vector<64x32xbf16>, vector<16x32xf32> -> vector<16x32xf32>
    %586 = vector.extract_strided_slice %581 {offsets = [1, 0], sizes = [16, 64], strides = [1, 1]} : vector<18x64xbf16> to vector<16x64xbf16>
    %c0_186 = arith.constant 0 : index
    %c1_187 = arith.constant 1 : index
    %c0_188 = arith.constant 0 : index
    %c0_189 = arith.constant 0 : index
    %587 = vector.load %arg12[%c0_186, %c1_187, %c0_188, %c0_189] : memref<1x3x64x32xbf16, #tpu.memory_space<vmem>>, vector<1x1x64x32xbf16>
    %588 = vector.shape_cast %587 : vector<1x1x64x32xbf16> to vector<64x32xbf16>
    %cst_190 = arith.constant dense<0.000000e+00> : vector<16x32xf32>
    %589 = tpu.matmul %586, %588, %cst_190 {dimension_numbers = #tpu.dot_dimension_numbers<[1], [0], [0], [1], [0, 0, 1, 1], [], []>} : vector<16x64xbf16>, vector<64x32xbf16>, vector<16x32xf32> -> vector<16x32xf32>
    %590 = arith.addf %585, %589 : vector<16x32xf32>
    %591 = vector.extract_strided_slice %581 {offsets = [2, 0], sizes = [16, 64], strides = [1, 1]} : vector<18x64xbf16> to vector<16x64xbf16>
    %c0_191 = arith.constant 0 : index
    %c2_192 = arith.constant 2 : index
    %c0_193 = arith.constant 0 : index
    %c0_194 = arith.constant 0 : index
    %592 = vector.load %arg12[%c0_191, %c2_192, %c0_193, %c0_194] : memref<1x3x64x32xbf16, #tpu.memory_space<vmem>>, vector<1x1x64x32xbf16>
    %593 = vector.shape_cast %592 : vector<1x1x64x32xbf16> to vector<64x32xbf16>
    %cst_195 = arith.constant dense<0.000000e+00> : vector<16x32xf32>
    %594 = tpu.matmul %591, %593, %cst_195 {dimension_numbers = #tpu.dot_dimension_numbers<[1], [0], [0], [1], [0, 0, 1, 1], [], []>} : vector<16x64xbf16>, vector<64x32xbf16>, vector<16x32xf32> -> vector<16x32xf32>
    %595 = arith.addf %590, %594 : vector<16x32xf32>
    %c0_196 = arith.constant 0 : index
    %c0_197 = arith.constant 0 : index
    %c0_198 = arith.constant 0 : index
    %596 = vector.load %arg13[%c0_196, %c0_197, %c0_198] : memref<1x1x32xf32, #tpu.memory_space<vmem>>, vector<1x1x32xf32>
    %597 = vector.shape_cast %596 : vector<1x1x32xf32> to vector<1x32xf32>
    %598 = vector.broadcast %597 : vector<1x32xf32> to vector<16x32xf32>
    %599 = arith.addf %595, %598 : vector<16x32xf32>
    %600 = vector.broadcast %16 : vector<16x1xf32> to vector<16x32xf32>
    %601 = arith.mulf %599, %600 : vector<16x32xf32>
    %602 = arith.addf %549, %601 : vector<16x32xf32>
    %603 = vector.extract_strided_slice %8 {offsets = [1, 0, 0], sizes = [1, 1, 32], strides = [1, 1, 1]} : vector<2x2x32xf32> to vector<1x1x32xf32>
    %604 = vector.shape_cast %603 : vector<1x1x32xf32> to vector<1x32xf32>
    %605 = vector.extract_strided_slice %8 {offsets = [1, 1, 0], sizes = [1, 1, 32], strides = [1, 1, 1]} : vector<2x2x32xf32> to vector<1x1x32xf32>
    %606 = vector.shape_cast %605 : vector<1x1x32xf32> to vector<1x32xf32>
    %cst_199 = arith.constant dense<0.000000e+00> : vector<16xf32>
    %607 = vector.multi_reduction <add>, %602, %cst_199 [1] : vector<16x32xf32> to vector<16xf32>
    %608 = vector.shape_cast %607 : vector<16xf32> to vector<16x1xf32>
    %cst_200 = arith.constant 3.200000e+01 : f32
    %609 = vector.broadcast %cst_200 : f32 to vector<16x1xf32>
    %610 = arith.divf %608, %609 : vector<16x1xf32>
    %611 = vector.broadcast %610 : vector<16x1xf32> to vector<16x32xf32>
    %612 = arith.subf %602, %611 : vector<16x32xf32>
    %613 = arith.mulf %612, %612 : vector<16x32xf32>
    %cst_201 = arith.constant dense<0.000000e+00> : vector<16xf32>
    %614 = vector.multi_reduction <add>, %613, %cst_201 [1] : vector<16x32xf32> to vector<16xf32>
    %615 = vector.shape_cast %614 : vector<16xf32> to vector<16x1xf32>
    %cst_202 = arith.constant 3.200000e+01 : f32
    %616 = vector.broadcast %cst_202 : f32 to vector<16x1xf32>
    %617 = arith.divf %615, %616 : vector<16x1xf32>
    %618 = vector.broadcast %610 : vector<16x1xf32> to vector<16x32xf32>
    %619 = arith.subf %602, %618 : vector<16x32xf32>
    %cst_203 = arith.constant 9.99999974E-6 : f32
    %620 = vector.broadcast %cst_203 : f32 to vector<16x1xf32>
    %621 = arith.addf %617, %620 : vector<16x1xf32>
    %622 = math.rsqrt %621 : vector<16x1xf32>
    %623 = vector.broadcast %622 : vector<16x1xf32> to vector<16x32xf32>
    %624 = arith.mulf %619, %623 : vector<16x32xf32>
    %625 = vector.broadcast %604 : vector<1x32xf32> to vector<16x32xf32>
    %626 = arith.mulf %624, %625 : vector<16x32xf32>
    %627 = vector.broadcast %606 : vector<1x32xf32> to vector<16x32xf32>
    %628 = arith.addf %626, %627 : vector<16x32xf32>
    %c0_204 = arith.constant 0 : index
    %c0_205 = arith.constant 0 : index
    %c0_206 = arith.constant 0 : index
    %629 = vector.load %arg18[%c0_204, %c0_205, %c0_206] : memref<1x16x32xf32, #tpu.memory_space<vmem>>, vector<1x16x32xf32>
    %630 = vector.shape_cast %629 : vector<1x16x32xf32> to vector<16x32xf32>
    %631 = vector.shape_cast %628 : vector<16x32xf32> to vector<1x16x32xf32>
    tpu.vector_store %arg18[%c0_204, %c0_205, %c0_206], %631 {strides = array<i32>} : memref<1x16x32xf32, #tpu.memory_space<vmem>>, vector<1x16x32xf32>,
    %c1_i32_207 = arith.constant 1 : i32
    %632 = arith.cmpi eq, %arg1, %c1_i32_207 : i32
    %633 = arith.extui %632 : i1 to i32
    %c0_i32_208 = arith.constant 0 : i32
    %634 = arith.cmpi ne, %633, %c0_i32_208 : i32
    scf.if %634 {
      %635 = vector.broadcast %16 : vector<16x1xf32> to vector<16x32xf32>
      %636 = arith.mulf %628, %635 : vector<16x32xf32>
      %c0_209 = arith.constant 0 : index
      %c0_210 = arith.constant 0 : index
      %c0_211 = arith.constant 0 : index
      %637 = vector.load %arg16[%c0_209, %c0_210, %c0_211] : memref<1x16x32xf32, #tpu.memory_space<vmem>>, vector<1x16x32xf32>
      %638 = vector.shape_cast %637 : vector<1x16x32xf32> to vector<16x32xf32>
      %639 = vector.shape_cast %636 : vector<16x32xf32> to vector<1x16x32xf32>
      tpu.vector_store %arg16[%c0_209, %c0_210, %c0_211], %639 {strides = array<i32>} : memref<1x16x32xf32, #tpu.memory_space<vmem>>, vector<1x16x32xf32>,
      %640 = arith.truncf %636 : vector<16x32xf32> to vector<16x32xbf16>
      %c0_212 = arith.constant 0 : index
      %c0_213 = arith.constant 0 : index
      %641 = vector.load %arg14[%c0_212, %c0_213] : memref<32x128xbf16, #tpu.memory_space<vmem>>, vector<32x128xbf16>
      %cst_214 = arith.constant dense<0.000000e+00> : vector<16x128xf32>
      %642 = tpu.matmul %640, %641, %cst_214 {dimension_numbers = #tpu.dot_dimension_numbers<[1], [0], [0], [1], [0, 0, 1, 1], [], []>} : vector<16x32xbf16>, vector<32x128xbf16>, vector<16x128xf32> -> vector<16x128xf32>
      %c0_215 = arith.constant 0 : index
      %c0_216 = arith.constant 0 : index
      %643 = vector.load %arg15[%c0_215, %c0_216] : memref<1x128xf32, #tpu.memory_space<vmem>>, vector<1x128xf32>
      %644 = vector.broadcast %643 : vector<1x128xf32> to vector<16x128xf32>
      %645 = arith.addf %642, %644 : vector<16x128xf32>
      %646 = vector.broadcast %16 : vector<16x1xf32> to vector<16x128xf32>
      %647 = arith.mulf %645, %646 : vector<16x128xf32>
      %c0_217 = arith.constant 0 : index
      %c0_218 = arith.constant 0 : index
      %c0_219 = arith.constant 0 : index
      %648 = vector.load %arg17[%c0_217, %c0_218, %c0_219] : memref<1x16x128xf32, #tpu.memory_space<vmem>>, vector<1x16x128xf32>
      %649 = vector.shape_cast %648 : vector<1x16x128xf32> to vector<16x128xf32>
      %650 = vector.shape_cast %647 : vector<16x128xf32> to vector<1x16x128xf32>
      tpu.vector_store %arg17[%c0_217, %c0_218, %c0_219], %650 {strides = array<i32>} : memref<1x16x128xf32, #tpu.memory_space<vmem>>, vector<1x16x128xf32>,
    } else {
    }
    return
  }
  func.func @transform_0(%arg0: i32, %arg1: i32, %arg2: memref<2xi32, #tpu.memory_space<smem>>) -> (i32, i32, i32) {
    %c0_i32 = arith.constant 0 : i32
    %c0_i32_0 = arith.constant 0 : i32
    %c0_i32_1 = arith.constant 0 : i32
    return %arg0, %c0_i32, %c0_i32_0 : i32, i32, i32
  }
  func.func @transform_1(%arg0: i32, %arg1: i32, %arg2: memref<2xi32, #tpu.memory_space<smem>>) -> (i32, i32, i32) {
    %c0_i32 = arith.constant 0 : i32
    %c0_i32_0 = arith.constant 0 : i32
    %c0_i32_1 = arith.constant 0 : i32
    return %arg1, %c0_i32, %c0_i32_0 : i32, i32, i32
  }
  func.func @transform_2(%arg0: i32, %arg1: i32, %arg2: memref<2xi32, #tpu.memory_space<smem>>) -> (i32, i32, i32) {
    %c0_i32 = arith.constant 0 : i32
    %c0_i32_0 = arith.constant 0 : i32
    %c0_i32_1 = arith.constant 0 : i32
    return %arg1, %c0_i32, %c0_i32_0 : i32, i32, i32
  }
  func.func @transform_3(%arg0: i32, %arg1: i32, %arg2: memref<2xi32, #tpu.memory_space<smem>>) -> (i32, i32, i32) {
    %c0_i32 = arith.constant 0 : i32
    %c0_i32_0 = arith.constant 0 : i32
    %c0_i32_1 = arith.constant 0 : i32
    return %arg1, %c0_i32, %c0_i32_0 : i32, i32, i32
  }
  func.func @transform_4(%arg0: i32, %arg1: i32, %arg2: memref<2xi32, #tpu.memory_space<smem>>) -> (i32, i32, i32) {
    %c0_i32 = arith.constant 0 : i32
    %c0_i32_0 = arith.constant 0 : i32
    %c0_i32_1 = arith.constant 0 : i32
    return %arg1, %c0_i32, %c0_i32_0 : i32, i32, i32
  }
  func.func @transform_5(%arg0: i32, %arg1: i32, %arg2: memref<2xi32, #tpu.memory_space<smem>>) -> (i32, i32, i32, i32) {
    %c0_i32 = arith.constant 0 : i32
    %c0_i32_0 = arith.constant 0 : i32
    %c0_i32_1 = arith.constant 0 : i32
    %c0_i32_2 = arith.constant 0 : i32
    return %arg1, %c0_i32, %c0_i32_0, %c0_i32_1 : i32, i32, i32, i32
  }
  func.func @transform_6(%arg0: i32, %arg1: i32, %arg2: memref<2xi32, #tpu.memory_space<smem>>) -> (i32, i32, i32, i32) {
    %c0_i32 = arith.constant 0 : i32
    %c0_i32_0 = arith.constant 0 : i32
    %c0_i32_1 = arith.constant 0 : i32
    %c0_i32_2 = arith.constant 0 : i32
    return %arg1, %c0_i32, %c0_i32_0, %c0_i32_1 : i32, i32, i32, i32
  }
  func.func @transform_7(%arg0: i32, %arg1: i32, %arg2: memref<2xi32, #tpu.memory_space<smem>>) -> (i32, i32, i32, i32) {
    %c0_i32 = arith.constant 0 : i32
    %c0_i32_0 = arith.constant 0 : i32
    %c0_i32_1 = arith.constant 0 : i32
    %c0_i32_2 = arith.constant 0 : i32
    return %arg1, %c0_i32, %c0_i32_0, %c0_i32_1 : i32, i32, i32, i32
  }
  func.func @transform_8(%arg0: i32, %arg1: i32, %arg2: memref<2xi32, #tpu.memory_space<smem>>) -> (i32, i32, i32) {
    %c0_i32 = arith.constant 0 : i32
    %c0_i32_0 = arith.constant 0 : i32
    %c0_i32_1 = arith.constant 0 : i32
    return %arg1, %c0_i32, %c0_i32_0 : i32, i32, i32
  }
  func.func @transform_9(%arg0: i32, %arg1: i32, %arg2: memref<2xi32, #tpu.memory_space<smem>>) -> (i32, i32, i32, i32) {
    %c0_i32 = arith.constant 0 : i32
    %c0_i32_0 = arith.constant 0 : i32
    %c0_i32_1 = arith.constant 0 : i32
    %c0_i32_2 = arith.constant 0 : i32
    return %arg1, %c0_i32, %c0_i32_0, %c0_i32_1 : i32, i32, i32, i32
  }
  func.func @transform_10(%arg0: i32, %arg1: i32, %arg2: memref<2xi32, #tpu.memory_space<smem>>) -> (i32, i32, i32) {
    %c0_i32 = arith.constant 0 : i32
    %c0_i32_0 = arith.constant 0 : i32
    %c0_i32_1 = arith.constant 0 : i32
    return %arg1, %c0_i32, %c0_i32_0 : i32, i32, i32
  }
  func.func @transform_11(%arg0: i32, %arg1: i32, %arg2: memref<2xi32, #tpu.memory_space<smem>>) -> (i32, i32) {
    %c0_i32 = arith.constant 0 : i32
    %c0_i32_0 = arith.constant 0 : i32
    %c0_i32_1 = arith.constant 0 : i32
    return %c0_i32, %c0_i32_0 : i32, i32
  }
  func.func @transform_12(%arg0: i32, %arg1: i32, %arg2: memref<2xi32, #tpu.memory_space<smem>>) -> (i32, i32) {
    %c0_i32 = arith.constant 0 : i32
    %c0_i32_0 = arith.constant 0 : i32
    %c0_i32_1 = arith.constant 0 : i32
    return %c0_i32, %c0_i32_0 : i32, i32
  }
  func.func @transform_13(%arg0: i32, %arg1: i32, %arg2: memref<2xi32, #tpu.memory_space<smem>>) -> (i32, i32, i32) {
    %c0_i32 = arith.constant 0 : i32
    %c0_i32_0 = arith.constant 0 : i32
    %c0_i32_1 = arith.constant 0 : i32
    return %arg0, %c0_i32, %c0_i32_0 : i32, i32, i32
  }
  func.func @transform_14(%arg0: i32, %arg1: i32, %arg2: memref<2xi32, #tpu.memory_space<smem>>) -> (i32, i32, i32) {
    %c0_i32 = arith.constant 0 : i32
    %c0_i32_0 = arith.constant 0 : i32
    %c0_i32_1 = arith.constant 0 : i32
    return %arg0, %c0_i32, %c0_i32_0 : i32, i32, i32
  }
}

</mosaic_0001>

<llo_original>
// kernel: _lambda_.1
$region0: #{_lambda_.1}
  #allocation0 [shape = 'u32[]', space=smem, size = 0x4, offset = 0x4, fixed_abs, tag = 'smem constant byte address 0x4 - core index']
  #allocation1 [shape = 'u32[144,128]{1,0:T(1,128)}', space=vmem, size = 0x12000, scoped, tag = 'internal scratch']
  #allocation2 [shape = 'f32[1,16,32]{2,1,0:T(8,128)}', space=vmem, size = 0x2000, scoped, tag = 'scratch operand']
  #allocation3 [shape = 's32[1]{0}', space=sflag, size = 0x4, scoped, tag = 'scoped memory for _lambda_.1']
  #allocation4 [shape = 'u8[512]{0}', space=smem, size = 0x200, scoped, tag = 'prefetched SMEM operand 0']
  %s0 = inlined_call_operand.hbm [shape: s32[2], index: 0, kind: input, shape index: {}]
  %s1 = inlined_call_operand.hbm [shape: f32[2,16,32], index: 1, kind: input, shape index: {}]
  %s2 = inlined_call_operand.hbm [shape: bf16[2,32,96], index: 2, kind: input, shape index: {}]
  %s3 = inlined_call_operand.hbm [shape: f32[2,1,96], index: 3, kind: input, shape index: {}]
  %s4 = inlined_call_operand.hbm [shape: bf16[2,32,32], index: 4, kind: input, shape index: {}]
  %s5 = inlined_call_operand.hbm [shape: f32[2,1,32], index: 5, kind: input, shape index: {}]
  %s6 = inlined_call_operand.hbm [shape: bf16[2,4,11,16], index: 6, kind: input, shape index: {}]
  %s7 = inlined_call_operand.hbm [shape: f32[2,2,2,32], index: 7, kind: input, shape index: {}]
  %s8 = inlined_call_operand.hbm [shape: bf16[2,3,32,64], index: 8, kind: input, shape index: {}]
  %s9 = inlined_call_operand.hbm [shape: f32[2,1,64], index: 9, kind: input, shape index: {}]
  %s10 = inlined_call_operand.hbm [shape: bf16[2,3,64,32], index: 10, kind: input, shape index: {}]
  %s11 = inlined_call_operand.hbm [shape: f32[2,1,32], index: 11, kind: input, shape index: {}]
  %s12 = inlined_call_operand.hbm [shape: bf16[32,128], index: 12, kind: input, shape index: {}]
  %s13 = inlined_call_operand.hbm [shape: f32[1,128], index: 13, kind: input, shape index: {}]
  %s14 = inlined_call_operand.hbm [shape: f32[2,16,32], index: 14, kind: output, shape index: {0}]
  %s15 = inlined_call_operand.hbm [shape: f32[2,16,128], index: 15, kind: output, shape index: {1}]
  %16 = xla_tuple %s14, %s15
  %s17 = sld [smem:[#allocation0]]
  $region153: #{_lambda_.1} parent=0
    _
  %s19 = ssub.s32 1, %s17
  %s20 = scalar_select 0, %s19, %s17
  %22 = dma.hbm_to_smem %s0, 16, [#allocation4], [#allocation3]
  %23 = dma.done [#allocation3], 16
  %24 = sfence
  $region1: #{_lambda_.1} parent=0
    #allocation5 [shape = 'u8[16384]{0}', space=vmem, size = 0x4000, scoped, tag = 'input window, operand 1']
    #allocation6 [shape = 's32[2]{0}', space=sflag, size = 0x8, scoped, tag = 'scoped memory for _lambda_.1']
    #allocation7 [shape = 's32[2]{0}', space=sflag, size = 0x8, scoped, tag = 'scoped memory for _lambda_.1']
    #allocation8 [shape = 'u8[16384]{0}', space=vmem, size = 0x4000, scoped, tag = 'input window, operand 2']
    #allocation9 [shape = 's32[2]{0}', space=sflag, size = 0x8, scoped, tag = 'scoped memory for _lambda_.1']
    #allocation10 [shape = 'u8[1024]{0}', space=vmem, size = 0x400, scoped, tag = 'input window, operand 3']
    #allocation11 [shape = 'u8[16384]{0}', space=vmem, size = 0x4000, scoped, tag = 'input window, operand 4']
    #allocation12 [shape = 's32[2]{0}', space=sflag, size = 0x8, scoped, tag = 'scoped memory for _lambda_.1']
    #allocation13 [shape = 'u8[1024]{0}', space=vmem, size = 0x400, scoped, tag = 'input window, operand 5']
    #allocation14 [shape = 'u8[32768]{0}', space=vmem, size = 0x8000, scoped, tag = 'input window, operand 6']
    #allocation15 [shape = 's32[2]{0}', space=sflag, size = 0x8, scoped, tag = 'scoped memory for _lambda_.1']
    #allocation16 [shape = 'u8[4096]{0}', space=vmem, size = 0x1000, scoped, tag = 'input window, operand 7']
    #allocation17 [shape = 'u8[49152]{0}', space=vmem, size = 0xc000, scoped, tag = 'input window, operand 8']
    #allocation18 [shape = 's32[2]{0}', space=sflag, size = 0x8, scoped, tag = 'scoped memory for _lambda_.1']
    #allocation19 [shape = 'u8[1024]{0}', space=vmem, size = 0x400, scoped, tag = 'input window, operand 9']
    #allocation20 [shape = 'u8[98304]{0}', space=vmem, size = 0x18000, scoped, tag = 'input window, operand 10']
    #allocation21 [shape = 's32[2]{0}', space=sflag, size = 0x8, scoped, tag = 'scoped memory for _lambda_.1']
    #allocation22 [shape = 'u8[1024]{0}', space=vmem, size = 0x400, scoped, tag = 'input window, operand 11']
    #allocation23 [shape = 'u8[8192]{0}', space=vmem, size = 0x2000, scoped, tag = 'input window, operand 12, single buffered']
    #allocation24 [shape = 's32[1]{0}', space=sflag, size = 0x4, scoped, tag = 'scoped memory for _lambda_.1']
    #allocation25 [shape = 'u8[512]{0}', space=vmem, size = 0x400, scoped, tag = 'input window, operand 13, single buffered']
    #allocation26 [shape = 'u8[16384]{0}', space=vmem, size = 0x4000, scoped, tag = 'output window, operand 0']
    #allocation27 [shape = 'u8[16384]{0}', space=vmem, size = 0x4000, scoped, tag = 'output window, operand 1']
    #allocation28 [shape = 's32[2]{0}', space=sflag, size = 0x8, scoped, tag = 'scoped memory for _lambda_.1']
    %25 = vsyncpa [#allocation6], 0
    %s26 = scalar_lea.sflag [#allocation6], 1
    %27 = vsyncpa %s26, 0
    %28 = vsyncpa [#allocation9], 0
    %s29 = scalar_lea.sflag [#allocation9], 1
    %30 = vsyncpa %s29, 0
    %31 = vsyncpa [#allocation12], 0
    %s32 = scalar_lea.sflag [#allocation12], 1
    %33 = vsyncpa %s32, 0
    %34 = vsyncpa [#allocation15], 0
    %s35 = scalar_lea.sflag [#allocation15], 1
    %36 = vsyncpa %s35, 0
    %37 = vsyncpa [#allocation18], 0
    %s38 = scalar_lea.sflag [#allocation18], 1
    %39 = vsyncpa %s38, 0
    %40 = vsyncpa [#allocation21], 0
    %s41 = scalar_lea.sflag [#allocation21], 1
    %42 = vsyncpa %s41, 0
    %43 = vsyncpa [#allocation24], 0
    %44 = vsyncpa [#allocation7], 0
    %s45 = scalar_lea.sflag [#allocation7], 1
    %46 = vsyncpa %s45, 0
    %47 = vsyncpa [#allocation28], 0
    %s48 = scalar_lea.sflag [#allocation28], 1
    %49 = vsyncpa %s48, 0
    loop: start=0, step=1, limit=6
    $region2: #{_lambda_.1} parent=1 // loop_pre_header
      _
    $region3: #{_lambda_.1} parent=1 // loop_header
      %s51 = sphi 0, %s55
      %p52 = scmp.ge.s32.totalorder %s51, 6
      %s58 = sphi 0, %s70
      %s59 = sphi 0, %s66
      %s60 = sphi 0, %s58
      %s61 = sphi 0, %s59
      %s62 = sphi 0, %s60
      %s63 = sphi 0, %s61
      %s73 = sphi 0, %s75
      %s76 = sphi 0, %s73
      %s77 = sphi 0, %s76
      %s93 = sphi 0, %s77
      %s99 = sphi 0, %s101
      %s102 = sphi 0, %s99
      %s103 = sphi 0, %s102
      %s119 = sphi 0, %s103
      %s125 = sphi 0, %s127
      %s128 = sphi 0, %s125
      %s129 = sphi 0, %s128
      %s145 = sphi 0, %s129
      %s151 = sphi 0, %s153
      %s154 = sphi 0, %s151
      %s155 = sphi 0, %s154
      %s171 = sphi 0, %s155
      %s177 = sphi 0, %s179
      %s180 = sphi 0, %s177
      %s181 = sphi 0, %s180
      %s197 = sphi 0, %s181
      %s203 = sphi 0, %s205
      %s206 = sphi 0, %s203
      %s207 = sphi 0, %s206
      %s223 = sphi 0, %s207
      %s229 = sphi 0, %s231
      %s232 = sphi 0, %s229
      %s233 = sphi 0, %s232
      %s249 = sphi 0, %s233
      %s255 = sphi 0, %s257
      %s258 = sphi 0, %s255
      %s259 = sphi 0, %s258
      %s275 = sphi 0, %s259
      %s281 = sphi 0, %s283
      %s284 = sphi 0, %s281
      %s285 = sphi 0, %s284
      %s301 = sphi 0, %s285
      %s307 = sphi 0, %s309
      %s310 = sphi 0, %s307
      %s311 = sphi 0, %s310
      %s327 = sphi 0, %s311
      %s333 = sphi 0, %s335
      %s336 = sphi 0, %s333
      %s337 = sphi 0, %s336
      %s353 = sphi 0, %s337
      %s357 = sphi 0, %s357
      %s359 = sphi 0, %s357
      %s360 = sphi 0, %s359
      %s374 = sphi 0, %s360
      %s378 = sphi 0, %s378
      %s380 = sphi 0, %s378
      %s381 = sphi 0, %s380
      %s395 = sphi 0, %s381
      %s401 = sphi 0, %s403
      %s404 = sphi 0, %s401
      %s405 = sphi 0, %s404
      %s421 = sphi 0, %s405
      %s427 = sphi 0, %s429
      %s430 = sphi 0, %s427
      %s431 = sphi 0, %s430
      %s447 = sphi 0, %s431
    $region4: #{_lambda_.1} parent=1 // loop_header_branch
      %54 = sbr.rel (%p52) target = $region8
    $region5: #{_lambda_.1} parent=1 // loop_body
      %s56 = ssub.s32 %s51, 1
      %s57 = ssub.s32 %s51, 2
      %s64 = sadd.s32 1, %s59
      %p65 = scmp.ge.s32.totalorder %s64, 2
      %s66 = scalar_select %p65, 0, %s64
      %s67 = sadd.s32 1, %s58
      %s68 = scalar_select %p65, %s67, %s58
      %p69 = scmp.ge.s32.totalorder %s68, 2
      %s70 = scalar_select %p69, 0, %s68
      %s71 = ssub.s32 %s58, %s70
      %p72 = scmp.eq.s32.totalorder %s71, 0
      %s74 = sadd.s32 %s73, 1
      %s75 = scalar_select %p72, %s73, %s74
      %p78 = pneg %p72
      %p79 = scmp.eq.s32.totalorder %s51, 3
      %p80 = por %p78, %p79
      %p81 = scmp.ne.s32.totalorder %s73, %s76
      %p82 = scmp.eq.s32.totalorder %s51, 0
      %p83 = por %p81, %p82
      %p84 = scmp.ne.s32.totalorder %s73, %s76
      %p85 = scmp.eq.s32.totalorder %s56, 3
      %p86 = por %p84, %p85
      %p87 = scmp.ne.s32.totalorder %s76, %s77
      %p88 = scmp.eq.s32.totalorder %s56, 0
      %p89 = por %p87, %p88
      %p90 = scmp.ne.s32.totalorder %s76, %s77
      %p91 = scmp.eq.s32.totalorder %s57, 3
      %p92 = por %p90, %p91
      %p94 = scmp.ne.s32.totalorder %s77, %s93
      %p95 = scmp.eq.s32.totalorder %s57, 0
      %p96 = por %p94, %p95
      %s97 = ssub.s32 %s59, %s66
      %p98 = scmp.eq.s32.totalorder %s97, 0
      %s100 = sadd.s32 %s99, 1
      %s101 = scalar_select %p98, %s99, %s100
      %p104 = pneg %p98
      %p105 = scmp.eq.s32.totalorder %s51, 3
      %p106 = por %p104, %p105
      %p107 = scmp.ne.s32.totalorder %s99, %s102
      %p108 = scmp.eq.s32.totalorder %s51, 0
      %p109 = por %p107, %p108
      %p110 = scmp.ne.s32.totalorder %s99, %s102
      %p111 = scmp.eq.s32.totalorder %s56, 3
      %p112 = por %p110, %p111
      %p113 = scmp.ne.s32.totalorder %s102, %s103
      %p114 = scmp.eq.s32.totalorder %s56, 0
      %p115 = por %p113, %p114
      %p116 = scmp.ne.s32.totalorder %s102, %s103
      %p117 = scmp.eq.s32.totalorder %s57, 3
      %p118 = por %p116, %p117
      %p120 = scmp.ne.s32.totalorder %s103, %s119
      %p121 = scmp.eq.s32.totalorder %s57, 0
      %p122 = por %p120, %p121
      %s123 = ssub.s32 %s59, %s66
      %p124 = scmp.eq.s32.totalorder %s123, 0
      %s126 = sadd.s32 %s125, 1
      %s127 = scalar_select %p124, %s125, %s126
      %p130 = pneg %p124
      %p131 = scmp.eq.s32.totalorder %s51, 3
      %p132 = por %p130, %p131
      %p133 = scmp.ne.s32.totalorder %s125, %s128
      %p134 = scmp.eq.s32.totalorder %s51, 0
      %p135 = por %p133, %p134
      %p136 = scmp.ne.s32.totalorder %s125, %s128
      %p137 = scmp.eq.s32.totalorder %s56, 3
      %p138 = por %p136, %p137
      %p139 = scmp.ne.s32.totalorder %s128, %s129
      %p140 = scmp.eq.s32.totalorder %s56, 0
      %p141 = por %p139, %p140
      %p142 = scmp.ne.s32.totalorder %s128, %s129
      %p143 = scmp.eq.s32.totalorder %s57, 3
      %p144 = por %p142, %p143
      %p146 = scmp.ne.s32.totalorder %s129, %s145
      %p147 = scmp.eq.s32.totalorder %s57, 0
      %p148 = por %p146, %p147
      %s149 = ssub.s32 %s59, %s66
      %p150 = scmp.eq.s32.totalorder %s149, 0
      %s152 = sadd.s32 %s151, 1
      %s153 = scalar_select %p150, %s151, %s152
      %p156 = pneg %p150
      %p157 = scmp.eq.s32.totalorder %s51, 3
      %p158 = por %p156, %p157
      %p159 = scmp.ne.s32.totalorder %s151, %s154
      %p160 = scmp.eq.s32.totalorder %s51, 0
      %p161 = por %p159, %p160
      %p162 = scmp.ne.s32.totalorder %s151, %s154
      %p163 = scmp.eq.s32.totalorder %s56, 3
      %p164 = por %p162, %p163
      %p165 = scmp.ne.s32.totalorder %s154, %s155
      %p166 = scmp.eq.s32.totalorder %s56, 0
      %p167 = por %p165, %p166
      %p168 = scmp.ne.s32.totalorder %s154, %s155
      %p169 = scmp.eq.s32.totalorder %s57, 3
      %p170 = por %p168, %p169
      %p172 = scmp.ne.s32.totalorder %s155, %s171
      %p173 = scmp.eq.s32.totalorder %s57, 0
      %p174 = por %p172, %p173
      %s175 = ssub.s32 %s59, %s66
      %p176 = scmp.eq.s32.totalorder %s175, 0
      %s178 = sadd.s32 %s177, 1
      %s179 = scalar_select %p176, %s177, %s178
      %p182 = pneg %p176
      %p183 = scmp.eq.s32.totalorder %s51, 3
      %p184 = por %p182, %p183
      %p185 = scmp.ne.s32.totalorder %s177, %s180
      %p186 = scmp.eq.s32.totalorder %s51, 0
      %p187 = por %p185, %p186
      %p188 = scmp.ne.s32.totalorder %s177, %s180
      %p189 = scmp.eq.s32.totalorder %s56, 3
      %p190 = por %p188, %p189
      %p191 = scmp.ne.s32.totalorder %s180, %s181
      %p192 = scmp.eq.s32.totalorder %s56, 0
      %p193 = por %p191, %p192
      %p194 = scmp.ne.s32.totalorder %s180, %s181
      %p195 = scmp.eq.s32.totalorder %s57, 3
      %p196 = por %p194, %p195
      %p198 = scmp.ne.s32.totalorder %s181, %s197
      %p199 = scmp.eq.s32.totalorder %s57, 0
      %p200 = por %p198, %p199
      %s201 = ssub.s32 %s59, %s66
      %p202 = scmp.eq.s32.totalorder %s201, 0
      %s204 = sadd.s32 %s203, 1
      %s205 = scalar_select %p202, %s203, %s204
      %p208 = pneg %p202
      %p209 = scmp.eq.s32.totalorder %s51, 3
      %p210 = por %p208, %p209
      %p211 = scmp.ne.s32.totalorder %s203, %s206
      %p212 = scmp.eq.s32.totalorder %s51, 0
      %p213 = por %p211, %p212
      %p214 = scmp.ne.s32.totalorder %s203, %s206
      %p215 = scmp.eq.s32.totalorder %s56, 3
      %p216 = por %p214, %p215
      %p217 = scmp.ne.s32.totalorder %s206, %s207
      %p218 = scmp.eq.s32.totalorder %s56, 0
      %p219 = por %p217, %p218
      %p220 = scmp.ne.s32.totalorder %s206, %s207
      %p221 = scmp.eq.s32.totalorder %s57, 3
      %p222 = por %p220, %p221
      %p224 = scmp.ne.s32.totalorder %s207, %s223
      %p225 = scmp.eq.s32.totalorder %s57, 0
      %p226 = por %p224, %p225
      %s227 = ssub.s32 %s59, %s66
      %p228 = scmp.eq.s32.totalorder %s227, 0
      %s230 = sadd.s32 %s229, 1
      %s231 = scalar_select %p228, %s229, %s230
      %p234 = pneg %p228
      %p235 = scmp.eq.s32.totalorder %s51, 3
      %p236 = por %p234, %p235
      %p237 = scmp.ne.s32.totalorder %s229, %s232
      %p238 = scmp.eq.s32.totalorder %s51, 0
      %p239 = por %p237, %p238
      %p240 = scmp.ne.s32.totalorder %s229, %s232
      %p241 = scmp.eq.s32.totalorder %s56, 3
      %p242 = por %p240, %p241
      %p243 = scmp.ne.s32.totalorder %s232, %s233
      %p244 = scmp.eq.s32.totalorder %s56, 0
      %p245 = por %p243, %p244
      %p246 = scmp.ne.s32.totalorder %s232, %s233
      %p247 = scmp.eq.s32.totalorder %s57, 3
      %p248 = por %p246, %p247
      %p250 = scmp.ne.s32.totalorder %s233, %s249
      %p251 = scmp.eq.s32.totalorder %s57, 0
      %p252 = por %p250, %p251
      %s253 = ssub.s32 %s59, %s66
      %p254 = scmp.eq.s32.totalorder %s253, 0
      %s256 = sadd.s32 %s255, 1
      %s257 = scalar_select %p254, %s255, %s256
      %p260 = pneg %p254
      %p261 = scmp.eq.s32.totalorder %s51, 3
      %p262 = por %p260, %p261
      %p263 = scmp.ne.s32.totalorder %s255, %s258
      %p264 = scmp.eq.s32.totalorder %s51, 0
      %p265 = por %p263, %p264
      %p266 = scmp.ne.s32.totalorder %s255, %s258
      %p267 = scmp.eq.s32.totalorder %s56, 3
      %p268 = por %p266, %p267
      %p269 = scmp.ne.s32.totalorder %s258, %s259
      %p270 = scmp.eq.s32.totalorder %s56, 0
      %p271 = por %p269, %p270
      %p272 = scmp.ne.s32.totalorder %s258, %s259
      %p273 = scmp.eq.s32.totalorder %s57, 3
      %p274 = por %p272, %p273
      %p276 = scmp.ne.s32.totalorder %s259, %s275
      %p277 = scmp.eq.s32.totalorder %s57, 0
      %p278 = por %p276, %p277
      %s279 = ssub.s32 %s59, %s66
      %p280 = scmp.eq.s32.totalorder %s279, 0
      %s282 = sadd.s32 %s281, 1
      %s283 = scalar_select %p280, %s281, %s282
      %p286 = pneg %p280
      %p287 = scmp.eq.s32.totalorder %s51, 3
      %p288 = por %p286, %p287
      %p289 = scmp.ne.s32.totalorder %s281, %s284
      %p290 = scmp.eq.s32.totalorder %s51, 0
      %p291 = por %p289, %p290
      %p292 = scmp.ne.s32.totalorder %s281, %s284
      %p293 = scmp.eq.s32.totalorder %s56, 3
      %p294 = por %p292, %p293
      %p295 = scmp.ne.s32.totalorder %s284, %s285
      %p296 = scmp.eq.s32.totalorder %s56, 0
      %p297 = por %p295, %p296
      %p298 = scmp.ne.s32.totalorder %s284, %s285
      %p299 = scmp.eq.s32.totalorder %s57, 3
      %p300 = por %p298, %p299
      %p302 = scmp.ne.s32.totalorder %s285, %s301
      %p303 = scmp.eq.s32.totalorder %s57, 0
      %p304 = por %p302, %p303
      %s305 = ssub.s32 %s59, %s66
      %p306 = scmp.eq.s32.totalorder %s305, 0
      %s308 = sadd.s32 %s307, 1
      %s309 = scalar_select %p306, %s307, %s308
      %p312 = pneg %p306
      %p313 = scmp.eq.s32.totalorder %s51, 3
      %p314 = por %p312, %p313
      %p315 = scmp.ne.s32.totalorder %s307, %s310
      %p316 = scmp.eq.s32.totalorder %s51, 0
      %p317 = por %p315, %p316
      %p318 = scmp.ne.s32.totalorder %s307, %s310
      %p319 = scmp.eq.s32.totalorder %s56, 3
      %p320 = por %p318, %p319
      %p321 = scmp.ne.s32.totalorder %s310, %s311
      %p322 = scmp.eq.s32.totalorder %s56, 0
      %p323 = por %p321, %p322
      %p324 = scmp.ne.s32.totalorder %s310, %s311
      %p325 = scmp.eq.s32.totalorder %s57, 3
      %p326 = por %p324, %p325
      %p328 = scmp.ne.s32.totalorder %s311, %s327
      %p329 = scmp.eq.s32.totalorder %s57, 0
      %p330 = por %p328, %p329
      %s331 = ssub.s32 %s59, %s66
      %p332 = scmp.eq.s32.totalorder %s331, 0
      %s334 = sadd.s32 %s333, 1
      %s335 = scalar_select %p332, %s333, %s334
      %p338 = pneg %p332
      %p339 = scmp.eq.s32.totalorder %s51, 3
      %p340 = por %p338, %p339
      %p341 = scmp.ne.s32.totalorder %s333, %s336
      %p342 = scmp.eq.s32.totalorder %s51, 0
      %p343 = por %p341, %p342
      %p344 = scmp.ne.s32.totalorder %s333, %s336
      %p345 = scmp.eq.s32.totalorder %s56, 3
      %p346 = por %p344, %p345
      %p347 = scmp.ne.s32.totalorder %s336, %s337
      %p348 = scmp.eq.s32.totalorder %s56, 0
      %p349 = por %p347, %p348
      %p350 = scmp.ne.s32.totalorder %s336, %s337
      %p351 = scmp.eq.s32.totalorder %s57, 3
      %p352 = por %p350, %p351
      %p354 = scmp.ne.s32.totalorder %s337, %s353
      %p355 = scmp.eq.s32.totalorder %s57, 0
      %p356 = por %p354, %p355
      %s358 = sadd.s32 %s357, 1
      %p361 = scmp.eq.s32.totalorder %s51, 3
      %p362 = scmp.ne.s32.totalorder %s357, %s359
      %p363 = scmp.eq.s32.totalorder %s51, 0
      %p364 = por %p362, %p363
      %p365 = scmp.ne.s32.totalorder %s357, %s359
      %p366 = scmp.eq.s32.totalorder %s56, 3
      %p367 = por %p365, %p366
      %p368 = scmp.ne.s32.totalorder %s359, %s360
      %p369 = scmp.eq.s32.totalorder %s56, 0
      %p370 = por %p368, %p369
      %p371 = scmp.ne.s32.totalorder %s359, %s360
      %p372 = scmp.eq.s32.totalorder %s57, 3
      %p373 = por %p371, %p372
      %p375 = scmp.ne.s32.totalorder %s360, %s374
      %p376 = scmp.eq.s32.totalorder %s57, 0
      %p377 = por %p375, %p376
      %s379 = sadd.s32 %s378, 1
      %p382 = scmp.eq.s32.totalorder %s51, 3
      %p383 = scmp.ne.s32.totalorder %s378, %s380
      %p384 = scmp.eq.s32.totalorder %s51, 0
      %p385 = por %p383, %p384
      %p386 = scmp.ne.s32.totalorder %s378, %s380
      %p387 = scmp.eq.s32.totalorder %s56, 3
      %p388 = por %p386, %p387
      %p389 = scmp.ne.s32.totalorder %s380, %s381
      %p390 = scmp.eq.s32.totalorder %s56, 0
      %p391 = por %p389, %p390
      %p392 = scmp.ne.s32.totalorder %s380, %s381
      %p393 = scmp.eq.s32.totalorder %s57, 3
      %p394 = por %p392, %p393
      %p396 = scmp.ne.s32.totalorder %s381, %s395
      %p397 = scmp.eq.s32.totalorder %s57, 0
      %p398 = por %p396, %p397
      %s399 = ssub.s32 %s58, %s70
      %p400 = scmp.eq.s32.totalorder %s399, 0
      %s402 = sadd.s32 %s401, 1
      %s403 = scalar_select %p400, %s401, %s402
      %p406 = pneg %p400
      %p407 = scmp.eq.s32.totalorder %s51, 3
      %p408 = por %p406, %p407
      %p409 = scmp.ne.s32.totalorder %s401, %s404
      %p410 = scmp.eq.s32.totalorder %s51, 0
      %p411 = por %p409, %p410
      %p412 = scmp.ne.s32.totalorder %s401, %s404
      %p413 = scmp.eq.s32.totalorder %s56, 3
      %p414 = por %p412, %p413
      %p415 = scmp.ne.s32.totalorder %s404, %s405
      %p416 = scmp.eq.s32.totalorder %s56, 0
      %p417 = por %p415, %p416
      %p418 = scmp.ne.s32.totalorder %s404, %s405
      %p419 = scmp.eq.s32.totalorder %s57, 3
      %p420 = por %p418, %p419
      %p422 = scmp.ne.s32.totalorder %s405, %s421
      %p423 = scmp.eq.s32.totalorder %s57, 0
      %p424 = por %p422, %p423
      %s425 = ssub.s32 %s58, %s70
      %p426 = scmp.eq.s32.totalorder %s425, 0
      %s428 = sadd.s32 %s427, 1
      %s429 = scalar_select %p426, %s427, %s428
      %p432 = pneg %p426
      %p433 = scmp.eq.s32.totalorder %s51, 3
      %p434 = por %p432, %p433
      %p435 = scmp.ne.s32.totalorder %s427, %s430
      %p436 = scmp.eq.s32.totalorder %s51, 0
      %p437 = por %p435, %p436
      %p438 = scmp.ne.s32.totalorder %s427, %s430
      %p439 = scmp.eq.s32.totalorder %s56, 3
      %p440 = por %p438, %p439
      %p441 = scmp.ne.s32.totalorder %s430, %s431
      %p442 = scmp.eq.s32.totalorder %s56, 0
      %p443 = por %p441, %p442
      %p444 = scmp.ne.s32.totalorder %s430, %s431
      %p445 = scmp.eq.s32.totalorder %s57, 3
      %p446 = por %p444, %p445
      %p448 = scmp.ne.s32.totalorder %s431, %s447
      %p449 = scmp.eq.s32.totalorder %s57, 0
      %p450 = por %p448, %p449
      %p451 = scmp.le.s32.totalorder 1, %s51
      %p452 = scmp.lt.s32.totalorder %s51, 5
      %p453 = pnand %p451, %p452
      %p454 = pneg %p453
      // Predicated region
      $region9: #{_lambda_.1} parent=5 // pred_check
        _
      $region10: #{_lambda_.1} parent=5 // pred_check_branch
        %456 = sbr.rel (%p453) target = $region12
      $region11: #{_lambda_.1} parent=5 // pred_region
        %s457 = ssub.s32 %s51, 1
        // Predicated region
        $region13: #{_lambda_.1} parent=11 // pred_check
          %p458 = pneg %p370
        $region14: #{_lambda_.1} parent=11 // pred_check_branch
          %460 = sbr.rel (%p458) target = $region16
        $region15: #{_lambda_.1} parent=11 // pred_region
          %s462 = ssub.s32 256, 256
          %463 = vsyncadd [#allocation24], %s462
          %s464 = sshll.u32 [#allocation23], 4
          %s465 = int_to_ptr.vmem [resolvable:$true] %s464
          %470 = dma.hbm_to_vmem [thread:$0]  %s12, 256, %s465, [#allocation24], 64, 64, 4
        $region16: #{_lambda_.1} parent=11 // pred_fallthru
          _
        // Predicated region
        $region17: #{_lambda_.1} parent=11 // pred_check
          %p471 = pneg %p391
        $region18: #{_lambda_.1} parent=11 // pred_check_branch
          %473 = sbr.rel (%p471) target = $region20
        $region19: #{_lambda_.1} parent=11 // pred_region
          %s475 = ssub.s32 16, 16
          %476 = vsyncadd [#allocation24], %s475
          %s478 = sshll.u32 [#allocation25], 4
          %s479 = int_to_ptr.vmem [resolvable:$true] %s478
          %481 = dma.hbm_to_vmem [thread:$0]  %s13, 16, %s479, [#allocation24]
        $region20: #{_lambda_.1} parent=11 // pred_fallthru
          _
      $region12: #{_lambda_.1} parent=5 // pred_fallthru
        _
      %p482 = scmp.lt.s32.totalorder %s51, 4
      // Predicated region
      $region21: #{_lambda_.1} parent=5 // pred_check
        %p483 = pneg %p482
      $region22: #{_lambda_.1} parent=5 // pred_check_branch
        %485 = sbr.rel (%p483) target = $region24
      $region23: #{_lambda_.1} parent=5 // pred_region
        // Predicated region
        $region25: #{_lambda_.1} parent=23 // pred_check
          %p486 = pneg %p83
        $region26: #{_lambda_.1} parent=23 // pred_check_branch
          %488 = sbr.rel (%p486) target = $region28
        $region27: #{_lambda_.1} parent=23 // pred_region
          %s489 = sand.u32 %s73, 1
          %s490 = scalar_lea.sflag [#allocation6], %s489
          %s491 = sand.u32 %s73, 1
          %s492 = smul.addr %s491, 16
          %s493 = scalar_lea.vmem [#allocation5], %s492
          %s495 = ssub.s32 256, 256
          %496 = vsyncadd %s490, %s495
          %s497 = smul.addr %s58, 2
          %s498 = smul.addr %s497, 128
          %s499 = scalar_lea.hbm %s1, %s498
          %s500 = sshll.u32 %s493, 4
          %s501 = int_to_ptr.vmem [resolvable:$true] %s500
          %506 = dma.hbm_to_vmem [thread:$0]  %s499, 256, %s501, %s490, 128, 128, 8
        $region28: #{_lambda_.1} parent=23 // pred_fallthru
          _
        // Predicated region
        $region29: #{_lambda_.1} parent=23 // pred_check
          %p507 = pneg %p109
        $region30: #{_lambda_.1} parent=23 // pred_check_branch
          %509 = sbr.rel (%p507) target = $region32
        $region31: #{_lambda_.1} parent=23 // pred_region
          %s510 = sand.u32 %s51, 1
          %s511 = scalar_lea.sflag [#allocation9], %s510
          %s512 = sand.u32 %s99, 1
          %s513 = smul.addr %s512, 16
          %s514 = scalar_lea.vmem [#allocation8], %s513
          %s516 = ssub.s32 256, 256
          %517 = vsyncadd %s511, %s516
          %s518 = smul.addr %s59, 4
          %s519 = smul.addr %s518, 64
          %s520 = scalar_lea.hbm %s2, %s519
          %s521 = sshll.u32 %s514, 4
          %s522 = int_to_ptr.vmem [resolvable:$true] %s521
          %527 = dma.hbm_to_vmem [thread:$0]  %s520, 256, %s522, %s511, 64, 64, 4
        $region32: #{_lambda_.1} parent=23 // pred_fallthru
          _
        // Predicated region
        $region33: #{_lambda_.1} parent=23 // pred_check
          %p528 = pneg %p135
        $region34: #{_lambda_.1} parent=23 // pred_check_branch
          %530 = sbr.rel (%p528) target = $region36
        $region35: #{_lambda_.1} parent=23 // pred_region
          %s531 = sand.u32 %s51, 1
          %s532 = scalar_lea.sflag [#allocation9], %s531
          %s533 = sand.u32 %s125, 1
          %s534 = scalar_lea.vmem [#allocation10], %s533
          %s536 = ssub.s32 16, 16
          %537 = vsyncadd %s532, %s536
          %s538 = smul.addr %s59, 16
          %s539 = scalar_lea.hbm %s3, %s538
          %s541 = sshll.u32 %s534, 4
          %s542 = int_to_ptr.vmem [resolvable:$true] %s541
          %544 = dma.hbm_to_vmem [thread:$0]  %s539, 16, %s542, %s532
        $region36: #{_lambda_.1} parent=23 // pred_fallthru
          _
        // Predicated region
        $region37: #{_lambda_.1} parent=23 // pred_check
          %p545 = pneg %p161
        $region38: #{_lambda_.1} parent=23 // pred_check_branch
          %547 = sbr.rel (%p545) target = $region40
        $region39: #{_lambda_.1} parent=23 // pred_region
          %s548 = sand.u32 %s51, 1
          %s549 = scalar_lea.sflag [#allocation12], %s548
          %s550 = sand.u32 %s151, 1
          %s551 = smul.addr %s550, 16
          %s552 = scalar_lea.vmem [#allocation11], %s551
          %s554 = ssub.s32 256, 256
          %555 = vsyncadd %s549, %s554
          %s556 = smul.addr %s59, 4
          %s557 = smul.addr %s556, 64
          %s558 = scalar_lea.hbm %s4, %s557
          %s559 = sshll.u32 %s552, 4
          %s560 = int_to_ptr.vmem [resolvable:$true] %s559
          %565 = dma.hbm_to_vmem [thread:$0]  %s558, 256, %s560, %s549, 64, 64, 4
        $region40: #{_lambda_.1} parent=23 // pred_fallthru
          _
        // Predicated region
        $region41: #{_lambda_.1} parent=23 // pred_check
          %p566 = pneg %p187
        $region42: #{_lambda_.1} parent=23 // pred_check_branch
          %568 = sbr.rel (%p566) target = $region44
        $region43: #{_lambda_.1} parent=23 // pred_region
          %s569 = sand.u32 %s51, 1
          %s570 = scalar_lea.sflag [#allocation12], %s569
          %s571 = sand.u32 %s177, 1
          %s572 = scalar_lea.vmem [#allocation13], %s571
          %s574 = ssub.s32 16, 16
          %575 = vsyncadd %s570, %s574
          %s576 = smul.addr %s59, 16
          %s577 = scalar_lea.hbm %s5, %s576
          %s579 = sshll.u32 %s572, 4
          %s580 = int_to_ptr.vmem [resolvable:$true] %s579
          %582 = dma.hbm_to_vmem [thread:$0]  %s577, 16, %s580, %s570
        $region44: #{_lambda_.1} parent=23 // pred_fallthru
          _
        // Predicated region
        $region45: #{_lambda_.1} parent=23 // pred_check
          %p583 = pneg %p213
        $region46: #{_lambda_.1} parent=23 // pred_check_branch
          %585 = sbr.rel (%p583) target = $region48
        $region47: #{_lambda_.1} parent=23 // pred_region
          %s586 = sand.u32 %s51, 1
          %s587 = scalar_lea.sflag [#allocation15], %s586
          %s588 = sand.u32 %s203, 1
          %s589 = smul.addr %s588, 32
          %s590 = scalar_lea.vmem [#allocation14], %s589
          %s592 = ssub.s32 512, 512
          %593 = vsyncadd %s587, %s592
          %s594 = smul.addr %s59, 8
          %s595 = smul.addr %s594, 64
          %s596 = scalar_lea.hbm %s6, %s595
          %s597 = sshll.u32 %s590, 4
          %s598 = int_to_ptr.vmem [resolvable:$true] %s597
          %603 = dma.hbm_to_vmem [thread:$0]  %s596, 512, %s598, %s587, 64, 64, 4
        $region48: #{_lambda_.1} parent=23 // pred_fallthru
          _
        // Predicated region
        $region49: #{_lambda_.1} parent=23 // pred_check
          %p604 = pneg %p239
        $region50: #{_lambda_.1} parent=23 // pred_check_branch
          %606 = sbr.rel (%p604) target = $region52
        $region51: #{_lambda_.1} parent=23 // pred_region
          %s607 = sand.u32 %s51, 1
          %s608 = scalar_lea.sflag [#allocation15], %s607
          %s609 = sand.u32 %s229, 1
          %s610 = smul.addr %s609, 4
          %s611 = scalar_lea.vmem [#allocation16], %s610
          %s613 = ssub.s32 64, 64
          %614 = vsyncadd %s608, %s613
          %s615 = smul.addr %s59, 2
          %s616 = smul.addr %s615, 32
          %s617 = scalar_lea.hbm %s7, %s616
          %s618 = sshll.u32 %s611, 4
          %s619 = int_to_ptr.vmem [resolvable:$true] %s618
          %624 = dma.hbm_to_vmem [thread:$0]  %s617, 64, %s619, %s608, 32, 32, 2
        $region52: #{_lambda_.1} parent=23 // pred_fallthru
          _
        // Predicated region
        $region53: #{_lambda_.1} parent=23 // pred_check
          %p625 = pneg %p265
        $region54: #{_lambda_.1} parent=23 // pred_check_branch
          %627 = sbr.rel (%p625) target = $region56
        $region55: #{_lambda_.1} parent=23 // pred_region
          %s628 = sand.u32 %s51, 1
          %s629 = scalar_lea.sflag [#allocation18], %s628
          %s630 = sand.u32 %s255, 1
          %s631 = smul.addr %s630, 48
          %s632 = scalar_lea.vmem [#allocation17], %s631
          %s634 = ssub.s32 768, 768
          %635 = vsyncadd %s629, %s634
          %s636 = smul.addr %s59, 12
          %s637 = smul.addr %s636, 64
          %s638 = scalar_lea.hbm %s8, %s637
          %s639 = sshll.u32 %s632, 4
          %s640 = int_to_ptr.vmem [resolvable:$true] %s639
          %645 = dma.hbm_to_vmem [thread:$0]  %s638, 768, %s640, %s629, 64, 64, 4
        $region56: #{_lambda_.1} parent=23 // pred_fallthru
          _
        // Predicated region
        $region57: #{_lambda_.1} parent=23 // pred_check
          %p646 = pneg %p291
        $region58: #{_lambda_.1} parent=23 // pred_check_branch
          %648 = sbr.rel (%p646) target = $region60
        $region59: #{_lambda_.1} parent=23 // pred_region
          %s649 = sand.u32 %s51, 1
          %s650 = scalar_lea.sflag [#allocation18], %s649
          %s651 = sand.u32 %s281, 1
          %s652 = scalar_lea.vmem [#allocation19], %s651
          %s654 = ssub.s32 16, 16
          %655 = vsyncadd %s650, %s654
          %s656 = smul.addr %s59, 16
          %s657 = scalar_lea.hbm %s9, %s656
          %s659 = sshll.u32 %s652, 4
          %s660 = int_to_ptr.vmem [resolvable:$true] %s659
          %662 = dma.hbm_to_vmem [thread:$0]  %s657, 16, %s660, %s650
        $region60: #{_lambda_.1} parent=23 // pred_fallthru
          _
        // Predicated region
        $region61: #{_lambda_.1} parent=23 // pred_check
          %p663 = pneg %p317
        $region62: #{_lambda_.1} parent=23 // pred_check_branch
          %665 = sbr.rel (%p663) target = $region64
        $region63: #{_lambda_.1} parent=23 // pred_region
          %s666 = sand.u32 %s51, 1
          %s667 = scalar_lea.sflag [#allocation21], %s666
          %s668 = sand.u32 %s307, 1
          %s669 = smul.addr %s668, 96
          %s670 = scalar_lea.vmem [#allocation20], %s669
          %s672 = ssub.s32 1536, 1536
          %673 = vsyncadd %s667, %s672
          %s674 = smul.addr %s59, 24
          %s675 = smul.addr %s674, 64
          %s676 = scalar_lea.hbm %s10, %s675
          %s677 = sshll.u32 %s670, 4
          %s678 = int_to_ptr.vmem [resolvable:$true] %s677
          %683 = dma.hbm_to_vmem [thread:$0]  %s676, 1536, %s678, %s667, 64, 64, 4
        $region64: #{_lambda_.1} parent=23 // pred_fallthru
          _
        // Predicated region
        $region65: #{_lambda_.1} parent=23 // pred_check
          %p684 = pneg %p343
        $region66: #{_lambda_.1} parent=23 // pred_check_branch
          %686 = sbr.rel (%p684) target = $region68
        $region67: #{_lambda_.1} parent=23 // pred_region
          %s687 = sand.u32 %s51, 1
          %s688 = scalar_lea.sflag [#allocation21], %s687
          %s689 = sand.u32 %s333, 1
          %s690 = scalar_lea.vmem [#allocation22], %s689
          %s692 = ssub.s32 16, 16
          %693 = vsyncadd %s688, %s692
          %s694 = smul.addr %s59, 16
          %s695 = scalar_lea.hbm %s11, %s694
          %s697 = sshll.u32 %s690, 4
          %s698 = int_to_ptr.vmem [resolvable:$true] %s697
          %700 = dma.hbm_to_vmem [thread:$0]  %s695, 16, %s698, %s688
        $region68: #{_lambda_.1} parent=23 // pred_fallthru
          _
      $region24: #{_lambda_.1} parent=5 // pred_fallthru
        _
      %p701 = scmp.le.s32.totalorder 1, %s51
      %p702 = scmp.lt.s32.totalorder %s51, 5
      %p703 = pnand %p701, %p702
      %p704 = pneg %p703
      // Predicated region
      $region69: #{_lambda_.1} parent=5 // pred_check
        _
      $region70: #{_lambda_.1} parent=5 // pred_check_branch
        %706 = sbr.rel (%p703) target = $region72
      $region71: #{_lambda_.1} parent=5 // pred_region
        %s707 = ssub.s32 %s51, 1
        %s708 = sand.u32 %s76, 1
        %s709 = scalar_lea.sflag [#allocation6], %s708
        %s710 = sand.u32 %s76, 1
        %s711 = smul.addr %s710, 16
        %s712 = scalar_lea.vmem [#allocation5], %s711
        // Predicated region
        $region73: #{_lambda_.1} parent=71 // pred_check
          %p713 = pneg %p89
        $region74: #{_lambda_.1} parent=71 // pred_check_branch
          %715 = sbr.rel (%p713) target = $region76
        $region75: #{_lambda_.1} parent=71 // pred_region
          %716 = dma.done %s709, 256
        $region76: #{_lambda_.1} parent=71 // pred_fallthru
          _
        %s717 = sand.u32 %s56, 1
        %s718 = scalar_lea.sflag [#allocation9], %s717
        %s719 = sand.u32 %s102, 1
        %s720 = smul.addr %s719, 16
        %s721 = scalar_lea.vmem [#allocation8], %s720
        // Predicated region
        $region77: #{_lambda_.1} parent=71 // pred_check
          %p722 = pneg %p115
        $region78: #{_lambda_.1} parent=71 // pred_check_branch
          %724 = sbr.rel (%p722) target = $region80
        $region79: #{_lambda_.1} parent=71 // pred_region
          %725 = dma.done %s718, 256
        $region80: #{_lambda_.1} parent=71 // pred_fallthru
          _
        %s726 = sand.u32 %s56, 1
        %s727 = scalar_lea.sflag [#allocation9], %s726
        %s728 = sand.u32 %s128, 1
        %s729 = scalar_lea.vmem [#allocation10], %s728
        // Predicated region
        $region81: #{_lambda_.1} parent=71 // pred_check
          %p730 = pneg %p141
        $region82: #{_lambda_.1} parent=71 // pred_check_branch
          %732 = sbr.rel (%p730) target = $region84
        $region83: #{_lambda_.1} parent=71 // pred_region
          %733 = dma.done %s727, 16
        $region84: #{_lambda_.1} parent=71 // pred_fallthru
          _
        %s734 = sand.u32 %s56, 1
        %s735 = scalar_lea.sflag [#allocation12], %s734
        %s736 = sand.u32 %s154, 1
        %s737 = smul.addr %s736, 16
        %s738 = scalar_lea.vmem [#allocation11], %s737
        // Predicated region
        $region85: #{_lambda_.1} parent=71 // pred_check
          %p739 = pneg %p167
        $region86: #{_lambda_.1} parent=71 // pred_check_branch
          %741 = sbr.rel (%p739) target = $region88
        $region87: #{_lambda_.1} parent=71 // pred_region
          %742 = dma.done %s735, 256
        $region88: #{_lambda_.1} parent=71 // pred_fallthru
          _
        %s743 = sand.u32 %s56, 1
        %s744 = scalar_lea.sflag [#allocation12], %s743
        %s745 = sand.u32 %s180, 1
        %s746 = scalar_lea.vmem [#allocation13], %s745
        // Predicated region
        $region89: #{_lambda_.1} parent=71 // pred_check
          %p747 = pneg %p193
        $region90: #{_lambda_.1} parent=71 // pred_check_branch
          %749 = sbr.rel (%p747) target = $region92
        $region91: #{_lambda_.1} parent=71 // pred_region
          %750 = dma.done %s744, 16
        $region92: #{_lambda_.1} parent=71 // pred_fallthru
          _
        %s751 = sand.u32 %s56, 1
        %s752 = scalar_lea.sflag [#allocation15], %s751
        %s753 = sand.u32 %s206, 1
        %s754 = smul.addr %s753, 32
        %s755 = scalar_lea.vmem [#allocation14], %s754
        // Predicated region
        $region93: #{_lambda_.1} parent=71 // pred_check
          %p756 = pneg %p219
        $region94: #{_lambda_.1} parent=71 // pred_check_branch
          %758 = sbr.rel (%p756) target = $region96
        $region95: #{_lambda_.1} parent=71 // pred_region
          %759 = dma.done %s752, 512
        $region96: #{_lambda_.1} parent=71 // pred_fallthru
          _
        %s760 = sand.u32 %s56, 1
        %s761 = scalar_lea.sflag [#allocation15], %s760
        %s762 = sand.u32 %s232, 1
        %s763 = smul.addr %s762, 4
        %s764 = scalar_lea.vmem [#allocation16], %s763
        // Predicated region
        $region97: #{_lambda_.1} parent=71 // pred_check
          %p765 = pneg %p245
        $region98: #{_lambda_.1} parent=71 // pred_check_branch
          %767 = sbr.rel (%p765) target = $region100
        $region99: #{_lambda_.1} parent=71 // pred_region
          %768 = dma.done %s761, 64
        $region100: #{_lambda_.1} parent=71 // pred_fallthru
          _
        %s769 = sand.u32 %s56, 1
        %s770 = scalar_lea.sflag [#allocation18], %s769
        %s771 = sand.u32 %s258, 1
        %s772 = smul.addr %s771, 48
        %s773 = scalar_lea.vmem [#allocation17], %s772
        // Predicated region
        $region101: #{_lambda_.1} parent=71 // pred_check
          %p774 = pneg %p271
        $region102: #{_lambda_.1} parent=71 // pred_check_branch
          %776 = sbr.rel (%p774) target = $region104
        $region103: #{_lambda_.1} parent=71 // pred_region
          %777 = dma.done %s770, 768
        $region104: #{_lambda_.1} parent=71 // pred_fallthru
          _
        %s778 = sand.u32 %s56, 1
        %s779 = scalar_lea.sflag [#allocation18], %s778
        %s780 = sand.u32 %s284, 1
        %s781 = scalar_lea.vmem [#allocation19], %s780
        // Predicated region
        $region105: #{_lambda_.1} parent=71 // pred_check
          %p782 = pneg %p297
        $region106: #{_lambda_.1} parent=71 // pred_check_branch
          %784 = sbr.rel (%p782) target = $region108
        $region107: #{_lambda_.1} parent=71 // pred_region
          %785 = dma.done %s779, 16
        $region108: #{_lambda_.1} parent=71 // pred_fallthru
          _
        %s786 = sand.u32 %s56, 1
        %s787 = scalar_lea.sflag [#allocation21], %s786
        %s788 = sand.u32 %s310, 1
        %s789 = smul.addr %s788, 96
        %s790 = scalar_lea.vmem [#allocation20], %s789
        // Predicated region
        $region109: #{_lambda_.1} parent=71 // pred_check
          %p791 = pneg %p323
        $region110: #{_lambda_.1} parent=71 // pred_check_branch
          %793 = sbr.rel (%p791) target = $region112
        $region111: #{_lambda_.1} parent=71 // pred_region
          %794 = dma.done %s787, 1536
        $region112: #{_lambda_.1} parent=71 // pred_fallthru
          _
        %s795 = sand.u32 %s56, 1
        %s796 = scalar_lea.sflag [#allocation21], %s795
        %s797 = sand.u32 %s336, 1
        %s798 = scalar_lea.vmem [#allocation22], %s797
        // Predicated region
        $region113: #{_lambda_.1} parent=71 // pred_check
          %p799 = pneg %p349
        $region114: #{_lambda_.1} parent=71 // pred_check_branch
          %801 = sbr.rel (%p799) target = $region116
        $region115: #{_lambda_.1} parent=71 // pred_region
          %802 = dma.done %s796, 16
        $region116: #{_lambda_.1} parent=71 // pred_fallthru
          _
        // Predicated region
        $region117: #{_lambda_.1} parent=71 // pred_check
          %p803 = pneg %p370
        $region118: #{_lambda_.1} parent=71 // pred_check_branch
          %805 = sbr.rel (%p803) target = $region120
        $region119: #{_lambda_.1} parent=71 // pred_region
          %806 = dma.done [#allocation24], 256
        $region120: #{_lambda_.1} parent=71 // pred_fallthru
          _
        // Predicated region
        $region121: #{_lambda_.1} parent=71 // pred_check
          %p807 = pneg %p391
        $region122: #{_lambda_.1} parent=71 // pred_check_branch
          %809 = sbr.rel (%p807) target = $region124
        $region123: #{_lambda_.1} parent=71 // pred_region
          %810 = dma.done [#allocation24], 16
        $region124: #{_lambda_.1} parent=71 // pred_fallthru
          _
        %s811 = sand.u32 %s76, 1
        %s812 = scalar_lea.sflag [#allocation6], %s811
        %s813 = sand.u32 %s76, 1
        %s814 = smul.addr %s813, 16
        %s815 = scalar_lea.vmem [#allocation5], %s814
        %p816 = pneg %p89
        %p817 = pneg %p86
        %s818 = sand.u32 %s56, 1
        %s819 = scalar_lea.sflag [#allocation9], %s818
        %s820 = sand.u32 %s102, 1
        %s821 = smul.addr %s820, 16
        %s822 = scalar_lea.vmem [#allocation8], %s821
        %p823 = pneg %p115
        %p824 = pneg %p112
        %s825 = sand.u32 %s56, 1
        %s826 = scalar_lea.sflag [#allocation9], %s825
        %s827 = sand.u32 %s128, 1
        %s828 = scalar_lea.vmem [#allocation10], %s827
        %p829 = pneg %p141
        %p830 = pneg %p138
        %s831 = sand.u32 %s56, 1
        %s832 = scalar_lea.sflag [#allocation12], %s831
        %s833 = sand.u32 %s154, 1
        %s834 = smul.addr %s833, 16
        %s835 = scalar_lea.vmem [#allocation11], %s834
        %p836 = pneg %p167
        %p837 = pneg %p164
        %s838 = sand.u32 %s56, 1
        %s839 = scalar_lea.sflag [#allocation12], %s838
        %s840 = sand.u32 %s180, 1
        %s841 = scalar_lea.vmem [#allocation13], %s840
        %p842 = pneg %p193
        %p843 = pneg %p190
        %s844 = sand.u32 %s56, 1
        %s845 = scalar_lea.sflag [#allocation15], %s844
        %s846 = sand.u32 %s206, 1
        %s847 = smul.addr %s846, 32
        %s848 = scalar_lea.vmem [#allocation14], %s847
        %p849 = pneg %p219
        %p850 = pneg %p216
        %s851 = sand.u32 %s56, 1
        %s852 = scalar_lea.sflag [#allocation15], %s851
        %s853 = sand.u32 %s232, 1
        %s854 = smul.addr %s853, 4
        %s855 = scalar_lea.vmem [#allocation16], %s854
        %p856 = pneg %p245
        %p857 = pneg %p242
        %s858 = sand.u32 %s56, 1
        %s859 = scalar_lea.sflag [#allocation18], %s858
        %s860 = sand.u32 %s258, 1
        %s861 = smul.addr %s860, 48
        %s862 = scalar_lea.vmem [#allocation17], %s861
        %p863 = pneg %p271
        %p864 = pneg %p268
        %s865 = sand.u32 %s56, 1
        %s866 = scalar_lea.sflag [#allocation18], %s865
        %s867 = sand.u32 %s284, 1
        %s868 = scalar_lea.vmem [#allocation19], %s867
        %p869 = pneg %p297
        %p870 = pneg %p294
        %s871 = sand.u32 %s56, 1
        %s872 = scalar_lea.sflag [#allocation21], %s871
        %s873 = sand.u32 %s310, 1
        %s874 = smul.addr %s873, 96
        %s875 = scalar_lea.vmem [#allocation20], %s874
        %p876 = pneg %p323
        %p877 = pneg %p320
        %s878 = sand.u32 %s56, 1
        %s879 = scalar_lea.sflag [#allocation21], %s878
        %s880 = sand.u32 %s336, 1
        %s881 = scalar_lea.vmem [#allocation22], %s880
        %p882 = pneg %p349
        %p883 = pneg %p346
        %p884 = pneg %p370
        %p885 = pneg %p367
        %p886 = pneg %p391
        %p887 = pneg %p388
        %p888 = pneg %p417
        %p889 = pneg %p414
        %s890 = sand.u32 %s404, 1
        %s891 = scalar_lea.sflag [#allocation7], %s890
        %s892 = sand.u32 %s404, 1
        %s893 = smul.addr %s892, 16
        %s894 = scalar_lea.vmem [#allocation26], %s893
        %p895 = pneg %p443
        %p896 = pneg %p440
        %s897 = sand.u32 %s430, 1
        %s898 = scalar_lea.sflag [#allocation28], %s897
        %s899 = sand.u32 %s430, 1
        %s900 = smul.addr %s899, 16
        %s901 = scalar_lea.vmem [#allocation27], %s900
        %v903 = vlaneseq
        %v904 = vshrl.u32 %v903, 7
        %v905 = vadd.s32 %v904, 8
        %v906 = vlaneseq
        %v907 = vand.u32 %v906, 127
        %v908 = vsub.s32 %v907, %v904
        %v909 = vsub.s32 %v907, %v905
        %p910 = scmp.eq.s32.totalorder %s61, 0
        // Predicated region
        $region125: #{_lambda_.1} parent=71 // pred_check
          %p911 = pneg %p910
        $region126: #{_lambda_.1} parent=71 // pred_check_branch
          %913 = sbr.rel (%p911) target = $region128
        $region127: #{_lambda_.1} parent=71 // pred_region
          %v914 = vld [vmem:[%s712] sm:$0xff]
          %v915 = vld [vmem:[%s712 + $0x8] sm:$0xff]
          %vm916 = vcmask 261120
          %917 = vst.msk [vmem:[#allocation2] sm:$0xff] %vm916, %v914
          %918 = vst.msk [vmem:[#allocation2 + $0x8] sm:$0xff] %vm916, %v915
        $region128: #{_lambda_.1} parent=71 // pred_fallthru
          _
        %v919 = vld [vmem:[%s764] sm:$0x3]
        %v920 = vld [vmem:[%s764 + $0x2] sm:$0x3]
        %s921 = sld [smem:[#allocation4 + %s60]]
        %v922 = vstv %s921
        %vm923 = vcmp.lt.s32.totalorder %v904, %v922
        %vm924 = vcmp.lt.s32.totalorder %v905, %v922
        %v925 = vsel %vm923, 1, 0
        %v926 = vsel %vm924, 1, 0
        %v927 = vcvt.s32.f32 %v925
        %v928 = vcvt.s32.f32 %v926
        %vm929 = vcmp.ge.s32.totalorder %v904, %v922
        %vm930 = vcmp.ge.s32.totalorder %v905, %v922
        %vm931 = vcmp.ge.s32.totalorder %v907, %v922
        %vm932 = vmor %vm929, %vm931
        %vm933 = vmor %vm930, %vm931
        %v934 = vld [vmem:[#allocation2] sm:$0xff]
        %v935 = vld [vmem:[#allocation2 + $0x8] sm:$0xff]
        %v936 = vmul.f32 %v934, %v927
        %v937 = vmul.f32 %v935, %v928
        %v938 = vpack.c.bf16 %v937, %v936
        %v939 = vld [vmem:[%s721] sm:$0xf]
        %v940 = vld [vmem:[%s721 + $0x4] sm:$0xf]
        %v941 = vld [vmem:[%s721 + $0x8] sm:$0xf]
        %v942 = vld [vmem:[%s721 + $0xc] sm:$0xf]
        %v943 = vld [vmem:[%s729] sm:$0x1]
        %v945 = vlaneseq
        %v946 = vshrl.u32 %v945, 7
        %v947 = vsub.s32 0, %v946
        %v948 = vrot.slane %v943, %v947
        %v954 = vunpack.c.l.b16 %v939
        %v955 = vunpack.c.l.b16 %v940
        %v956 = vunpack.c.l.b16 %v941
        %v957 = vunpack.c.l.b16 %v942
        %v958 = vpack.c.b16 %v955, %v954
        %v959 = vpack.c.b16 %v957, %v956
        %vm962 = vcmask 261120
        %v964 = vsel %vm962, %v938, 0
        %966 = vmatprep.subr.bf16.mxu0 0
        %967 = vmatpush1.bf16.msra.mxu0 %v958
        %968 = vmatprep.subr.bf16.mxu0 0
        %969 = vmatpush1.bf16.msra.mxu0 %v959
        %970 = vmatprep.subr.bf16.mxu0 0
        %971 = vmatpush1.bf16.msra.mxu0 0
        %972 = vmatprep.subr.bf16.mxu0 0
        %973 = vmatpush1.bf16.msra.mxu0 0
        %974 = vmatprep.subr.bf16.mxu0 0
        %975 = vmatpush1.bf16.msra.mxu0 0
        %976 = vmatprep.subr.bf16.mxu0 0
        %977 = vmatpush1.bf16.msra.mxu0 0
        %978 = vmatprep.subr.bf16.mxu0 0
        %979 = vmatpush1.bf16.msra.mxu0 0
        %980 = vmatprep.subr.bf16.mxu0 0
        %981 = vmatpush1.bf16.msra.mxu0 0
        %982 = vmatprep.subr.bf16.mxu0 0
        %983 = vmatpush1.bf16.msra.mxu0 0
        %984 = vmatprep.subr.bf16.mxu0 0
        %985 = vmatpush1.bf16.msra.mxu0 0
        %986 = vmatprep.subr.bf16.mxu0 0
        %987 = vmatpush1.bf16.msra.mxu0 0
        %988 = vmatprep.subr.bf16.mxu0 0
        %989 = vmatpush1.bf16.msra.mxu0 0
        %990 = vmatprep.subr.bf16.mxu0 0
        %991 = vmatpush1.bf16.msra.mxu0 0
        %992 = vmatprep.subr.bf16.mxu0 0
        %993 = vmatpush1.bf16.msra.mxu0 0
        %994 = vmatprep.subr.bf16.mxu0 0
        %995 = vmatpush1.bf16.msra.mxu0 0
        %996 = vmatprep.subr.bf16.mxu0 0
        %997 = vmatpush1.bf16.msra.mxu0 0
        %998 = vmatprep.mubr.bf16.mxu0 0
        %999 = vmatmul.mubr.bf16.gmra.mrb[0].mxu0 %v964
        %v1000 = vpop.f32.mrb[0].mxu0
        %v1001 = vadd.f32 %v948, %v1000
        %v1002 = vpop.f32.mrb[0].mxu0
        %v1003 = vpop.f32.mrb[0].mxu0
        %v1004 = vadd.f32 %v948, %v1003
        %v1005 = vpop.f32.mrb[0].mxu0
        %1006 = vdwg.mxu0
        %v1007 = vmul.f32 %v1001, 0.25
        %v1008 = vmul.f32 %v1004, 0.25
        %v1009 = vpack.c.bf16 %v1008, %v1007
        %v1010 = vpack.c.bf16 %v1004, %v1001
        %v1011 = vld [vmem:[%s755] sm:$0xf]
        %v1012 = vld [vmem:[%s755 + $0x4] sm:$0x3]
        %v1015 = vunpack.c.l.b16 %v1011
        %v1016 = vunpack.c.l.b16 %v1012
        %v1017 = vpack.c.b16 %v1016, %v1015
        %vm1018 = vcmask 130048
        %v1020 = vsel %vm1018, %v1009, 0
        %v1023 = vsel %vm1018, %v1017, 0
        %1025 = vmatprep.subr.bf16.mxu0 0
        %1026 = vmatpush1.bf16.xpose.msra.mxu0 %v1023
        %1027 = vmatprep.subr.bf16.mxu0 0
        %1028 = vmatpush1.bf16.xpose.msra.mxu0 0
        %1029 = vmatprep.subr.bf16.mxu0 0
        %1030 = vmatpush1.bf16.xpose.msra.mxu0 0
        %1031 = vmatprep.subr.bf16.mxu0 0
        %1032 = vmatpush1.bf16.xpose.msra.mxu0 0
        %1033 = vmatprep.subr.bf16.mxu0 0
        %1034 = vmatpush1.bf16.xpose.msra.mxu0 0
        %1035 = vmatprep.subr.bf16.mxu0 0
        %1036 = vmatpush1.bf16.xpose.msra.mxu0 0
        %1037 = vmatprep.subr.bf16.mxu0 0
        %1038 = vmatpush1.bf16.xpose.msra.mxu0 0
        %1039 = vmatprep.subr.bf16.mxu0 0
        %1040 = vmatpush1.bf16.xpose.msra.mxu0 0
        %1041 = vmatprep.subr.bf16.mxu0 0
        %1042 = vmatpush1.bf16.xpose.msra.mxu0 0
        %1043 = vmatprep.subr.bf16.mxu0 0
        %1044 = vmatpush1.bf16.xpose.msra.mxu0 0
        %1045 = vmatprep.subr.bf16.mxu0 0
        %1046 = vmatpush1.bf16.xpose.msra.mxu0 0
        %1047 = vmatprep.subr.bf16.mxu0 0
        %1048 = vmatpush1.bf16.xpose.msra.mxu0 0
        %1049 = vmatprep.subr.bf16.mxu0 0
        %1050 = vmatpush1.bf16.xpose.msra.mxu0 0
        %1051 = vmatprep.subr.bf16.mxu0 0
        %1052 = vmatpush1.bf16.xpose.msra.mxu0 0
        %1053 = vmatprep.subr.bf16.mxu0 0
        %1054 = vmatpush1.bf16.xpose.msra.mxu0 0
        %1055 = vmatprep.subr.bf16.mxu0 0
        %1056 = vmatpush1.bf16.xpose.msra.mxu0 0
        %1057 = vmatprep.mubr.bf16.mxu0 0
        %1058 = vmatmul.mubr.bf16.gmra.mrb[0].mxu0 %v1020
        %v1059 = vpop.f32.mrb[0].mxu0
        %v1060 = vadd.f32 0.0, %v1059
        %v1061 = vpop.f32.mrb[0].mxu0
        %v1062 = vpop.f32.mrb[0].mxu0
        %v1063 = vadd.f32 0.0, %v1062
        %v1064 = vpop.f32.mrb[0].mxu0
        %1065 = vdwg.mxu0
        %vm1066 = vcmp.eq.s32.totalorder %v908, 4294967291
        %vm1067 = vcmp.eq.s32.totalorder %v909, 4294967291
        %1069 = vset.pattern.permute.xlu0 0
        %1070 = vperm.xlu0 %1069, %v1060
        %v1071 = vpop.permute.xlu0 %1070
        %1074 = vset.pattern.permute.xlu0 0
        %1075 = vperm.xlu0 %1074, %v1063
        %v1076 = vpop.permute.xlu0 %1075
        %v1078 = vsel %vm1066, %v1071, 0.0
        %v1079 = vsel %vm1067, %v1076, 0.0
        %1081 = vrot.lane.b32.xlu0 %v1010, 96
        %v1082 = vpop.permute.xlu0 %1081
        %v1084 = vsel %vm1018, %v1082, 0
        %1086 = vmatprep.subr.bf16.mxu0 0
        %1087 = vmatpush1.bf16.xpose.msra.mxu0 %v1084
        %1088 = vmatprep.subr.bf16.mxu0 0
        %1089 = vmatpush1.bf16.xpose.msra.mxu0 0
        %1090 = vmatprep.subr.bf16.mxu0 0
        %1091 = vmatpush1.bf16.xpose.msra.mxu0 0
        %1092 = vmatprep.subr.bf16.mxu0 0
        %1093 = vmatpush1.bf16.xpose.msra.mxu0 0
        %1094 = vmatprep.subr.bf16.mxu0 0
        %1095 = vmatpush1.bf16.xpose.msra.mxu0 0
        %1096 = vmatprep.subr.bf16.mxu0 0
        %1097 = vmatpush1.bf16.xpose.msra.mxu0 0
        %1098 = vmatprep.subr.bf16.mxu0 0
        %1099 = vmatpush1.bf16.xpose.msra.mxu0 0
        %1100 = vmatprep.subr.bf16.mxu0 0
        %1101 = vmatpush1.bf16.xpose.msra.mxu0 0
        %1102 = vmatprep.subr.bf16.mxu0 0
        %1103 = vmatpush1.bf16.xpose.msra.mxu0 0
        %1104 = vmatprep.subr.bf16.mxu0 0
        %1105 = vmatpush1.bf16.xpose.msra.mxu0 0
        %1106 = vmatprep.subr.bf16.mxu0 0
        %1107 = vmatpush1.bf16.xpose.msra.mxu0 0
        %1108 = vmatprep.subr.bf16.mxu0 0
        %1109 = vmatpush1.bf16.xpose.msra.mxu0 0
        %1110 = vmatprep.subr.bf16.mxu0 0
        %1111 = vmatpush1.bf16.xpose.msra.mxu0 0
        %1112 = vmatprep.subr.bf16.mxu0 0
        %1113 = vmatpush1.bf16.xpose.msra.mxu0 0
        %1114 = vmatprep.subr.bf16.mxu0 0
        %1115 = vmatpush1.bf16.xpose.msra.mxu0 0
        %1116 = vmatprep.subr.bf16.mxu0 0
        %1117 = vmatpush1.bf16.xpose.msra.mxu0 0
        %1118 = vmatprep.mubr.bf16.mxu0 0
        %1119 = vmatmul.mubr.bf16.gmra.mrb[0].mxu0 %v1020
        %v1120 = vpop.f32.mrb[0].mxu0
        %v1121 = vadd.f32 %v1078, %v1120
        %v1122 = vpop.f32.mrb[0].mxu0
        %v1123 = vpop.f32.mrb[0].mxu0
        %v1124 = vadd.f32 %v1079, %v1123
        %v1125 = vpop.f32.mrb[0].mxu0
        %1126 = vdwg.mxu0
        %vm1127 = vcmp.eq.s32.totalorder %v908, 4294967292
        %vm1128 = vcmp.eq.s32.totalorder %v909, 4294967292
        %1129 = vset.pattern.permute.xlu0 1
        %1130 = vperm.xlu0 %1129, %v1060
        %v1131 = vpop.permute.xlu0 %1130
        %1133 = vset.pattern.permute.xlu0 1
        %1134 = vperm.xlu0 %1133, %v1063
        %v1135 = vpop.permute.xlu0 %1134
        %v1137 = vsel %vm1127, %v1131, 0.0
        %v1138 = vsel %vm1128, %v1135, 0.0
        %v1139 = vadd.f32 %v1121, %v1137
        %v1140 = vadd.f32 %v1124, %v1138
        %vm1141 = vcmp.eq.s32.totalorder %v908, 4294967293
        %vm1142 = vcmp.eq.s32.totalorder %v909, 4294967293
        %1143 = vset.pattern.permute.xlu0 2
        %1144 = vperm.xlu0 %1143, %v1060
        %v1145 = vpop.permute.xlu0 %1144
        %1147 = vset.pattern.permute.xlu0 2
        %1148 = vperm.xlu0 %1147, %v1063
        %v1149 = vpop.permute.xlu0 %1148
        %v1151 = vsel %vm1141, %v1145, 0.0
        %v1152 = vsel %vm1142, %v1149, 0.0
        %v1153 = vadd.f32 %v1139, %v1151
        %v1154 = vadd.f32 %v1140, %v1152
        %vm1155 = vcmp.eq.s32.totalorder %v908, 4294967294
        %vm1156 = vcmp.eq.s32.totalorder %v909, 4294967294
        %1157 = vset.pattern.permute.xlu0 3
        %1158 = vperm.xlu0 %1157, %v1060
        %v1159 = vpop.permute.xlu0 %1158
        %1161 = vset.pattern.permute.xlu0 3
        %1162 = vperm.xlu0 %1161, %v1063
        %v1163 = vpop.permute.xlu0 %1162
        %v1165 = vsel %vm1155, %v1159, 0.0
        %v1166 = vsel %vm1156, %v1163, 0.0
        %v1167 = vadd.f32 %v1153, %v1165
        %v1168 = vadd.f32 %v1154, %v1166
        %vm1169 = vcmp.eq.s32.totalorder %v908, 4294967295
        %vm1170 = vcmp.eq.s32.totalorder %v909, 4294967295
        %1171 = vset.pattern.permute.xlu0 4
        %1172 = vperm.xlu0 %1171, %v1060
        %v1173 = vpop.permute.xlu0 %1172
        %1175 = vset.pattern.permute.xlu0 4
        %1176 = vperm.xlu0 %1175, %v1063
        %v1177 = vpop.permute.xlu0 %1176
        %v1179 = vsel %vm1169, %v1173, 0.0
        %v1180 = vsel %vm1170, %v1177, 0.0
        %v1181 = vadd.f32 %v1167, %v1179
        %v1182 = vadd.f32 %v1168, %v1180
        %vm1183 = vcmp.eq.s32.totalorder %v908, 0
        %vm1184 = vcmp.eq.s32.totalorder %v909, 0
        %1185 = vset.pattern.permute.xlu0 5
        %1186 = vperm.xlu0 %1185, %v1060
        %v1187 = vpop.permute.xlu0 %1186
        %1189 = vset.pattern.permute.xlu0 5
        %1190 = vperm.xlu0 %1189, %v1063
        %v1191 = vpop.permute.xlu0 %1190
        %v1193 = vsel %vm1183, %v1187, 0.0
        %v1194 = vsel %vm1184, %v1191, 0.0
        %v1195 = vadd.f32 %v1181, %v1193
        %v1196 = vadd.f32 %v1182, %v1194
        %vm1197 = vcmp.eq.s32.totalorder %v908, 1
        %vm1198 = vcmp.eq.s32.totalorder %v909, 1
        %1199 = vset.pattern.permute.xlu0 6
        %1200 = vperm.xlu0 %1199, %v1060
        %v1201 = vpop.permute.xlu0 %1200
        %1203 = vset.pattern.permute.xlu0 6
        %1204 = vperm.xlu0 %1203, %v1063
        %v1205 = vpop.permute.xlu0 %1204
        %v1207 = vsel %vm1197, %v1201, 0.0
        %v1208 = vsel %vm1198, %v1205, 0.0
        %v1209 = vadd.f32 %v1195, %v1207
        %v1210 = vadd.f32 %v1196, %v1208
        %vm1211 = vcmp.eq.s32.totalorder %v908, 2
        %vm1212 = vcmp.eq.s32.totalorder %v909, 2
        %1213 = vset.pattern.permute.xlu0 7
        %1214 = vperm.xlu0 %1213, %v1060
        %v1215 = vpop.permute.xlu0 %1214
        %1217 = vset.pattern.permute.xlu0 7
        %1218 = vperm.xlu0 %1217, %v1063
        %v1219 = vpop.permute.xlu0 %1218
        %v1221 = vsel %vm1211, %v1215, 0.0
        %v1222 = vsel %vm1212, %v1219, 0.0
        %v1223 = vadd.f32 %v1209, %v1221
        %v1224 = vadd.f32 %v1210, %v1222
        %vm1225 = vcmp.eq.s32.totalorder %v908, 3
        %vm1226 = vcmp.eq.s32.totalorder %v909, 3
        %1227 = vset.pattern.permute.xlu0 8
        %1228 = vperm.xlu0 %1227, %v1060
        %v1229 = vpop.permute.xlu0 %1228
        %1231 = vset.pattern.permute.xlu0 8
        %1232 = vperm.xlu0 %1231, %v1063
        %v1233 = vpop.permute.xlu0 %1232
        %v1235 = vsel %vm1225, %v1229, 0.0
        %v1236 = vsel %vm1226, %v1233, 0.0
        %v1237 = vadd.f32 %v1223, %v1235
        %v1238 = vadd.f32 %v1224, %v1236
        %vm1239 = vcmp.eq.s32.totalorder %v908, 4
        %vm1240 = vcmp.eq.s32.totalorder %v909, 4
        %1241 = vset.pattern.permute.xlu0 9
        %1242 = vperm.xlu0 %1241, %v1060
        %v1243 = vpop.permute.xlu0 %1242
        %1245 = vset.pattern.permute.xlu0 9
        %1246 = vperm.xlu0 %1245, %v1063
        %v1247 = vpop.permute.xlu0 %1246
        %v1249 = vsel %vm1239, %v1243, 0.0
        %v1250 = vsel %vm1240, %v1247, 0.0
        %v1251 = vadd.f32 %v1237, %v1249
        %v1252 = vadd.f32 %v1238, %v1250
        %vm1253 = vcmp.eq.s32.totalorder %v908, 5
        %vm1254 = vcmp.eq.s32.totalorder %v909, 5
        %1255 = vset.pattern.permute.xlu0 10
        %1256 = vperm.xlu0 %1255, %v1060
        %v1257 = vpop.permute.xlu0 %1256
        %1259 = vset.pattern.permute.xlu0 10
        %1260 = vperm.xlu0 %1259, %v1063
        %v1261 = vpop.permute.xlu0 %1260
        %v1263 = vsel %vm1253, %v1257, 0.0
        %v1264 = vsel %vm1254, %v1261, 0.0
        %v1265 = vadd.f32 %v1251, %v1263
        %v1266 = vadd.f32 %v1252, %v1264
        %v1267 = vsel %vm932, -10000.0, %v1265
        %v1268 = vsel %vm933, -10000.0, %v1266
        %v1269 = vsel %vm1018, %v1267, -inf
        %1270 = vmax.xlane.f32.xlu0 %v1269
        %v1271 = vpop.xlane.xlu0 %1270
        %v1272 = vsel %vm1018, %v1268, -inf
        %1273 = vmax.xlane.f32.xlu0 %v1272
        %v1274 = vpop.xlane.xlu0 %1273
        %v1275 = vsub.f32 %v1267, %v1271
        %v1276 = vsub.f32 %v1268, %v1274
        %v1277 = vmul.f32 %v1275, 1.442695
        %v1278 = vpow.pop %v1277
        %v1279 = vmul.f32 %v1276, 1.442695
        %v1280 = vpow.pop %v1279
        %v1281 = vsel %vm1018, %v1278, 0.0
        %1282 = vadd.xlane.f32.xlu0 %v1281
        %v1283 = vpop.xlane.xlu0 %1282
        %v1284 = vsel %vm1018, %v1280, 0.0
        %1285 = vadd.xlane.f32.xlu0 %v1284
        %v1286 = vpop.xlane.xlu0 %1285
        %v1287 = vrcp.pop %v1283
        %v1288 = vmul.f32 %v1278, %v1287
        %v1289 = vrcp.pop %v1286
        %v1290 = vmul.f32 %v1280, %v1289
        %v1291 = vpack.c.bf16 %v1290, %v1288
        %s1292 = scalar_lea.vmem %s755, 16 [#allocation14]
        %v1293 = vld [vmem:[%s1292] sm:$0xf]
        %v1294 = vld [vmem:[%s1292 + $0x4] sm:$0x3]
        %v1295 = vunpack.c.l.bf16 %v1293
        %v1296 = vunpack.c.l.bf16 %v1294
        %v1297 = vsel %vm1066, %v1288, 0.0
        %v1298 = vsel %vm1067, %v1290, 0.0
        %v1299 = vsel %vm1018, %v1297, 0.0
        %1300 = vadd.xlane.f32.xlu0 %v1299
        %v1301 = vpop.xlane.xlu0 %1300
        %v1302 = vsel %vm1018, %v1298, 0.0
        %1303 = vadd.xlane.f32.xlu0 %v1302
        %v1304 = vpop.xlane.xlu0 %1303
        %v1305 = vlaneseq
        %v1306 = vshrl.u32 %v1305, 7
        %v1307 = vsub.s32 0, %v1306
        %v1308 = vrot.slane %v1295, %v1307
        %v1309 = vmul.f32 %v1301, %v1308
        %v1310 = vmul.f32 %v1304, %v1308
        %1311 = vrot.lane.b32.xlu0 %v1010, 64
        %v1312 = vpop.permute.xlu0 %1311
        %v1315 = vsel %vm1018, %v1291, 0
        %1317 = vmatprep.subr.bf16.mxu0 0
        %1318 = vmatpush1.bf16.msra.mxu0 %v1312
        %1319 = vmatprep.subr.bf16.mxu0 0
        %1320 = vmatpush1.bf16.msra.mxu0 0
        %1321 = vmatprep.subr.bf16.mxu0 0
        %1322 = vmatpush1.bf16.msra.mxu0 0
        %1323 = vmatprep.subr.bf16.mxu0 0
        %1324 = vmatpush1.bf16.msra.mxu0 0
        %1325 = vmatprep.subr.bf16.mxu0 0
        %1326 = vmatpush1.bf16.msra.mxu0 0
        %1327 = vmatprep.subr.bf16.mxu0 0
        %1328 = vmatpush1.bf16.msra.mxu0 0
        %1329 = vmatprep.subr.bf16.mxu0 0
        %1330 = vmatpush1.bf16.msra.mxu0 0
        %1331 = vmatprep.subr.bf16.mxu0 0
        %1332 = vmatpush1.bf16.msra.mxu0 0
        %1333 = vmatprep.subr.bf16.mxu0 0
        %1334 = vmatpush1.bf16.msra.mxu0 0
        %1335 = vmatprep.subr.bf16.mxu0 0
        %1336 = vmatpush1.bf16.msra.mxu0 0
        %1337 = vmatprep.subr.bf16.mxu0 0
        %1338 = vmatpush1.bf16.msra.mxu0 0
        %1339 = vmatprep.subr.bf16.mxu0 0
        %1340 = vmatpush1.bf16.msra.mxu0 0
        %1341 = vmatprep.subr.bf16.mxu0 0
        %1342 = vmatpush1.bf16.msra.mxu0 0
        %1343 = vmatprep.subr.bf16.mxu0 0
        %1344 = vmatpush1.bf16.msra.mxu0 0
        %1345 = vmatprep.subr.bf16.mxu0 0
        %1346 = vmatpush1.bf16.msra.mxu0 0
        %1347 = vmatprep.subr.bf16.mxu0 0
        %1348 = vmatpush1.bf16.msra.mxu0 0
        %1349 = vmatprep.mubr.bf16.mxu0 0
        %1350 = vmatmul.mubr.bf16.gmra.mrb[0].mxu0 %v1315
        %v1351 = vpop.f32.mrb[0].mxu0
        %v1352 = vadd.f32 %v1309, %v1351
        %v1353 = vpop.f32.mrb[0].mxu0
        %v1354 = vpop.f32.mrb[0].mxu0
        %v1355 = vadd.f32 %v1310, %v1354
        %v1356 = vpop.f32.mrb[0].mxu0
        %1357 = vdwg.mxu0
        %v1358 = vsel %vm1127, %v1288, 0.0
        %v1359 = vsel %vm1128, %v1290, 0.0
        %v1360 = vsel %vm1018, %v1358, 0.0
        %1361 = vadd.xlane.f32.xlu0 %v1360
        %v1362 = vpop.xlane.xlu0 %1361
        %v1363 = vsel %vm1018, %v1359, 0.0
        %1364 = vadd.xlane.f32.xlu0 %v1363
        %v1365 = vpop.xlane.xlu0 %1364
        %v1366 = vlaneseq
        %v1367 = vshrl.u32 %v1366, 7
        %v1368 = vsub.s32 1, %v1367
        %v1369 = vrot.slane %v1295, %v1368
        %v1370 = vmul.f32 %v1362, %v1369
        %v1371 = vmul.f32 %v1365, %v1369
        %v1372 = vadd.f32 %v1352, %v1370
        %v1373 = vadd.f32 %v1355, %v1371
        %v1374 = vsel %vm1141, %v1288, 0.0
        %v1375 = vsel %vm1142, %v1290, 0.0
        %v1376 = vsel %vm1018, %v1374, 0.0
        %1377 = vadd.xlane.f32.xlu0 %v1376
        %v1378 = vpop.xlane.xlu0 %1377
        %v1379 = vsel %vm1018, %v1375, 0.0
        %1380 = vadd.xlane.f32.xlu0 %v1379
        %v1381 = vpop.xlane.xlu0 %1380
        %v1382 = vlaneseq
        %v1383 = vshrl.u32 %v1382, 7
        %v1384 = vsub.s32 2, %v1383
        %v1385 = vrot.slane %v1295, %v1384
        %v1386 = vmul.f32 %v1378, %v1385
        %v1387 = vmul.f32 %v1381, %v1385
        %v1388 = vadd.f32 %v1372, %v1386
        %v1389 = vadd.f32 %v1373, %v1387
        %v1390 = vsel %vm1155, %v1288, 0.0
        %v1391 = vsel %vm1156, %v1290, 0.0
        %v1392 = vsel %vm1018, %v1390, 0.0
        %1393 = vadd.xlane.f32.xlu0 %v1392
        %v1394 = vpop.xlane.xlu0 %1393
        %v1395 = vsel %vm1018, %v1391, 0.0
        %1396 = vadd.xlane.f32.xlu0 %v1395
        %v1397 = vpop.xlane.xlu0 %1396
        %v1398 = vlaneseq
        %v1399 = vshrl.u32 %v1398, 7
        %v1400 = vsub.s32 3, %v1399
        %v1401 = vrot.slane %v1295, %v1400
        %v1402 = vmul.f32 %v1394, %v1401
        %v1403 = vmul.f32 %v1397, %v1401
        %v1404 = vadd.f32 %v1388, %v1402
        %v1405 = vadd.f32 %v1389, %v1403
        %v1406 = vsel %vm1169, %v1288, 0.0
        %v1407 = vsel %vm1170, %v1290, 0.0
        %v1408 = vsel %vm1018, %v1406, 0.0
        %1409 = vadd.xlane.f32.xlu0 %v1408
        %v1410 = vpop.xlane.xlu0 %1409
        %v1411 = vsel %vm1018, %v1407, 0.0
        %1412 = vadd.xlane.f32.xlu0 %v1411
        %v1413 = vpop.xlane.xlu0 %1412
        %v1414 = vlaneseq
        %v1415 = vshrl.u32 %v1414, 7
        %v1416 = vsub.s32 4, %v1415
        %v1417 = vrot.slane %v1295, %v1416
        %v1418 = vmul.f32 %v1410, %v1417
        %v1419 = vmul.f32 %v1413, %v1417
        %v1420 = vadd.f32 %v1404, %v1418
        %v1421 = vadd.f32 %v1405, %v1419
        %v1422 = vsel %vm1183, %v1288, 0.0
        %v1423 = vsel %vm1184, %v1290, 0.0
        %v1424 = vsel %vm1018, %v1422, 0.0
        %1425 = vadd.xlane.f32.xlu0 %v1424
        %v1426 = vpop.xlane.xlu0 %1425
        %v1427 = vsel %vm1018, %v1423, 0.0
        %1428 = vadd.xlane.f32.xlu0 %v1427
        %v1429 = vpop.xlane.xlu0 %1428
        %v1430 = vlaneseq
        %v1431 = vshrl.u32 %v1430, 7
        %v1432 = vsub.s32 5, %v1431
        %v1433 = vrot.slane %v1295, %v1432
        %v1434 = vmul.f32 %v1426, %v1433
        %v1435 = vmul.f32 %v1429, %v1433
        %v1436 = vadd.f32 %v1420, %v1434
        %v1437 = vadd.f32 %v1421, %v1435
        %v1438 = vsel %vm1197, %v1288, 0.0
        %v1439 = vsel %vm1198, %v1290, 0.0
        %v1440 = vsel %vm1018, %v1438, 0.0
        %1441 = vadd.xlane.f32.xlu0 %v1440
        %v1442 = vpop.xlane.xlu0 %1441
        %v1443 = vsel %vm1018, %v1439, 0.0
        %1444 = vadd.xlane.f32.xlu0 %v1443
        %v1445 = vpop.xlane.xlu0 %1444
        %v1446 = vlaneseq
        %v1447 = vshrl.u32 %v1446, 7
        %v1448 = vsub.s32 6, %v1447
        %v1449 = vrot.slane %v1295, %v1448
        %v1450 = vmul.f32 %v1442, %v1449
        %v1451 = vmul.f32 %v1445, %v1449
        %v1452 = vadd.f32 %v1436, %v1450
        %v1453 = vadd.f32 %v1437, %v1451
        %v1454 = vsel %vm1211, %v1288, 0.0
        %v1455 = vsel %vm1212, %v1290, 0.0
        %v1456 = vsel %vm1018, %v1454, 0.0
        %1457 = vadd.xlane.f32.xlu0 %v1456
        %v1458 = vpop.xlane.xlu0 %1457
        %v1459 = vsel %vm1018, %v1455, 0.0
        %1460 = vadd.xlane.f32.xlu0 %v1459
        %v1461 = vpop.xlane.xlu0 %1460
        %v1462 = vlaneseq
        %v1463 = vshrl.u32 %v1462, 7
        %v1464 = vsub.s32 7, %v1463
        %v1465 = vrot.slane %v1295, %v1464
        %v1466 = vmul.f32 %v1458, %v1465
        %v1467 = vmul.f32 %v1461, %v1465
        %v1468 = vadd.f32 %v1452, %v1466
        %v1469 = vadd.f32 %v1453, %v1467
        %v1470 = vsel %vm1225, %v1288, 0.0
        %v1471 = vsel %vm1226, %v1290, 0.0
        %v1472 = vsel %vm1018, %v1470, 0.0
        %1473 = vadd.xlane.f32.xlu0 %v1472
        %v1474 = vpop.xlane.xlu0 %1473
        %v1475 = vsel %vm1018, %v1471, 0.0
        %1476 = vadd.xlane.f32.xlu0 %v1475
        %v1477 = vpop.xlane.xlu0 %1476
        %v1478 = vlaneseq
        %v1479 = vshrl.u32 %v1478, 7
        %v1480 = vsub.s32 0, %v1479
        %v1481 = vrot.slane %v1296, %v1480
        %v1482 = vmul.f32 %v1474, %v1481
        %v1483 = vmul.f32 %v1477, %v1481
        %v1484 = vadd.f32 %v1468, %v1482
        %v1485 = vadd.f32 %v1469, %v1483
        %v1486 = vsel %vm1239, %v1288, 0.0
        %v1487 = vsel %vm1240, %v1290, 0.0
        %v1488 = vsel %vm1018, %v1486, 0.0
        %1489 = vadd.xlane.f32.xlu0 %v1488
        %v1490 = vpop.xlane.xlu0 %1489
        %v1491 = vsel %vm1018, %v1487, 0.0
        %1492 = vadd.xlane.f32.xlu0 %v1491
        %v1493 = vpop.xlane.xlu0 %1492
        %v1494 = vlaneseq
        %v1495 = vshrl.u32 %v1494, 7
        %v1496 = vsub.s32 1, %v1495
        %v1497 = vrot.slane %v1296, %v1496
        %v1498 = vmul.f32 %v1490, %v1497
        %v1499 = vmul.f32 %v1493, %v1497
        %v1500 = vadd.f32 %v1484, %v1498
        %v1501 = vadd.f32 %v1485, %v1499
        %v1502 = vsel %vm1253, %v1288, 0.0
        %v1503 = vsel %vm1254, %v1290, 0.0
        %v1504 = vsel %vm1018, %v1502, 0.0
        %1505 = vadd.xlane.f32.xlu0 %v1504
        %v1506 = vpop.xlane.xlu0 %1505
        %v1507 = vsel %vm1018, %v1503, 0.0
        %1508 = vadd.xlane.f32.xlu0 %v1507
        %v1509 = vpop.xlane.xlu0 %1508
        %v1510 = vlaneseq
        %v1511 = vshrl.u32 %v1510, 7
        %v1512 = vsub.s32 2, %v1511
        %v1513 = vrot.slane %v1296, %v1512
        %v1514 = vmul.f32 %v1506, %v1513
        %v1515 = vmul.f32 %v1509, %v1513
        %v1516 = vadd.f32 %v1500, %v1514
        %v1517 = vadd.f32 %v1501, %v1515
        %v1518 = vpack.c.bf16 %v1517, %v1516
        %v1519 = vld [vmem:[%s738] sm:$0xf]
        %v1520 = vld [vmem:[%s738 + $0x4] sm:$0xf]
        %s1521 = scalar_lea.vmem %s755, 8 [#allocation14]
        %v1522 = vld [vmem:[%s1521] sm:$0xf]
        %v1523 = vld [vmem:[%s1521 + $0x4] sm:$0x3]
        %1525 = vrot.lane.b32.xlu0 %v1009, 112
        %v1526 = vpop.permute.xlu0 %1525
        %v1529 = vunpack.c.l.b16 %v1522
        %v1530 = vunpack.c.l.b16 %v1523
        %v1531 = vpack.c.b16 %v1530, %v1529
        %v1533 = vsel %vm1018, %v1526, 0
        %v1536 = vsel %vm1018, %v1531, 0
        %1538 = vmatprep.subr.bf16.mxu0 0
        %1539 = vmatpush1.bf16.xpose.msra.mxu0 %v1536
        %1540 = vmatprep.subr.bf16.mxu0 0
        %1541 = vmatpush1.bf16.xpose.msra.mxu0 0
        %1542 = vmatprep.subr.bf16.mxu0 0
        %1543 = vmatpush1.bf16.xpose.msra.mxu0 0
        %1544 = vmatprep.subr.bf16.mxu0 0
        %1545 = vmatpush1.bf16.xpose.msra.mxu0 0
        %1546 = vmatprep.subr.bf16.mxu0 0
        %1547 = vmatpush1.bf16.xpose.msra.mxu0 0
        %1548 = vmatprep.subr.bf16.mxu0 0
        %1549 = vmatpush1.bf16.xpose.msra.mxu0 0
        %1550 = vmatprep.subr.bf16.mxu0 0
        %1551 = vmatpush1.bf16.xpose.msra.mxu0 0
        %1552 = vmatprep.subr.bf16.mxu0 0
        %1553 = vmatpush1.bf16.xpose.msra.mxu0 0
        %1554 = vmatprep.subr.bf16.mxu0 0
        %1555 = vmatpush1.bf16.xpose.msra.mxu0 0
        %1556 = vmatprep.subr.bf16.mxu0 0
        %1557 = vmatpush1.bf16.xpose.msra.mxu0 0
        %1558 = vmatprep.subr.bf16.mxu0 0
        %1559 = vmatpush1.bf16.xpose.msra.mxu0 0
        %1560 = vmatprep.subr.bf16.mxu0 0
        %1561 = vmatpush1.bf16.xpose.msra.mxu0 0
        %1562 = vmatprep.subr.bf16.mxu0 0
        %1563 = vmatpush1.bf16.xpose.msra.mxu0 0
        %1564 = vmatprep.subr.bf16.mxu0 0
        %1565 = vmatpush1.bf16.xpose.msra.mxu0 0
        %1566 = vmatprep.subr.bf16.mxu0 0
        %1567 = vmatpush1.bf16.xpose.msra.mxu0 0
        %1568 = vmatprep.subr.bf16.mxu0 0
        %1569 = vmatpush1.bf16.xpose.msra.mxu0 0
        %1570 = vmatprep.mubr.bf16.mxu0 0
        %1571 = vmatmul.mubr.bf16.gmra.mrb[0].mxu0 %v1533
        %v1572 = vpop.f32.mrb[0].mxu0
        %v1573 = vadd.f32 0.0, %v1572
        %v1574 = vpop.f32.mrb[0].mxu0
        %v1575 = vpop.f32.mrb[0].mxu0
        %v1576 = vadd.f32 0.0, %v1575
        %v1577 = vpop.f32.mrb[0].mxu0
        %1578 = vdwg.mxu0
        %1580 = vset.pattern.permute.xlu0 0
        %1581 = vperm.xlu0 %1580, %v1573
        %v1582 = vpop.permute.xlu0 %1581
        %1585 = vset.pattern.permute.xlu0 0
        %1586 = vperm.xlu0 %1585, %v1576
        %v1587 = vpop.permute.xlu0 %1586
        %v1589 = vsel %vm1066, %v1582, 0.0
        %v1590 = vsel %vm1067, %v1587, 0.0
        %1591 = vrot.lane.b32.xlu0 %v1010, 80
        %v1592 = vpop.permute.xlu0 %1591
        %v1594 = vsel %vm1018, %v1592, 0
        %1596 = vmatprep.subr.bf16.mxu0 0
        %1597 = vmatpush1.bf16.xpose.msra.mxu0 %v1594
        %1598 = vmatprep.subr.bf16.mxu0 0
        %1599 = vmatpush1.bf16.xpose.msra.mxu0 0
        %1600 = vmatprep.subr.bf16.mxu0 0
        %1601 = vmatpush1.bf16.xpose.msra.mxu0 0
        %1602 = vmatprep.subr.bf16.mxu0 0
        %1603 = vmatpush1.bf16.xpose.msra.mxu0 0
        %1604 = vmatprep.subr.bf16.mxu0 0
        %1605 = vmatpush1.bf16.xpose.msra.mxu0 0
        %1606 = vmatprep.subr.bf16.mxu0 0
        %1607 = vmatpush1.bf16.xpose.msra.mxu0 0
        %1608 = vmatprep.subr.bf16.mxu0 0
        %1609 = vmatpush1.bf16.xpose.msra.mxu0 0
        %1610 = vmatprep.subr.bf16.mxu0 0
        %1611 = vmatpush1.bf16.xpose.msra.mxu0 0
        %1612 = vmatprep.subr.bf16.mxu0 0
        %1613 = vmatpush1.bf16.xpose.msra.mxu0 0
        %1614 = vmatprep.subr.bf16.mxu0 0
        %1615 = vmatpush1.bf16.xpose.msra.mxu0 0
        %1616 = vmatprep.subr.bf16.mxu0 0
        %1617 = vmatpush1.bf16.xpose.msra.mxu0 0
        %1618 = vmatprep.subr.bf16.mxu0 0
        %1619 = vmatpush1.bf16.xpose.msra.mxu0 0
        %1620 = vmatprep.subr.bf16.mxu0 0
        %1621 = vmatpush1.bf16.xpose.msra.mxu0 0
        %1622 = vmatprep.subr.bf16.mxu0 0
        %1623 = vmatpush1.bf16.xpose.msra.mxu0 0
        %1624 = vmatprep.subr.bf16.mxu0 0
        %1625 = vmatpush1.bf16.xpose.msra.mxu0 0
        %1626 = vmatprep.subr.bf16.mxu0 0
        %1627 = vmatpush1.bf16.xpose.msra.mxu0 0
        %1628 = vmatprep.mubr.bf16.mxu0 0
        %1629 = vmatmul.mubr.bf16.gmra.mrb[0].mxu0 %v1533
        %v1630 = vpop.f32.mrb[0].mxu0
        %v1631 = vadd.f32 %v1589, %v1630
        %v1632 = vpop.f32.mrb[0].mxu0
        %v1633 = vpop.f32.mrb[0].mxu0
        %v1634 = vadd.f32 %v1590, %v1633
        %v1635 = vpop.f32.mrb[0].mxu0
        %1636 = vdwg.mxu0
        %1637 = vset.pattern.permute.xlu0 1
        %1638 = vperm.xlu0 %1637, %v1573
        %v1639 = vpop.permute.xlu0 %1638
        %1641 = vset.pattern.permute.xlu0 1
        %1642 = vperm.xlu0 %1641, %v1576
        %v1643 = vpop.permute.xlu0 %1642
        %v1645 = vsel %vm1127, %v1639, 0.0
        %v1646 = vsel %vm1128, %v1643, 0.0
        %v1647 = vadd.f32 %v1631, %v1645
        %v1648 = vadd.f32 %v1634, %v1646
        %1649 = vset.pattern.permute.xlu0 2
        %1650 = vperm.xlu0 %1649, %v1573
        %v1651 = vpop.permute.xlu0 %1650
        %1653 = vset.pattern.permute.xlu0 2
        %1654 = vperm.xlu0 %1653, %v1576
        %v1655 = vpop.permute.xlu0 %1654
        %v1657 = vsel %vm1141, %v1651, 0.0
        %v1658 = vsel %vm1142, %v1655, 0.0
        %v1659 = vadd.f32 %v1647, %v1657
        %v1660 = vadd.f32 %v1648, %v1658
        %1661 = vset.pattern.permute.xlu0 3
        %1662 = vperm.xlu0 %1661, %v1573
        %v1663 = vpop.permute.xlu0 %1662
        %1665 = vset.pattern.permute.xlu0 3
        %1666 = vperm.xlu0 %1665, %v1576
        %v1667 = vpop.permute.xlu0 %1666
        %v1669 = vsel %vm1155, %v1663, 0.0
        %v1670 = vsel %vm1156, %v1667, 0.0
        %v1671 = vadd.f32 %v1659, %v1669
        %v1672 = vadd.f32 %v1660, %v1670
        %1673 = vset.pattern.permute.xlu0 4
        %1674 = vperm.xlu0 %1673, %v1573
        %v1675 = vpop.permute.xlu0 %1674
        %1677 = vset.pattern.permute.xlu0 4
        %1678 = vperm.xlu0 %1677, %v1576
        %v1679 = vpop.permute.xlu0 %1678
        %v1681 = vsel %vm1169, %v1675, 0.0
        %v1682 = vsel %vm1170, %v1679, 0.0
        %v1683 = vadd.f32 %v1671, %v1681
        %v1684 = vadd.f32 %v1672, %v1682
        %1685 = vset.pattern.permute.xlu0 5
        %1686 = vperm.xlu0 %1685, %v1573
        %v1687 = vpop.permute.xlu0 %1686
        %1689 = vset.pattern.permute.xlu0 5
        %1690 = vperm.xlu0 %1689, %v1576
        %v1691 = vpop.permute.xlu0 %1690
        %v1693 = vsel %vm1183, %v1687, 0.0
        %v1694 = vsel %vm1184, %v1691, 0.0
        %v1695 = vadd.f32 %v1683, %v1693
        %v1696 = vadd.f32 %v1684, %v1694
        %1697 = vset.pattern.permute.xlu0 6
        %1698 = vperm.xlu0 %1697, %v1573
        %v1699 = vpop.permute.xlu0 %1698
        %1701 = vset.pattern.permute.xlu0 6
        %1702 = vperm.xlu0 %1701, %v1576
        %v1703 = vpop.permute.xlu0 %1702
        %v1705 = vsel %vm1197, %v1699, 0.0
        %v1706 = vsel %vm1198, %v1703, 0.0
        %v1707 = vadd.f32 %v1695, %v1705
        %v1708 = vadd.f32 %v1696, %v1706
        %1709 = vset.pattern.permute.xlu0 7
        %1710 = vperm.xlu0 %1709, %v1573
        %v1711 = vpop.permute.xlu0 %1710
        %1713 = vset.pattern.permute.xlu0 7
        %1714 = vperm.xlu0 %1713, %v1576
        %v1715 = vpop.permute.xlu0 %1714
        %v1717 = vsel %vm1211, %v1711, 0.0
        %v1718 = vsel %vm1212, %v1715, 0.0
        %v1719 = vadd.f32 %v1707, %v1717
        %v1720 = vadd.f32 %v1708, %v1718
        %1721 = vset.pattern.permute.xlu0 8
        %1722 = vperm.xlu0 %1721, %v1573
        %v1723 = vpop.permute.xlu0 %1722
        %1725 = vset.pattern.permute.xlu0 8
        %1726 = vperm.xlu0 %1725, %v1576
        %v1727 = vpop.permute.xlu0 %1726
        %v1729 = vsel %vm1225, %v1723, 0.0
        %v1730 = vsel %vm1226, %v1727, 0.0
        %v1731 = vadd.f32 %v1719, %v1729
        %v1732 = vadd.f32 %v1720, %v1730
        %1733 = vset.pattern.permute.xlu0 9
        %1734 = vperm.xlu0 %1733, %v1573
        %v1735 = vpop.permute.xlu0 %1734
        %1737 = vset.pattern.permute.xlu0 9
        %1738 = vperm.xlu0 %1737, %v1576
        %v1739 = vpop.permute.xlu0 %1738
        %v1741 = vsel %vm1239, %v1735, 0.0
        %v1742 = vsel %vm1240, %v1739, 0.0
        %v1743 = vadd.f32 %v1731, %v1741
        %v1744 = vadd.f32 %v1732, %v1742
        %1745 = vset.pattern.permute.xlu0 10
        %1746 = vperm.xlu0 %1745, %v1573
        %v1747 = vpop.permute.xlu0 %1746
        %1749 = vset.pattern.permute.xlu0 10
        %1750 = vperm.xlu0 %1749, %v1576
        %v1751 = vpop.permute.xlu0 %1750
        %v1753 = vsel %vm1253, %v1747, 0.0
        %v1754 = vsel %vm1254, %v1751, 0.0
        %v1755 = vadd.f32 %v1743, %v1753
        %v1756 = vadd.f32 %v1744, %v1754
        %v1757 = vsel %vm932, -10000.0, %v1755
        %v1758 = vsel %vm933, -10000.0, %v1756
        %v1759 = vsel %vm1018, %v1757, -inf
        %1760 = vmax.xlane.f32.xlu0 %v1759
        %v1761 = vpop.xlane.xlu0 %1760
        %v1762 = vsel %vm1018, %v1758, -inf
        %1763 = vmax.xlane.f32.xlu0 %v1762
        %v1764 = vpop.xlane.xlu0 %1763
        %v1765 = vsub.f32 %v1757, %v1761
        %v1766 = vsub.f32 %v1758, %v1764
        %v1767 = vmul.f32 %v1765, 1.442695
        %v1768 = vpow.pop %v1767
        %v1769 = vmul.f32 %v1766, 1.442695
        %v1770 = vpow.pop %v1769
        %v1771 = vsel %vm1018, %v1768, 0.0
        %1772 = vadd.xlane.f32.xlu0 %v1771
        %v1773 = vpop.xlane.xlu0 %1772
        %v1774 = vsel %vm1018, %v1770, 0.0
        %1775 = vadd.xlane.f32.xlu0 %v1774
        %v1776 = vpop.xlane.xlu0 %1775
        %v1777 = vrcp.pop %v1773
        %v1778 = vmul.f32 %v1768, %v1777
        %v1779 = vrcp.pop %v1776
        %v1780 = vmul.f32 %v1770, %v1779
        %v1781 = vpack.c.bf16 %v1780, %v1778
        %s1782 = scalar_lea.vmem %s755, 24 [#allocation14]
        %v1783 = vld [vmem:[%s1782] sm:$0xf]
        %v1784 = vld [vmem:[%s1782 + $0x4] sm:$0x3]
        %v1785 = vunpack.c.l.bf16 %v1783
        %v1786 = vunpack.c.l.bf16 %v1784
        %v1787 = vsel %vm1066, %v1778, 0.0
        %v1788 = vsel %vm1067, %v1780, 0.0
        %v1789 = vsel %vm1018, %v1787, 0.0
        %1790 = vadd.xlane.f32.xlu0 %v1789
        %v1791 = vpop.xlane.xlu0 %1790
        %v1792 = vsel %vm1018, %v1788, 0.0
        %1793 = vadd.xlane.f32.xlu0 %v1792
        %v1794 = vpop.xlane.xlu0 %1793
        %v1795 = vlaneseq
        %v1796 = vshrl.u32 %v1795, 7
        %v1797 = vsub.s32 0, %v1796
        %v1798 = vrot.slane %v1785, %v1797
        %v1799 = vmul.f32 %v1791, %v1798
        %v1800 = vmul.f32 %v1794, %v1798
        %1801 = vrot.lane.b32.xlu0 %v1010, 48
        %v1802 = vpop.permute.xlu0 %1801
        %v1805 = vsel %vm1018, %v1781, 0
        %1807 = vmatprep.subr.bf16.mxu0 0
        %1808 = vmatpush1.bf16.msra.mxu0 %v1802
        %1809 = vmatprep.subr.bf16.mxu0 0
        %1810 = vmatpush1.bf16.msra.mxu0 0
        %1811 = vmatprep.subr.bf16.mxu0 0
        %1812 = vmatpush1.bf16.msra.mxu0 0
        %1813 = vmatprep.subr.bf16.mxu0 0
        %1814 = vmatpush1.bf16.msra.mxu0 0
        %1815 = vmatprep.subr.bf16.mxu0 0
        %1816 = vmatpush1.bf16.msra.mxu0 0
        %1817 = vmatprep.subr.bf16.mxu0 0
        %1818 = vmatpush1.bf16.msra.mxu0 0
        %1819 = vmatprep.subr.bf16.mxu0 0
        %1820 = vmatpush1.bf16.msra.mxu0 0
        %1821 = vmatprep.subr.bf16.mxu0 0
        %1822 = vmatpush1.bf16.msra.mxu0 0
        %1823 = vmatprep.subr.bf16.mxu0 0
        %1824 = vmatpush1.bf16.msra.mxu0 0
        %1825 = vmatprep.subr.bf16.mxu0 0
        %1826 = vmatpush1.bf16.msra.mxu0 0
        %1827 = vmatprep.subr.bf16.mxu0 0
        %1828 = vmatpush1.bf16.msra.mxu0 0
        %1829 = vmatprep.subr.bf16.mxu0 0
        %1830 = vmatpush1.bf16.msra.mxu0 0
        %1831 = vmatprep.subr.bf16.mxu0 0
        %1832 = vmatpush1.bf16.msra.mxu0 0
        %1833 = vmatprep.subr.bf16.mxu0 0
        %1834 = vmatpush1.bf16.msra.mxu0 0
        %1835 = vmatprep.subr.bf16.mxu0 0
        %1836 = vmatpush1.bf16.msra.mxu0 0
        %1837 = vmatprep.subr.bf16.mxu0 0
        %1838 = vmatpush1.bf16.msra.mxu0 0
        %1839 = vmatprep.mubr.bf16.mxu0 0
        %1840 = vmatmul.mubr.bf16.gmra.mrb[0].mxu0 %v1805
        %v1841 = vpop.f32.mrb[0].mxu0
        %v1842 = vadd.f32 %v1799, %v1841
        %v1843 = vpop.f32.mrb[0].mxu0
        %v1844 = vpop.f32.mrb[0].mxu0
        %v1845 = vadd.f32 %v1800, %v1844
        %v1846 = vpop.f32.mrb[0].mxu0
        %1847 = vdwg.mxu0
        %v1848 = vsel %vm1127, %v1778, 0.0
        %v1849 = vsel %vm1128, %v1780, 0.0
        %v1850 = vsel %vm1018, %v1848, 0.0
        %1851 = vadd.xlane.f32.xlu0 %v1850
        %v1852 = vpop.xlane.xlu0 %1851
        %v1853 = vsel %vm1018, %v1849, 0.0
        %1854 = vadd.xlane.f32.xlu0 %v1853
        %v1855 = vpop.xlane.xlu0 %1854
        %v1856 = vlaneseq
        %v1857 = vshrl.u32 %v1856, 7
        %v1858 = vsub.s32 1, %v1857
        %v1859 = vrot.slane %v1785, %v1858
        %v1860 = vmul.f32 %v1852, %v1859
        %v1861 = vmul.f32 %v1855, %v1859
        %v1862 = vadd.f32 %v1842, %v1860
        %v1863 = vadd.f32 %v1845, %v1861
        %v1864 = vsel %vm1141, %v1778, 0.0
        %v1865 = vsel %vm1142, %v1780, 0.0
        %v1866 = vsel %vm1018, %v1864, 0.0
        %1867 = vadd.xlane.f32.xlu0 %v1866
        %v1868 = vpop.xlane.xlu0 %1867
        %v1869 = vsel %vm1018, %v1865, 0.0
        %1870 = vadd.xlane.f32.xlu0 %v1869
        %v1871 = vpop.xlane.xlu0 %1870
        %v1872 = vlaneseq
        %v1873 = vshrl.u32 %v1872, 7
        %v1874 = vsub.s32 2, %v1873
        %v1875 = vrot.slane %v1785, %v1874
        %v1876 = vmul.f32 %v1868, %v1875
        %v1877 = vmul.f32 %v1871, %v1875
        %v1878 = vadd.f32 %v1862, %v1876
        %v1879 = vadd.f32 %v1863, %v1877
        %v1880 = vsel %vm1155, %v1778, 0.0
        %v1881 = vsel %vm1156, %v1780, 0.0
        %v1882 = vsel %vm1018, %v1880, 0.0
        %1883 = vadd.xlane.f32.xlu0 %v1882
        %v1884 = vpop.xlane.xlu0 %1883
        %v1885 = vsel %vm1018, %v1881, 0.0
        %1886 = vadd.xlane.f32.xlu0 %v1885
        %v1887 = vpop.xlane.xlu0 %1886
        %v1888 = vlaneseq
        %v1889 = vshrl.u32 %v1888, 7
        %v1890 = vsub.s32 3, %v1889
        %v1891 = vrot.slane %v1785, %v1890
        %v1892 = vmul.f32 %v1884, %v1891
        %v1893 = vmul.f32 %v1887, %v1891
        %v1894 = vadd.f32 %v1878, %v1892
        %v1895 = vadd.f32 %v1879, %v1893
        %v1896 = vsel %vm1169, %v1778, 0.0
        %v1897 = vsel %vm1170, %v1780, 0.0
        %v1898 = vsel %vm1018, %v1896, 0.0
        %1899 = vadd.xlane.f32.xlu0 %v1898
        %v1900 = vpop.xlane.xlu0 %1899
        %v1901 = vsel %vm1018, %v1897, 0.0
        %1902 = vadd.xlane.f32.xlu0 %v1901
        %v1903 = vpop.xlane.xlu0 %1902
        %v1904 = vlaneseq
        %v1905 = vshrl.u32 %v1904, 7
        %v1906 = vsub.s32 4, %v1905
        %v1907 = vrot.slane %v1785, %v1906
        %v1908 = vmul.f32 %v1900, %v1907
        %v1909 = vmul.f32 %v1903, %v1907
        %v1910 = vadd.f32 %v1894, %v1908
        %v1911 = vadd.f32 %v1895, %v1909
        %v1912 = vsel %vm1183, %v1778, 0.0
        %v1913 = vsel %vm1184, %v1780, 0.0
        %v1914 = vsel %vm1018, %v1912, 0.0
        %1915 = vadd.xlane.f32.xlu0 %v1914
        %v1916 = vpop.xlane.xlu0 %1915
        %v1917 = vsel %vm1018, %v1913, 0.0
        %1918 = vadd.xlane.f32.xlu0 %v1917
        %v1919 = vpop.xlane.xlu0 %1918
        %v1920 = vlaneseq
        %v1921 = vshrl.u32 %v1920, 7
        %v1922 = vsub.s32 5, %v1921
        %v1923 = vrot.slane %v1785, %v1922
        %v1924 = vmul.f32 %v1916, %v1923
        %v1925 = vmul.f32 %v1919, %v1923
        %v1926 = vadd.f32 %v1910, %v1924
        %v1927 = vadd.f32 %v1911, %v1925
        %v1928 = vsel %vm1197, %v1778, 0.0
        %v1929 = vsel %vm1198, %v1780, 0.0
        %v1930 = vsel %vm1018, %v1928, 0.0
        %1931 = vadd.xlane.f32.xlu0 %v1930
        %v1932 = vpop.xlane.xlu0 %1931
        %v1933 = vsel %vm1018, %v1929, 0.0
        %1934 = vadd.xlane.f32.xlu0 %v1933
        %v1935 = vpop.xlane.xlu0 %1934
        %v1936 = vlaneseq
        %v1937 = vshrl.u32 %v1936, 7
        %v1938 = vsub.s32 6, %v1937
        %v1939 = vrot.slane %v1785, %v1938
        %v1940 = vmul.f32 %v1932, %v1939
        %v1941 = vmul.f32 %v1935, %v1939
        %v1942 = vadd.f32 %v1926, %v1940
        %v1943 = vadd.f32 %v1927, %v1941
        %v1944 = vsel %vm1211, %v1778, 0.0
        %v1945 = vsel %vm1212, %v1780, 0.0
        %v1946 = vsel %vm1018, %v1944, 0.0
        %1947 = vadd.xlane.f32.xlu0 %v1946
        %v1948 = vpop.xlane.xlu0 %1947
        %v1949 = vsel %vm1018, %v1945, 0.0
        %1950 = vadd.xlane.f32.xlu0 %v1949
        %v1951 = vpop.xlane.xlu0 %1950
        %v1952 = vlaneseq
        %v1953 = vshrl.u32 %v1952, 7
        %v1954 = vsub.s32 7, %v1953
        %v1955 = vrot.slane %v1785, %v1954
        %v1956 = vmul.f32 %v1948, %v1955
        %v1957 = vmul.f32 %v1951, %v1955
        %v1958 = vadd.f32 %v1942, %v1956
        %v1959 = vadd.f32 %v1943, %v1957
        %v1960 = vsel %vm1225, %v1778, 0.0
        %v1961 = vsel %vm1226, %v1780, 0.0
        %v1962 = vsel %vm1018, %v1960, 0.0
        %1963 = vadd.xlane.f32.xlu0 %v1962
        %v1964 = vpop.xlane.xlu0 %1963
        %v1965 = vsel %vm1018, %v1961, 0.0
        %1966 = vadd.xlane.f32.xlu0 %v1965
        %v1967 = vpop.xlane.xlu0 %1966
        %v1968 = vlaneseq
        %v1969 = vshrl.u32 %v1968, 7
        %v1970 = vsub.s32 0, %v1969
        %v1971 = vrot.slane %v1786, %v1970
        %v1972 = vmul.f32 %v1964, %v1971
        %v1973 = vmul.f32 %v1967, %v1971
        %v1974 = vadd.f32 %v1958, %v1972
        %v1975 = vadd.f32 %v1959, %v1973
        %v1976 = vsel %vm1239, %v1778, 0.0
        %v1977 = vsel %vm1240, %v1780, 0.0
        %v1978 = vsel %vm1018, %v1976, 0.0
        %1979 = vadd.xlane.f32.xlu0 %v1978
        %v1980 = vpop.xlane.xlu0 %1979
        %v1981 = vsel %vm1018, %v1977, 0.0
        %1982 = vadd.xlane.f32.xlu0 %v1981
        %v1983 = vpop.xlane.xlu0 %1982
        %v1984 = vlaneseq
        %v1985 = vshrl.u32 %v1984, 7
        %v1986 = vsub.s32 1, %v1985
        %v1987 = vrot.slane %v1786, %v1986
        %v1988 = vmul.f32 %v1980, %v1987
        %v1989 = vmul.f32 %v1983, %v1987
        %v1990 = vadd.f32 %v1974, %v1988
        %v1991 = vadd.f32 %v1975, %v1989
        %v1992 = vsel %vm1253, %v1778, 0.0
        %v1993 = vsel %vm1254, %v1780, 0.0
        %v1994 = vsel %vm1018, %v1992, 0.0
        %1995 = vadd.xlane.f32.xlu0 %v1994
        %v1996 = vpop.xlane.xlu0 %1995
        %v1997 = vsel %vm1018, %v1993, 0.0
        %1998 = vadd.xlane.f32.xlu0 %v1997
        %v1999 = vpop.xlane.xlu0 %1998
        %v2000 = vlaneseq
        %v2001 = vshrl.u32 %v2000, 7
        %v2002 = vsub.s32 2, %v2001
        %v2003 = vrot.slane %v1786, %v2002
        %v2004 = vmul.f32 %v1996, %v2003
        %v2005 = vmul.f32 %v1999, %v2003
        %v2006 = vadd.f32 %v1990, %v2004
        %v2007 = vadd.f32 %v1991, %v2005
        %v2008 = vpack.c.bf16 %v2007, %v2006
        %v2009 = vld [vmem:[%s738 + $0x8] sm:$0xf]
        %v2010 = vld [vmem:[%s738 + $0xc] sm:$0xf]
        %v2013 = vunpack.c.l.b16 %v2009
        %v2014 = vunpack.c.l.b16 %v2010
        %v2015 = vpack.c.b16 %v2014, %v2013
        %v2018 = vsel %vm1018, %v2008, 0
        %2020 = vmatprep.subr.bf16.mxu0 0
        %2021 = vmatpush1.bf16.msra.mxu0 %v2015
        %2022 = vmatprep.subr.bf16.mxu0 0
        %2023 = vmatpush1.bf16.msra.mxu0 0
        %2024 = vmatprep.subr.bf16.mxu0 0
        %2025 = vmatpush1.bf16.msra.mxu0 0
        %2026 = vmatprep.subr.bf16.mxu0 0
        %2027 = vmatpush1.bf16.msra.mxu0 0
        %2028 = vmatprep.subr.bf16.mxu0 0
        %2029 = vmatpush1.bf16.msra.mxu0 0
        %2030 = vmatprep.subr.bf16.mxu0 0
        %2031 = vmatpush1.bf16.msra.mxu0 0
        %2032 = vmatprep.subr.bf16.mxu0 0
        %2033 = vmatpush1.bf16.msra.mxu0 0
        %2034 = vmatprep.subr.bf16.mxu0 0
        %2035 = vmatpush1.bf16.msra.mxu0 0
        %2036 = vmatprep.subr.bf16.mxu0 0
        %2037 = vmatpush1.bf16.msra.mxu0 0
        %2038 = vmatprep.subr.bf16.mxu0 0
        %2039 = vmatpush1.bf16.msra.mxu0 0
        %2040 = vmatprep.subr.bf16.mxu0 0
        %2041 = vmatpush1.bf16.msra.mxu0 0
        %2042 = vmatprep.subr.bf16.mxu0 0
        %2043 = vmatpush1.bf16.msra.mxu0 0
        %2044 = vmatprep.subr.bf16.mxu0 0
        %2045 = vmatpush1.bf16.msra.mxu0 0
        %2046 = vmatprep.subr.bf16.mxu0 0
        %2047 = vmatpush1.bf16.msra.mxu0 0
        %2048 = vmatprep.subr.bf16.mxu0 0
        %2049 = vmatpush1.bf16.msra.mxu0 0
        %2050 = vmatprep.subr.bf16.mxu0 0
        %2051 = vmatpush1.bf16.msra.mxu0 0
        %2052 = vmatprep.mubr.bf16.mxu0 0
        %2053 = vmatmul.mubr.bf16.gmra.mrb[0].mxu0 %v2018
        %v2054 = vpop.f32.mrb[0].mxu0
        %v2055 = vadd.f32 0.0, %v2054
        %v2056 = vpop.f32.mrb[0].mxu0
        %v2057 = vpop.f32.mrb[0].mxu0
        %v2058 = vadd.f32 0.0, %v2057
        %v2059 = vpop.f32.mrb[0].mxu0
        %2060 = vdwg.mxu0
        %v2063 = vunpack.c.l.b16 %v1519
        %v2064 = vunpack.c.l.b16 %v1520
        %v2065 = vpack.c.b16 %v2064, %v2063
        %v2068 = vsel %vm1018, %v1518, 0
        %2070 = vmatprep.subr.bf16.mxu0 0
        %2071 = vmatpush1.bf16.msra.mxu0 %v2065
        %2072 = vmatprep.subr.bf16.mxu0 0
        %2073 = vmatpush1.bf16.msra.mxu0 0
        %2074 = vmatprep.subr.bf16.mxu0 0
        %2075 = vmatpush1.bf16.msra.mxu0 0
        %2076 = vmatprep.subr.bf16.mxu0 0
        %2077 = vmatpush1.bf16.msra.mxu0 0
        %2078 = vmatprep.subr.bf16.mxu0 0
        %2079 = vmatpush1.bf16.msra.mxu0 0
        %2080 = vmatprep.subr.bf16.mxu0 0
        %2081 = vmatpush1.bf16.msra.mxu0 0
        %2082 = vmatprep.subr.bf16.mxu0 0
        %2083 = vmatpush1.bf16.msra.mxu0 0
        %2084 = vmatprep.subr.bf16.mxu0 0
        %2085 = vmatpush1.bf16.msra.mxu0 0
        %2086 = vmatprep.subr.bf16.mxu0 0
        %2087 = vmatpush1.bf16.msra.mxu0 0
        %2088 = vmatprep.subr.bf16.mxu0 0
        %2089 = vmatpush1.bf16.msra.mxu0 0
        %2090 = vmatprep.subr.bf16.mxu0 0
        %2091 = vmatpush1.bf16.msra.mxu0 0
        %2092 = vmatprep.subr.bf16.mxu0 0
        %2093 = vmatpush1.bf16.msra.mxu0 0
        %2094 = vmatprep.subr.bf16.mxu0 0
        %2095 = vmatpush1.bf16.msra.mxu0 0
        %2096 = vmatprep.subr.bf16.mxu0 0
        %2097 = vmatpush1.bf16.msra.mxu0 0
        %2098 = vmatprep.subr.bf16.mxu0 0
        %2099 = vmatpush1.bf16.msra.mxu0 0
        %2100 = vmatprep.subr.bf16.mxu0 0
        %2101 = vmatpush1.bf16.msra.mxu0 0
        %2102 = vmatprep.mubr.bf16.mxu0 0
        %2103 = vmatmul.mubr.bf16.gmra.mrb[0].mxu0 %v2068
        %v2104 = vpop.f32.mrb[0].mxu0
        %v2105 = vadd.f32 %v2055, %v2104
        %v2106 = vpop.f32.mrb[0].mxu0
        %v2107 = vpop.f32.mrb[0].mxu0
        %v2108 = vadd.f32 %v2058, %v2107
        %v2109 = vpop.f32.mrb[0].mxu0
        %2110 = vdwg.mxu0
        %v2111 = vld [vmem:[%s746] sm:$0x1]
        %v2113 = vlaneseq
        %v2114 = vshrl.u32 %v2113, 7
        %v2115 = vsub.s32 0, %v2114
        %v2116 = vrot.slane %v2111, %v2115
        %v2118 = vadd.f32 %v2105, %v2116
        %v2119 = vadd.f32 %v2108, %v2116
        %v2120 = vadd.f32 %v936, %v2118
        %v2121 = vadd.f32 %v937, %v2119
        %v2122 = vsel %vm962, %v2120, 0.0
        %2123 = vadd.xlane.f32.xlu0 %v2122
        %v2124 = vpop.xlane.xlu0 %2123
        %v2125 = vsel %vm962, %v2121, 0.0
        %2126 = vadd.xlane.f32.xlu0 %v2125
        %v2127 = vpop.xlane.xlu0 %2126
        %v2128 = vrcp.pop 32.0
        %v2129 = vmul.f32 %v2124, %v2128
        %v2130 = vmul.f32 %v2127, %v2128
        %v2131 = vsub.f32 %v2120, %v2129
        %v2132 = vsub.f32 %v2121, %v2130
        %v2133 = vmul.f32 %v2131, %v2131
        %v2134 = vmul.f32 %v2132, %v2132
        %v2135 = vsel %vm962, %v2133, 0.0
        %2136 = vadd.xlane.f32.xlu0 %v2135
        %v2137 = vpop.xlane.xlu0 %2136
        %v2138 = vsel %vm962, %v2134, 0.0
        %2139 = vadd.xlane.f32.xlu0 %v2138
        %v2140 = vpop.xlane.xlu0 %2139
        %v2141 = vmul.f32 %v2137, %v2128
        %v2142 = vmul.f32 %v2140, %v2128
        %v2143 = vadd.f32 %v2141, 1e-05
        %v2144 = vadd.f32 %v2142, 1e-05
        %v2145 = vrsqrt.pop %v2143
        %v2146 = vrsqrt.pop %v2144
        %v2147 = vmul.f32 %v2131, %v2145
        %v2148 = vmul.f32 %v2132, %v2146
        %v2149 = vlaneseq
        %v2150 = vshrl.u32 %v2149, 7
        %v2151 = vsub.s32 0, %v2150
        %v2152 = vrot.slane %v919, %v2151
        %v2153 = vmul.f32 %v2147, %v2152
        %v2154 = vmul.f32 %v2148, %v2152
        %v2155 = vlaneseq
        %v2156 = vshrl.u32 %v2155, 7
        %v2157 = vsub.s32 1, %v2156
        %v2158 = vrot.slane %v919, %v2157
        %v2159 = vadd.f32 %v2153, %v2158
        %v2160 = vadd.f32 %v2154, %v2158
        %v2161 = vmul.f32 %v2159, %v927
        %v2162 = vmul.f32 %v2160, %v928
        %v2163 = vpack.c.bf16 %v2162, %v2161
        %v2165 = vshrl.u32 %v2163, 16
        %v2167 = vrot.slane %v2165, 7
        %v2168 = vshll.u32 %v2163, 16
        %v2170 = vor.u32 %v2167, %v2168
        %vm2173 = vcmask 1040384
        %vm2174 = vsmask.f32 256
        %vm2175 = vmand %vm2173, %vm2174
        %v2176 = vsel %vm2175, 0, %v2170
        %v2177 = vsel %vm2175, %v2167, 0
        %v2178 = vld [vmem:[%s773] sm:$0xf]
        %v2179 = vld [vmem:[%s773 + $0x4] sm:$0xf]
        %v2180 = vld [vmem:[%s773 + $0x8] sm:$0xf]
        %v2181 = vld [vmem:[%s773 + $0xc] sm:$0xf]
        %s2182 = scalar_lea.vmem %s773, 16 [#allocation17]
        %v2183 = vld [vmem:[%s2182] sm:$0xf]
        %v2184 = vld [vmem:[%s2182 + $0x4] sm:$0xf]
        %v2185 = vld [vmem:[%s2182 + $0x8] sm:$0xf]
        %v2186 = vld [vmem:[%s2182 + $0xc] sm:$0xf]
        %vm2187 = vsmask.f32 7424
        %v2189 = vshrl.u32 %v2176, 16
        %v2191 = vshll.u32 %v2176, 16
        %v2193 = vrot.slane %v2191, 1
        %v2194 = vor.u32 %v2189, %v2193
        %v2196 = vshll.u32 %v2177, 16
        %v2198 = vrot.slane %v2196, 1
        %v2199 = vsel %vm2187, %v2194, %v2198
        %v2204 = vunpack.c.l.b16 %v2183
        %v2205 = vunpack.c.l.b16 %v2184
        %v2206 = vunpack.c.l.b16 %v2185
        %v2207 = vunpack.c.l.b16 %v2186
        %v2208 = vpack.c.b16 %v2205, %v2204
        %v2209 = vpack.c.b16 %v2207, %v2206
        %v2213 = vsel %vm962, %v2199, 0
        %2215 = vmatprep.subr.bf16.mxu0 0
        %2216 = vmatpush1.bf16.msra.mxu0 %v2208
        %2217 = vmatprep.subr.bf16.mxu0 0
        %2218 = vmatpush1.bf16.msra.mxu0 %v2209
        %2219 = vmatprep.subr.bf16.mxu0 0
        %2220 = vmatpush1.bf16.msra.mxu0 0
        %2221 = vmatprep.subr.bf16.mxu0 0
        %2222 = vmatpush1.bf16.msra.mxu0 0
        %2223 = vmatprep.subr.bf16.mxu0 0
        %2224 = vmatpush1.bf16.msra.mxu0 0
        %2225 = vmatprep.subr.bf16.mxu0 0
        %2226 = vmatpush1.bf16.msra.mxu0 0
        %2227 = vmatprep.subr.bf16.mxu0 0
        %2228 = vmatpush1.bf16.msra.mxu0 0
        %2229 = vmatprep.subr.bf16.mxu0 0
        %2230 = vmatpush1.bf16.msra.mxu0 0
        %2231 = vmatprep.subr.bf16.mxu0 0
        %2232 = vmatpush1.bf16.msra.mxu0 0
        %2233 = vmatprep.subr.bf16.mxu0 0
        %2234 = vmatpush1.bf16.msra.mxu0 0
        %2235 = vmatprep.subr.bf16.mxu0 0
        %2236 = vmatpush1.bf16.msra.mxu0 0
        %2237 = vmatprep.subr.bf16.mxu0 0
        %2238 = vmatpush1.bf16.msra.mxu0 0
        %2239 = vmatprep.subr.bf16.mxu0 0
        %2240 = vmatpush1.bf16.msra.mxu0 0
        %2241 = vmatprep.subr.bf16.mxu0 0
        %2242 = vmatpush1.bf16.msra.mxu0 0
        %2243 = vmatprep.subr.bf16.mxu0 0
        %2244 = vmatpush1.bf16.msra.mxu0 0
        %2245 = vmatprep.subr.bf16.mxu0 0
        %2246 = vmatpush1.bf16.msra.mxu0 0
        %2247 = vmatprep.mubr.bf16.mxu0 0
        %2248 = vmatmul.mubr.bf16.gmra.mrb[0].mxu0 %v2213
        %v2249 = vpop.f32.mrb[0].mxu0
        %v2250 = vadd.f32 0.0, %v2249
        %v2251 = vpop.f32.mrb[0].mxu0
        %v2252 = vpop.f32.mrb[0].mxu0
        %v2253 = vadd.f32 0.0, %v2252
        %v2254 = vpop.f32.mrb[0].mxu0
        %2255 = vdwg.mxu0
        %v2260 = vunpack.c.l.b16 %v2178
        %v2261 = vunpack.c.l.b16 %v2179
        %v2262 = vunpack.c.l.b16 %v2180
        %v2263 = vunpack.c.l.b16 %v2181
        %v2264 = vpack.c.b16 %v2261, %v2260
        %v2265 = vpack.c.b16 %v2263, %v2262
        %v2268 = vsel %vm962, %v2176, 0
        %2270 = vmatprep.subr.bf16.mxu0 0
        %2271 = vmatpush1.bf16.msra.mxu0 %v2264
        %2272 = vmatprep.subr.bf16.mxu0 0
        %2273 = vmatpush1.bf16.msra.mxu0 %v2265
        %2274 = vmatprep.subr.bf16.mxu0 0
        %2275 = vmatpush1.bf16.msra.mxu0 0
        %2276 = vmatprep.subr.bf16.mxu0 0
        %2277 = vmatpush1.bf16.msra.mxu0 0
        %2278 = vmatprep.subr.bf16.mxu0 0
        %2279 = vmatpush1.bf16.msra.mxu0 0
        %2280 = vmatprep.subr.bf16.mxu0 0
        %2281 = vmatpush1.bf16.msra.mxu0 0
        %2282 = vmatprep.subr.bf16.mxu0 0
        %2283 = vmatpush1.bf16.msra.mxu0 0
        %2284 = vmatprep.subr.bf16.mxu0 0
        %2285 = vmatpush1.bf16.msra.mxu0 0
        %2286 = vmatprep.subr.bf16.mxu0 0
        %2287 = vmatpush1.bf16.msra.mxu0 0
        %2288 = vmatprep.subr.bf16.mxu0 0
        %2289 = vmatpush1.bf16.msra.mxu0 0
        %2290 = vmatprep.subr.bf16.mxu0 0
        %2291 = vmatpush1.bf16.msra.mxu0 0
        %2292 = vmatprep.subr.bf16.mxu0 0
        %2293 = vmatpush1.bf16.msra.mxu0 0
        %2294 = vmatprep.subr.bf16.mxu0 0
        %2295 = vmatpush1.bf16.msra.mxu0 0
        %2296 = vmatprep.subr.bf16.mxu0 0
        %2297 = vmatpush1.bf16.msra.mxu0 0
        %2298 = vmatprep.subr.bf16.mxu0 0
        %2299 = vmatpush1.bf16.msra.mxu0 0
        %2300 = vmatprep.subr.bf16.mxu0 0
        %2301 = vmatpush1.bf16.msra.mxu0 0
        %2302 = vmatprep.mubr.bf16.mxu0 0
        %2303 = vmatmul.mubr.bf16.gmra.mrb[0].mxu0 %v2268
        %v2304 = vpop.f32.mrb[0].mxu0
        %v2305 = vadd.f32 %v2250, %v2304
        %v2306 = vpop.f32.mrb[0].mxu0
        %v2307 = vpop.f32.mrb[0].mxu0
        %v2308 = vadd.f32 %v2253, %v2307
        %v2309 = vpop.f32.mrb[0].mxu0
        %2310 = vdwg.mxu0
        %s2311 = scalar_lea.vmem %s773, 32 [#allocation17]
        %v2312 = vld [vmem:[%s2311] sm:$0xf]
        %v2313 = vld [vmem:[%s2311 + $0x4] sm:$0xf]
        %v2314 = vld [vmem:[%s2311 + $0x8] sm:$0xf]
        %v2315 = vld [vmem:[%s2311 + $0xc] sm:$0xf]
        %vm2318 = vcmask 1046528
        %v2319 = vrot.slane %v2176, 1
        %v2320 = vrot.slane %v2177, 1
        %v2321 = vsel %vm2318, %v2319, %v2320
        %v2326 = vunpack.c.l.b16 %v2312
        %v2327 = vunpack.c.l.b16 %v2313
        %v2328 = vunpack.c.l.b16 %v2314
        %v2329 = vunpack.c.l.b16 %v2315
        %v2330 = vpack.c.b16 %v2327, %v2326
        %v2331 = vpack.c.b16 %v2329, %v2328
        %v2335 = vsel %vm962, %v2321, 0
        %2337 = vmatprep.subr.bf16.mxu0 0
        %2338 = vmatpush1.bf16.msra.mxu0 %v2330
        %2339 = vmatprep.subr.bf16.mxu0 0
        %2340 = vmatpush1.bf16.msra.mxu0 %v2331
        %2341 = vmatprep.subr.bf16.mxu0 0
        %2342 = vmatpush1.bf16.msra.mxu0 0
        %2343 = vmatprep.subr.bf16.mxu0 0
        %2344 = vmatpush1.bf16.msra.mxu0 0
        %2345 = vmatprep.subr.bf16.mxu0 0
        %2346 = vmatpush1.bf16.msra.mxu0 0
        %2347 = vmatprep.subr.bf16.mxu0 0
        %2348 = vmatpush1.bf16.msra.mxu0 0
        %2349 = vmatprep.subr.bf16.mxu0 0
        %2350 = vmatpush1.bf16.msra.mxu0 0
        %2351 = vmatprep.subr.bf16.mxu0 0
        %2352 = vmatpush1.bf16.msra.mxu0 0
        %2353 = vmatprep.subr.bf16.mxu0 0
        %2354 = vmatpush1.bf16.msra.mxu0 0
        %2355 = vmatprep.subr.bf16.mxu0 0
        %2356 = vmatpush1.bf16.msra.mxu0 0
        %2357 = vmatprep.subr.bf16.mxu0 0
        %2358 = vmatpush1.bf16.msra.mxu0 0
        %2359 = vmatprep.subr.bf16.mxu0 0
        %2360 = vmatpush1.bf16.msra.mxu0 0
        %2361 = vmatprep.subr.bf16.mxu0 0
        %2362 = vmatpush1.bf16.msra.mxu0 0
        %2363 = vmatprep.subr.bf16.mxu0 0
        %2364 = vmatpush1.bf16.msra.mxu0 0
        %2365 = vmatprep.subr.bf16.mxu0 0
        %2366 = vmatpush1.bf16.msra.mxu0 0
        %2367 = vmatprep.subr.bf16.mxu0 0
        %2368 = vmatpush1.bf16.msra.mxu0 0
        %2369 = vmatprep.mubr.bf16.mxu0 0
        %2370 = vmatmul.mubr.bf16.gmra.mrb[0].mxu0 %v2335
        %v2371 = vpop.f32.mrb[0].mxu0
        %v2372 = vadd.f32 0.0, %v2371
        %v2373 = vpop.f32.mrb[0].mxu0
        %v2374 = vpop.f32.mrb[0].mxu0
        %v2375 = vadd.f32 0.0, %v2374
        %v2376 = vpop.f32.mrb[0].mxu0
        %2377 = vdwg.mxu0
        %v2378 = vadd.f32 %v2305, %v2372
        %v2379 = vadd.f32 %v2308, %v2375
        %v2380 = vld [vmem:[%s781] sm:$0x1]
        %v2382 = vlaneseq
        %v2383 = vshrl.u32 %v2382, 7
        %v2384 = vsub.s32 0, %v2383
        %v2385 = vrot.slane %v2380, %v2384
        %v2387 = vadd.f32 %v2378, %v2385
        %v2388 = vadd.f32 %v2379, %v2385
        %v2389 = vmax.f32 %v2387, 0.0
        %v2390 = vmax.f32 %v2388, 0.0
        %v2391 = vmul.f32 %v2389, %v927
        %v2392 = vmul.f32 %v2390, %v928
        %v2393 = vpack.c.bf16 %v2392, %v2391
        %v2395 = vshrl.u32 %v2393, 16
        %v2397 = vrot.slane %v2395, 7
        %v2398 = vshll.u32 %v2393, 16
        %v2400 = vor.u32 %v2397, %v2398
        %v2403 = vsel %vm2175, 0, %v2400
        %v2404 = vsel %vm2175, %v2397, 0
        %v2405 = vld [vmem:[%s790] sm:$0xf]
        %v2406 = vld [vmem:[%s790 + $0x4] sm:$0xf]
        %v2407 = vld [vmem:[%s790 + $0x8] sm:$0xf]
        %v2408 = vld [vmem:[%s790 + $0xc] sm:$0xf]
        %v2409 = vld [vmem:[%s790 + $0x10] sm:$0xf]
        %v2410 = vld [vmem:[%s790 + $0x14] sm:$0xf]
        %v2411 = vld [vmem:[%s790 + $0x18] sm:$0xf]
        %v2412 = vld [vmem:[%s790 + $0x1c] sm:$0xf]
        %s2413 = scalar_lea.vmem %s790, 32 [#allocation20]
        %v2414 = vld [vmem:[%s2413] sm:$0xf]
        %v2415 = vld [vmem:[%s2413 + $0x4] sm:$0xf]
        %v2416 = vld [vmem:[%s2413 + $0x8] sm:$0xf]
        %v2417 = vld [vmem:[%s2413 + $0xc] sm:$0xf]
        %v2418 = vld [vmem:[%s2413 + $0x10] sm:$0xf]
        %v2419 = vld [vmem:[%s2413 + $0x14] sm:$0xf]
        %v2420 = vld [vmem:[%s2413 + $0x18] sm:$0xf]
        %v2421 = vld [vmem:[%s2413 + $0x1c] sm:$0xf]
        %v2423 = vshrl.u32 %v2403, 16
        %v2425 = vshll.u32 %v2403, 16
        %v2427 = vrot.slane %v2425, 1
        %v2428 = vor.u32 %v2423, %v2427
        %v2430 = vshll.u32 %v2404, 16
        %v2432 = vrot.slane %v2430, 1
        %v2433 = vsel %vm2187, %v2428, %v2432
        %v2442 = vunpack.c.l.b16 %v2414
        %v2443 = vunpack.c.l.b16 %v2415
        %v2444 = vunpack.c.l.b16 %v2416
        %v2445 = vunpack.c.l.b16 %v2417
        %v2446 = vunpack.c.l.b16 %v2418
        %v2447 = vunpack.c.l.b16 %v2419
        %v2448 = vunpack.c.l.b16 %v2420
        %v2449 = vunpack.c.l.b16 %v2421
        %v2450 = vpack.c.b16 %v2443, %v2442
        %v2451 = vpack.c.b16 %v2445, %v2444
        %v2452 = vpack.c.b16 %v2447, %v2446
        %v2453 = vpack.c.b16 %v2449, %v2448
        %vm2458 = vcmask 523264
        %v2460 = vsel %vm2458, %v2433, 0
        %2462 = vmatprep.subr.bf16.mxu0 0
        %2463 = vmatpush1.bf16.msra.mxu0 %v2450
        %2464 = vmatprep.subr.bf16.mxu0 0
        %2465 = vmatpush1.bf16.msra.mxu0 %v2451
        %2466 = vmatprep.subr.bf16.mxu0 0
        %2467 = vmatpush1.bf16.msra.mxu0 %v2452
        %2468 = vmatprep.subr.bf16.mxu0 0
        %2469 = vmatpush1.bf16.msra.mxu0 %v2453
        %2470 = vmatprep.subr.bf16.mxu0 0
        %2471 = vmatpush1.bf16.msra.mxu0 0
        %2472 = vmatprep.subr.bf16.mxu0 0
        %2473 = vmatpush1.bf16.msra.mxu0 0
        %2474 = vmatprep.subr.bf16.mxu0 0
        %2475 = vmatpush1.bf16.msra.mxu0 0
        %2476 = vmatprep.subr.bf16.mxu0 0
        %2477 = vmatpush1.bf16.msra.mxu0 0
        %2478 = vmatprep.subr.bf16.mxu0 0
        %2479 = vmatpush1.bf16.msra.mxu0 0
        %2480 = vmatprep.subr.bf16.mxu0 0
        %2481 = vmatpush1.bf16.msra.mxu0 0
        %2482 = vmatprep.subr.bf16.mxu0 0
        %2483 = vmatpush1.bf16.msra.mxu0 0
        %2484 = vmatprep.subr.bf16.mxu0 0
        %2485 = vmatpush1.bf16.msra.mxu0 0
        %2486 = vmatprep.subr.bf16.mxu0 0
        %2487 = vmatpush1.bf16.msra.mxu0 0
        %2488 = vmatprep.subr.bf16.mxu0 0
        %2489 = vmatpush1.bf16.msra.mxu0 0
        %2490 = vmatprep.subr.bf16.mxu0 0
        %2491 = vmatpush1.bf16.msra.mxu0 0
        %2492 = vmatprep.subr.bf16.mxu0 0
        %2493 = vmatpush1.bf16.msra.mxu0 0
        %2494 = vmatprep.mubr.bf16.mxu0 0
        %2495 = vmatmul.mubr.bf16.gmra.mrb[0].mxu0 %v2460
        %v2496 = vpop.f32.mrb[0].mxu0
        %v2497 = vadd.f32 0.0, %v2496
        %v2498 = vpop.f32.mrb[0].mxu0
        %v2499 = vpop.f32.mrb[0].mxu0
        %v2500 = vadd.f32 0.0, %v2499
        %v2501 = vpop.f32.mrb[0].mxu0
        %2502 = vdwg.mxu0
        %v2511 = vunpack.c.l.b16 %v2405
        %v2512 = vunpack.c.l.b16 %v2406
        %v2513 = vunpack.c.l.b16 %v2407
        %v2514 = vunpack.c.l.b16 %v2408
        %v2515 = vunpack.c.l.b16 %v2409
        %v2516 = vunpack.c.l.b16 %v2410
        %v2517 = vunpack.c.l.b16 %v2411
        %v2518 = vunpack.c.l.b16 %v2412
        %v2519 = vpack.c.b16 %v2512, %v2511
        %v2520 = vpack.c.b16 %v2514, %v2513
        %v2521 = vpack.c.b16 %v2516, %v2515
        %v2522 = vpack.c.b16 %v2518, %v2517
        %v2527 = vsel %vm2458, %v2403, 0
        %2529 = vmatprep.subr.bf16.mxu0 0
        %2530 = vmatpush1.bf16.msra.mxu0 %v2519
        %2531 = vmatprep.subr.bf16.mxu0 0
        %2532 = vmatpush1.bf16.msra.mxu0 %v2520
        %2533 = vmatprep.subr.bf16.mxu0 0
        %2534 = vmatpush1.bf16.msra.mxu0 %v2521
        %2535 = vmatprep.subr.bf16.mxu0 0
        %2536 = vmatpush1.bf16.msra.mxu0 %v2522
        %2537 = vmatprep.subr.bf16.mxu0 0
        %2538 = vmatpush1.bf16.msra.mxu0 0
        %2539 = vmatprep.subr.bf16.mxu0 0
        %2540 = vmatpush1.bf16.msra.mxu0 0
        %2541 = vmatprep.subr.bf16.mxu0 0
        %2542 = vmatpush1.bf16.msra.mxu0 0
        %2543 = vmatprep.subr.bf16.mxu0 0
        %2544 = vmatpush1.bf16.msra.mxu0 0
        %2545 = vmatprep.subr.bf16.mxu0 0
        %2546 = vmatpush1.bf16.msra.mxu0 0
        %2547 = vmatprep.subr.bf16.mxu0 0
        %2548 = vmatpush1.bf16.msra.mxu0 0
        %2549 = vmatprep.subr.bf16.mxu0 0
        %2550 = vmatpush1.bf16.msra.mxu0 0
        %2551 = vmatprep.subr.bf16.mxu0 0
        %2552 = vmatpush1.bf16.msra.mxu0 0
        %2553 = vmatprep.subr.bf16.mxu0 0
        %2554 = vmatpush1.bf16.msra.mxu0 0
        %2555 = vmatprep.subr.bf16.mxu0 0
        %2556 = vmatpush1.bf16.msra.mxu0 0
        %2557 = vmatprep.subr.bf16.mxu0 0
        %2558 = vmatpush1.bf16.msra.mxu0 0
        %2559 = vmatprep.subr.bf16.mxu0 0
        %2560 = vmatpush1.bf16.msra.mxu0 0
        %2561 = vmatprep.mubr.bf16.mxu0 0
        %2562 = vmatmul.mubr.bf16.gmra.mrb[0].mxu0 %v2527
        %v2563 = vpop.f32.mrb[0].mxu0
        %v2564 = vadd.f32 %v2497, %v2563
        %v2565 = vpop.f32.mrb[0].mxu0
        %v2566 = vpop.f32.mrb[0].mxu0
        %v2567 = vadd.f32 %v2500, %v2566
        %v2568 = vpop.f32.mrb[0].mxu0
        %2569 = vdwg.mxu0
        %s2570 = scalar_lea.vmem %s790, 64 [#allocation20]
        %v2571 = vld [vmem:[%s2570] sm:$0xf]
        %v2572 = vld [vmem:[%s2570 + $0x4] sm:$0xf]
        %v2573 = vld [vmem:[%s2570 + $0x8] sm:$0xf]
        %v2574 = vld [vmem:[%s2570 + $0xc] sm:$0xf]
        %v2575 = vld [vmem:[%s2570 + $0x10] sm:$0xf]
        %v2576 = vld [vmem:[%s2570 + $0x14] sm:$0xf]
        %v2577 = vld [vmem:[%s2570 + $0x18] sm:$0xf]
        %v2578 = vld [vmem:[%s2570 + $0x1c] sm:$0xf]
        %v2581 = vrot.slane %v2403, 1
        %v2582 = vrot.slane %v2404, 1
        %v2583 = vsel %vm2318, %v2581, %v2582
        %v2592 = vunpack.c.l.b16 %v2571
        %v2593 = vunpack.c.l.b16 %v2572
        %v2594 = vunpack.c.l.b16 %v2573
        %v2595 = vunpack.c.l.b16 %v2574
        %v2596 = vunpack.c.l.b16 %v2575
        %v2597 = vunpack.c.l.b16 %v2576
        %v2598 = vunpack.c.l.b16 %v2577
        %v2599 = vunpack.c.l.b16 %v2578
        %v2600 = vpack.c.b16 %v2593, %v2592
        %v2601 = vpack.c.b16 %v2595, %v2594
        %v2602 = vpack.c.b16 %v2597, %v2596
        %v2603 = vpack.c.b16 %v2599, %v2598
        %v2609 = vsel %vm2458, %v2583, 0
        %2611 = vmatprep.subr.bf16.mxu0 0
        %2612 = vmatpush1.bf16.msra.mxu0 %v2600
        %2613 = vmatprep.subr.bf16.mxu0 0
        %2614 = vmatpush1.bf16.msra.mxu0 %v2601
        %2615 = vmatprep.subr.bf16.mxu0 0
        %2616 = vmatpush1.bf16.msra.mxu0 %v2602
        %2617 = vmatprep.subr.bf16.mxu0 0
        %2618 = vmatpush1.bf16.msra.mxu0 %v2603
        %2619 = vmatprep.subr.bf16.mxu0 0
        %2620 = vmatpush1.bf16.msra.mxu0 0
        %2621 = vmatprep.subr.bf16.mxu0 0
        %2622 = vmatpush1.bf16.msra.mxu0 0
        %2623 = vmatprep.subr.bf16.mxu0 0
        %2624 = vmatpush1.bf16.msra.mxu0 0
        %2625 = vmatprep.subr.bf16.mxu0 0
        %2626 = vmatpush1.bf16.msra.mxu0 0
        %2627 = vmatprep.subr.bf16.mxu0 0
        %2628 = vmatpush1.bf16.msra.mxu0 0
        %2629 = vmatprep.subr.bf16.mxu0 0
        %2630 = vmatpush1.bf16.msra.mxu0 0
        %2631 = vmatprep.subr.bf16.mxu0 0
        %2632 = vmatpush1.bf16.msra.mxu0 0
        %2633 = vmatprep.subr.bf16.mxu0 0
        %2634 = vmatpush1.bf16.msra.mxu0 0
        %2635 = vmatprep.subr.bf16.mxu0 0
        %2636 = vmatpush1.bf16.msra.mxu0 0
        %2637 = vmatprep.subr.bf16.mxu0 0
        %2638 = vmatpush1.bf16.msra.mxu0 0
        %2639 = vmatprep.subr.bf16.mxu0 0
        %2640 = vmatpush1.bf16.msra.mxu0 0
        %2641 = vmatprep.subr.bf16.mxu0 0
        %2642 = vmatpush1.bf16.msra.mxu0 0
        %2643 = vmatprep.mubr.bf16.mxu0 0
        %2644 = vmatmul.mubr.bf16.gmra.mrb[0].mxu0 %v2609
        %v2645 = vpop.f32.mrb[0].mxu0
        %v2646 = vadd.f32 0.0, %v2645
        %v2647 = vpop.f32.mrb[0].mxu0
        %v2648 = vpop.f32.mrb[0].mxu0
        %v2649 = vadd.f32 0.0, %v2648
        %v2650 = vpop.f32.mrb[0].mxu0
        %2651 = vdwg.mxu0
        %v2652 = vadd.f32 %v2564, %v2646
        %v2653 = vadd.f32 %v2567, %v2649
        %v2654 = vld [vmem:[%s798] sm:$0x1]
        %v2656 = vlaneseq
        %v2657 = vshrl.u32 %v2656, 7
        %v2658 = vsub.s32 0, %v2657
        %v2659 = vrot.slane %v2654, %v2658
        %v2661 = vadd.f32 %v2652, %v2659
        %v2662 = vadd.f32 %v2653, %v2659
        %v2663 = vmul.f32 %v2661, %v927
        %v2664 = vmul.f32 %v2662, %v928
        %v2665 = vadd.f32 %v2159, %v2663
        %v2666 = vadd.f32 %v2160, %v2664
        %v2667 = vsel %vm962, %v2665, 0.0
        %2668 = vadd.xlane.f32.xlu0 %v2667
        %v2669 = vpop.xlane.xlu0 %2668
        %v2670 = vsel %vm962, %v2666, 0.0
        %2671 = vadd.xlane.f32.xlu0 %v2670
        %v2672 = vpop.xlane.xlu0 %2671
        %v2673 = vmul.f32 %v2669, %v2128
        %v2674 = vmul.f32 %v2672, %v2128
        %v2675 = vsub.f32 %v2665, %v2673
        %v2676 = vsub.f32 %v2666, %v2674
        %v2677 = vmul.f32 %v2675, %v2675
        %v2678 = vmul.f32 %v2676, %v2676
        %v2679 = vsel %vm962, %v2677, 0.0
        %2680 = vadd.xlane.f32.xlu0 %v2679
        %v2681 = vpop.xlane.xlu0 %2680
        %v2682 = vsel %vm962, %v2678, 0.0
        %2683 = vadd.xlane.f32.xlu0 %v2682
        %v2684 = vpop.xlane.xlu0 %2683
        %v2685 = vmul.f32 %v2681, %v2128
        %v2686 = vmul.f32 %v2684, %v2128
        %v2687 = vadd.f32 %v2685, 1e-05
        %v2688 = vadd.f32 %v2686, 1e-05
        %v2689 = vrsqrt.pop %v2687
        %v2690 = vrsqrt.pop %v2688
        %v2691 = vmul.f32 %v2675, %v2689
        %v2692 = vmul.f32 %v2676, %v2690
        %v2693 = vlaneseq
        %v2694 = vshrl.u32 %v2693, 7
        %v2695 = vsub.s32 0, %v2694
        %v2696 = vrot.slane %v920, %v2695
        %v2697 = vmul.f32 %v2691, %v2696
        %v2698 = vmul.f32 %v2692, %v2696
        %v2699 = vlaneseq
        %v2700 = vshrl.u32 %v2699, 7
        %v2701 = vsub.s32 1, %v2700
        %v2702 = vrot.slane %v920, %v2701
        %v2703 = vadd.f32 %v2697, %v2702
        %v2704 = vadd.f32 %v2698, %v2702
        %2705 = vst.msk [vmem:[#allocation2] sm:$0xff] %vm962, %v2703
        %2706 = vst.msk [vmem:[#allocation2 + $0x8] sm:$0xff] %vm962, %v2704
        %p2707 = scmp.eq.s32.totalorder %s61, 1
        // Predicated region
        $region129: #{_lambda_.1} parent=71 // pred_check
          %p2708 = pneg %p2707
        $region130: #{_lambda_.1} parent=71 // pred_check_branch
          %2710 = sbr.rel (%p2708) target = $region132
        $region131: #{_lambda_.1} parent=71 // pred_region
          %v2711 = vmul.f32 %v2703, %v927
          %v2712 = vmul.f32 %v2704, %v928
          %2713 = vst.msk [vmem:[%s894] sm:$0xff] %vm962, %v2711
          %2714 = vst.msk [vmem:[%s894 + $0x8] sm:$0xff] %vm962, %v2712
          %v2715 = vpack.c.bf16 %v2712, %v2711
          %v2716 = vld [vmem:[#allocation23] sm:$0xf]
          %v2717 = vld [vmem:[#allocation23 + $0x4] sm:$0xf]
          %v2718 = vld [vmem:[#allocation23 + $0x8] sm:$0xf]
          %v2719 = vld [vmem:[#allocation23 + $0xc] sm:$0xf]
          %v2720 = vld [vmem:[#allocation25] sm:$0x1]
          %v2722 = vlaneseq
          %v2723 = vshrl.u32 %v2722, 7
          %v2724 = vsub.s32 0, %v2723
          %v2725 = vrot.slane %v2720, %v2724
          %v2731 = vunpack.c.l.b16 %v2716
          %v2732 = vunpack.c.l.b16 %v2717
          %v2733 = vunpack.c.l.b16 %v2718
          %v2734 = vunpack.c.l.b16 %v2719
          %v2735 = vpack.c.b16 %v2732, %v2731
          %v2736 = vpack.c.b16 %v2734, %v2733
          %v2740 = vsel %vm962, %v2715, 0
          %2742 = vmatprep.subr.bf16.mxu0 0
          %2743 = vmatpush1.bf16.msra.mxu0 %v2735
          %2744 = vmatprep.subr.bf16.mxu0 0
          %2745 = vmatpush1.bf16.msra.mxu0 %v2736
          %2746 = vmatprep.subr.bf16.mxu0 0
          %2747 = vmatpush1.bf16.msra.mxu0 0
          %2748 = vmatprep.subr.bf16.mxu0 0
          %2749 = vmatpush1.bf16.msra.mxu0 0
          %2750 = vmatprep.subr.bf16.mxu0 0
          %2751 = vmatpush1.bf16.msra.mxu0 0
          %2752 = vmatprep.subr.bf16.mxu0 0
          %2753 = vmatpush1.bf16.msra.mxu0 0
          %2754 = vmatprep.subr.bf16.mxu0 0
          %2755 = vmatpush1.bf16.msra.mxu0 0
          %2756 = vmatprep.subr.bf16.mxu0 0
          %2757 = vmatpush1.bf16.msra.mxu0 0
          %2758 = vmatprep.subr.bf16.mxu0 0
          %2759 = vmatpush1.bf16.msra.mxu0 0
          %2760 = vmatprep.subr.bf16.mxu0 0
          %2761 = vmatpush1.bf16.msra.mxu0 0
          %2762 = vmatprep.subr.bf16.mxu0 0
          %2763 = vmatpush1.bf16.msra.mxu0 0
          %2764 = vmatprep.subr.bf16.mxu0 0
          %2765 = vmatpush1.bf16.msra.mxu0 0
          %2766 = vmatprep.subr.bf16.mxu0 0
          %2767 = vmatpush1.bf16.msra.mxu0 0
          %2768 = vmatprep.subr.bf16.mxu0 0
          %2769 = vmatpush1.bf16.msra.mxu0 0
          %2770 = vmatprep.subr.bf16.mxu0 0
          %2771 = vmatpush1.bf16.msra.mxu0 0
          %2772 = vmatprep.subr.bf16.mxu0 0
          %2773 = vmatpush1.bf16.msra.mxu0 0
          %2774 = vmatprep.mubr.bf16.mxu0 0
          %2775 = vmatmul.mubr.bf16.gmra.mrb[0].mxu0 %v2740
          %v2776 = vpop.f32.mrb[0].mxu0
          %v2777 = vadd.f32 %v2725, %v2776
          %v2778 = vpop.f32.mrb[0].mxu0
          %v2779 = vpop.f32.mrb[0].mxu0
          %v2780 = vadd.f32 %v2725, %v2779
          %v2781 = vpop.f32.mrb[0].mxu0
          %2782 = vdwg.mxu0
          %v2783 = vmul.f32 %v2777, %v927
          %v2784 = vmul.f32 %v2780, %v928
          %2785 = vst [vmem:[%s901] sm:$0xff] %v2783
          %2786 = vst [vmem:[%s901 + $0x8] sm:$0xff] %v2784
        $region132: #{_lambda_.1} parent=71 // pred_fallthru
          _
        %s2787 = sand.u32 %s404, 1
        %s2788 = scalar_lea.sflag [#allocation7], %s2787
        %s2789 = sand.u32 %s404, 1
        %s2790 = smul.addr %s2789, 16
        %s2791 = scalar_lea.vmem [#allocation26], %s2790
        %s2792 = sand.u32 %s430, 1
        %s2793 = scalar_lea.sflag [#allocation28], %s2792
        %s2794 = sand.u32 %s430, 1
        %s2795 = smul.addr %s2794, 16
        %s2796 = scalar_lea.vmem [#allocation27], %s2795
        // Predicated region
        $region133: #{_lambda_.1} parent=71 // pred_check
          %p2797 = pneg %p414
        $region134: #{_lambda_.1} parent=71 // pred_check_branch
          %2799 = sbr.rel (%p2797) target = $region136
        $region135: #{_lambda_.1} parent=71 // pred_region
          %s2801 = ssub.s32 256, 256
          %2802 = vsyncadd %s2788, %s2801
          %s2803 = smul.addr %s60, 2
          %s2804 = smul.addr %s2803, 128
          %s2805 = scalar_lea.hbm %s14, %s2804
          %s2806 = sshll.u32 %s2791, 4
          %s2807 = int_to_ptr.vmem [resolvable:$true] %s2806
          %2812 = dma.vmem_to_hbm [thread:$0]  %s2807, 256, %s2805, %s2788, 128, 128, 8
        $region136: #{_lambda_.1} parent=71 // pred_fallthru
          _
        // Predicated region
        $region137: #{_lambda_.1} parent=71 // pred_check
          %p2813 = pneg %p440
        $region138: #{_lambda_.1} parent=71 // pred_check_branch
          %2815 = sbr.rel (%p2813) target = $region140
        $region139: #{_lambda_.1} parent=71 // pred_region
          %s2817 = ssub.s32 256, 256
          %2818 = vsyncadd %s2793, %s2817
          %s2819 = smul.addr %s60, 2
          %s2820 = smul.addr %s2819, 128
          %s2821 = scalar_lea.hbm %s15, %s2820
          %s2822 = sshll.u32 %s2796, 4
          %s2823 = int_to_ptr.vmem [resolvable:$true] %s2822
          %2828 = dma.vmem_to_hbm [thread:$0]  %s2823, 256, %s2821, %s2793, 128, 128, 8
        $region140: #{_lambda_.1} parent=71 // pred_fallthru
          _
      $region72: #{_lambda_.1} parent=5 // pred_fallthru
        _
      %p2829 = scmp.le.s32.totalorder 2, %s51
      // Predicated region
      $region141: #{_lambda_.1} parent=5 // pred_check
        %p2830 = pneg %p2829
      $region142: #{_lambda_.1} parent=5 // pred_check_branch
        %2832 = sbr.rel (%p2830) target = $region144
      $region143: #{_lambda_.1} parent=5 // pred_region
        %s2833 = ssub.s32 %s51, 2
        // Predicated region
        $region145: #{_lambda_.1} parent=143 // pred_check
          %p2834 = pneg %p420
        $region146: #{_lambda_.1} parent=143 // pred_check_branch
          %2836 = sbr.rel (%p2834) target = $region148
        $region147: #{_lambda_.1} parent=143 // pred_region
          %s2837 = sand.u32 %s405, 1
          %s2838 = scalar_lea.sflag [#allocation7], %s2837
          %s2839 = sand.u32 %s405, 1
          %s2840 = smul.addr %s2839, 16
          %s2841 = scalar_lea.vmem [#allocation26], %s2840
          %2842 = dma.done %s2838, 256
        $region148: #{_lambda_.1} parent=143 // pred_fallthru
          _
        // Predicated region
        $region149: #{_lambda_.1} parent=143 // pred_check
          %p2843 = pneg %p446
        $region150: #{_lambda_.1} parent=143 // pred_check_branch
          %2845 = sbr.rel (%p2843) target = $region152
        $region151: #{_lambda_.1} parent=143 // pred_region
          %s2846 = sand.u32 %s431, 1
          %s2847 = scalar_lea.sflag [#allocation28], %s2846
          %s2848 = sand.u32 %s431, 1
          %s2849 = smul.addr %s2848, 16
          %s2850 = scalar_lea.vmem [#allocation27], %s2849
          %2851 = dma.done %s2847, 256
        $region152: #{_lambda_.1} parent=143 // pred_fallthru
          _
      $region144: #{_lambda_.1} parent=5 // pred_fallthru
        _
    $region6: #{_lambda_.1} parent=1 // loop_footer
      %s55 = sadd.s32 1, %s51
    $region7: #{_lambda_.1} parent=1 // loop_footer_branch
      %50 = sbr.rel target = $region3
    $region8: #{_lambda_.1} parent=1 // loop_exit
      _
    %2852 = vsyncpa [#allocation6], 1
    %s2853 = scalar_lea.sflag [#allocation6], 1
    %2854 = vsyncpa %s2853, 1
    %2855 = vsyncpa [#allocation9], 1
    %s2856 = scalar_lea.sflag [#allocation9], 1
    %2857 = vsyncpa %s2856, 1
    %2858 = vsyncpa [#allocation12], 1
    %s2859 = scalar_lea.sflag [#allocation12], 1
    %2860 = vsyncpa %s2859, 1
    %2861 = vsyncpa [#allocation15], 1
    %s2862 = scalar_lea.sflag [#allocation15], 1
    %2863 = vsyncpa %s2862, 1
    %2864 = vsyncpa [#allocation18], 1
    %s2865 = scalar_lea.sflag [#allocation18], 1
    %2866 = vsyncpa %s2865, 1
    %2867 = vsyncpa [#allocation21], 1
    %s2868 = scalar_lea.sflag [#allocation21], 1
    %2869 = vsyncpa %s2868, 1
    %2870 = vsyncpa [#allocation24], 1
    %2871 = vsyncpa [#allocation7], 1
    %s2872 = scalar_lea.sflag [#allocation7], 1
    %2873 = vsyncpa %s2872, 1
    %2874 = vsyncpa [#allocation28], 1
    %s2875 = scalar_lea.sflag [#allocation28], 1
    %2876 = vsyncpa %s2875, 1

</llo_original>
